<compile_context>
chip_gen: v5e
topology: v5e:2x2
jax: 0.10.0
libtpu: 0.0.40
codegen_flags: <defaults>
</compile_context>

<pallas_src>
import jax
import jax.numpy as jnp
from jax import lax
from jax.experimental import pallas as pl
from jax.experimental.pallas import tpu as pltpu

EMBEDDING_DIM = 16               # args.embedding_dim
N_LAYERS = 1                     # args.n_layers
HIDDEN_DIM = 2 * EMBEDDING_DIM   # rnn1 hidden size

LANE = 128                       # TPU lane width; gates/state padded to this
MXU_DTYPE = jnp.bfloat16         # MXU operand dtype; accumulation stays f32

# PyTorch stacks gates as (i, f, g, o); we pack columns as (i, f, o, g) so the
# three sigmoid gates are lane-contiguous.
_GATE_PERM = (0, 1, 3, 2)


def _encoder_kernel(xproj_ref, w1hh_ref, b1_ref, w2hh_ref, w2ih_ref, b2_ref,
                    out_ref):
    """Fused 2-layer LSTM encoder; single grid point, time loop in-kernel.

    xproj_ref: (S, B, 4*LANE) f32   hoisted layer-1 input projection x@W1_ih
    w1hh_ref:  (LANE, 4*LANE) bf16  layer-1 recurrent weight, gate-padded
    b1_ref:    (1, 4*LANE)   f32    layer-1 combined bias (b_ih + b_hh)
    w2hh_ref:  (LANE, 4*LANE) bf16  layer-2 recurrent weight, gate-padded
    w2ih_ref:  (LANE, 4*LANE) bf16  layer-2 input weight (rows = h1 lanes)
    b2_ref:    (1, 4*LANE)   f32    layer-2 combined bias
    out_ref:   (B, LANE)     f32    final layer-2 hidden state (pad lanes 0)
    """
    S, B, G = xproj_ref.shape
    HP = out_ref.shape[-1]

    # Hoist bias broadcasts out of the unrolled time loop.
    b1 = jnp.broadcast_to(b1_ref[...], (B, G))
    b2 = jnp.broadcast_to(b2_ref[...], (B, G))

    def nonlin(gates, c_prev):
        # Gate order (i, f, o, g): one batched sigmoid + one tanh per step.
        sig = jax.nn.sigmoid(gates[:, :3 * HP])
        i_g = sig[:, 0 * HP:1 * HP]
        f_g = sig[:, 1 * HP:2 * HP]
        o_g = sig[:, 2 * HP:3 * HP]
        g_g = jnp.tanh(gates[:, 3 * HP:4 * HP])
        c_new = f_g * c_prev + i_g * g_g
        h_new = o_g * jnp.tanh(c_new)
        return h_new, c_new

    def body(t, carry):
        h1, c1, h2, c2 = carry
        # Layer-2 recurrent matmul does not depend on this step's layer-1
        # output -> schedulable in parallel with the layer-1 step.
        rec2 = jnp.dot(h2.astype(MXU_DTYPE), w2hh_ref[...],
                       preferred_element_type=jnp.float32)
        gates1 = (jnp.dot(h1.astype(MXU_DTYPE), w1hh_ref[...],
                          preferred_element_type=jnp.float32)
                  + xproj_ref[t] + b1)
        h1, c1 = nonlin(gates1, c1)
        gates2 = (rec2
                  + jnp.dot(h1.astype(MXU_DTYPE), w2ih_ref[...],
                            preferred_element_type=jnp.float32)
                  + b2)
        h2, c2 = nonlin(gates2, c2)
        return h1, c1, h2, c2

    z0 = jnp.zeros((B, HP), jnp.float32)
    unroll = True if S <= 16 else 4     # guard full unroll for long sequences
    _, _, h2, _ = lax.fori_loop(0, S, body, (z0, z0, z0, z0), unroll=unroll)
    out_ref[...] = h2                   # single lane-dense (B, 128) store


def _pack_gate_weight(w, h, n_rows, hp=LANE):
    """(4*h, in_dim) PyTorch weight -> (n_rows, 4*hp) packed [in_dim rows used].

    Gate g of the PyTorch stack lands in columns [slot*hp, slot*hp + h) with
    slot order (i, f, o, g). Padded rows/columns are exactly zero.
    """
    in_dim = w.shape[1]
    out = jnp.zeros((n_rows, 4 * hp), jnp.float32)
    for slot, src in enumerate(_GATE_PERM):
        out = out.at[:in_dim, slot * hp:slot * hp + h].set(
            w[src * h:(src + 1) * h, :].T)
    return out.astype(MXU_DTYPE)


def _pack_gate_bias(b_ih, b_hh, h, hp=LANE):
    bsum = (b_ih + b_hh).astype(jnp.float32)
    out = jnp.zeros((1, 4 * hp), jnp.float32)
    for slot, src in enumerate(_GATE_PERM):
        out = out.at[0, slot * hp:slot * hp + h].set(bsum[src * h:(src + 1) * h])
    return out


def pack_encoder_params(params1, params2):
    """One-time weight preprocessing (kept outside the jitted forward path)."""
    w1_ih, w1_hh, b1_ih, b1_hh = params1
    w2_ih, w2_hh, b2_ih, b2_hh = params2
    h1 = w1_hh.shape[1]                 # hidden_dim (32)
    h2 = w2_hh.shape[1]                 # embedding_dim (16)
    w1ih = _pack_gate_weight(w1_ih, h1, n_rows=w1_ih.shape[1])   # (F, 512)
    w1hh = _pack_gate_weight(w1_hh, h1, n_rows=LANE)             # (128, 512)
    w2ih = _pack_gate_weight(w2_ih, h2, n_rows=LANE)             # (128, 512)
    w2hh = _pack_gate_weight(w2_hh, h2, n_rows=LANE)             # (128, 512)
    b1 = _pack_gate_bias(b1_ih, b1_hh, h1)
    b2 = _pack_gate_bias(b2_ih, b2_hh, h2)
    return w1ih, w1hh, b1, w2ih, w2hh, b2


@jax.jit
def _encoder_padded(x_bsf, w1ih, w1hh, b1, w2ih, w2hh, b2):
    """x: (batch, seq, n_features) -> padded final hidden state (batch, LANE)."""
    B, S, F = x_bsf.shape
    x_tm = jnp.transpose(x_bsf, (1, 0, 2)).astype(jnp.float32)      # (S, B, F)
    # Layer-1 input projection hoisted out of the recurrence: one (S*B, F)
    # GEMM with the same bf16 MXU operand quantization as the in-kernel dots.
    xproj = jnp.dot(x_tm.reshape(S * B, F).astype(MXU_DTYPE), w1ih,
                    preferred_element_type=jnp.float32)
    xproj = xproj.reshape(S, B, 4 * LANE)

    return pl.pallas_call(
        _encoder_kernel,
        out_shape=jax.ShapeDtypeStruct((B, LANE), jnp.float32),
        grid_spec=pltpu.PrefetchScalarGridSpec(
            num_scalar_prefetch=0,
            grid=(1,),                  # whole recurrence in one invocation
            in_specs=[
                pl.BlockSpec((S, B, 4 * LANE), lambda i: (0, 0, 0)),
                pl.BlockSpec((LANE, 4 * LANE), lambda i: (0, 0)),
                pl.BlockSpec((1, 4 * LANE), lambda i: (0, 0)),
                pl.BlockSpec((LANE, 4 * LANE), lambda i: (0, 0)),
                pl.BlockSpec((LANE, 4 * LANE), lambda i: (0, 0)),
                pl.BlockSpec((1, 4 * LANE), lambda i: (0, 0)),
            ],
            out_specs=pl.BlockSpec((B, LANE), lambda i: (0, 0)),
        ),
        compiler_params=pltpu.CompilerParams(
            dimension_semantics=("arbitrary",)),
    )(xproj, w1hh, b1, w2hh, w2ih, b2)


def encoder_forward(x_bsf, packed):
    """Matches PyTorch Encoder.forward: returns hidden_n (n_layers, B, E)."""
    out = _encoder_padded(x_bsf, *packed)
    # Only the first EMBEDDING_DIM lanes are real; the rest are exact zeros.
    return out[:, :EMBEDDING_DIM][None, :, :]


def init_lstm_params(key, input_size, hidden_size):
    """PyTorch-style uniform(-1/sqrt(H), 1/sqrt(H)) init, deterministic."""
    k = 1.0 / jnp.sqrt(jnp.float32(hidden_size))
    k1, k2, k3, k4 = jax.random.split(key, 4)
    w_ih = jax.random.uniform(k1, (4 * hidden_size, input_size), jnp.float32, -k, k)
    w_hh = jax.random.uniform(k2, (4 * hidden_size, hidden_size), jnp.float32, -k, k)
    b_ih = jax.random.uniform(k3, (4 * hidden_size,), jnp.float32, -k, k)
    b_hh = jax.random.uniform(k4, (4 * hidden_size,), jnp.float32, -k, k)
    return w_ih, w_hh, b_ih, b_hh


def _lstm_layer_ref(x_tm, w_ih, w_hh, b_ih, b_hh):
    """Pure-JAX reference (lax.scan), matched MXU operand dtype, f32 state."""
    _, B, _ = x_tm.shape
    H = w_ih.shape[0] // 4
    wih_t = w_ih.T.astype(MXU_DTYPE)
    whh_t = w_hh.T.astype(MXU_DTYPE)
    bias = (b_ih + b_hh).astype(jnp.float32)

    def step(carry, x_t):
        h, c = carry
        gates = (jnp.dot(x_t.astype(MXU_DTYPE), wih_t,
                         preferred_element_type=jnp.float32)
                 + jnp.dot(h.astype(MXU_DTYPE), whh_t,
                           preferred_element_type=jnp.float32)
                 + bias)
        i = jax.nn.sigmoid(gates[:, 0 * H:1 * H])
        f = jax.nn.sigmoid(gates[:, 1 * H:2 * H])
        g = jnp.tanh(gates[:, 2 * H:3 * H])
        o = jax.nn.sigmoid(gates[:, 3 * H:4 * H])
        c = f * c + i * g
        h = o * jnp.tanh(c)
        return (h, c), h

    init = (jnp.zeros((B, H), jnp.float32), jnp.zeros((B, H), jnp.float32))
    _, hs = jax.lax.scan(step, init, x_tm)
    return hs


if __name__ == "__main__":
    # Small, deterministic shapes consistent with the module.
    batch = 2
    seq_len = 8
    n_features = 4

    root = jax.random.PRNGKey(0)
    kx, k1, k2 = jax.random.split(root, 3)

    x = jax.random.normal(kx, (batch, seq_len, n_features), jnp.float32)
    params1 = init_lstm_params(k1, n_features, HIDDEN_DIM)
    params2 = init_lstm_params(k2, HIDDEN_DIM, EMBEDDING_DIM)

    # One-time weight packing, outside the jitted forward path.
    packed = pack_encoder_params(params1, params2)

    # Padded-lane invariance check (protects the single (B,128) output store
    # against future packing changes).
    out_padded = jax.block_until_ready(_encoder_padded(x, *packed))
    assert out_padded.shape == (batch, LANE)
    assert jnp.all(out_padded[:, EMBEDDING_DIM:] == 0.0), "padded lanes not zero"

    hidden_n = encoder_forward(x, packed)
    hidden_n = jax.block_until_ready(hidden_n)
    assert hidden_n.shape == (N_LAYERS, batch, EMBEDDING_DIM)

    # Verify against a pure-JAX lax.scan reference (same bf16 MXU operand
    # quantization, f32 accumulation/state). Residual differences come only
    # from f32 accumulation order and rare bf16 re-rounding of the layer-1
    # output, so a 2e-3 tolerance is still a tight structural check.
    x_tm = jnp.transpose(x, (1, 0, 2))
    ref1 = _lstm_layer_ref(x_tm, *params1)
    ref2 = _lstm_layer_ref(ref1, *params2)
    ref_hidden_n = ref2[-1][None, :, :]
    assert jnp.allclose(hidden_n, ref_hidden_n, atol=2e-3, rtol=2e-3), (
        float(jnp.max(jnp.abs(hidden_n - ref_hidden_n))))

    print("KERNEL_OK")
</pallas_src>

<mosaic_0001>
module attributes {stable_mosaic.version = 11 : i64} {
  func.func @_encoder_kernel(%arg0: i32, %arg1: memref<8x2x512xf32, #tpu.memory_space<vmem>>, %arg2: memref<128x512xbf16, #tpu.memory_space<vmem>>, %arg3: memref<1x512xf32, #tpu.memory_space<vmem>>, %arg4: memref<128x512xbf16, #tpu.memory_space<vmem>>, %arg5: memref<128x512xbf16, #tpu.memory_space<vmem>>, %arg6: memref<1x512xf32, #tpu.memory_space<vmem>>, %arg7: memref<2x128xf32, #tpu.memory_space<vmem>>) attributes {dimension_semantics = [#tpu.dimension_semantics<arbitrary>], iteration_bounds = array<i64: 1>, scalar_prefetch = 0 : i64, scratch_operands = 0 : i64, tpu.core_type = #tpu.core_type<tc>, window_params = [{pipeline_mode = #tpu.pipeline_mode<synchronous>, transform_indices = @transform_0, window_bounds = array<i64: 8, 2, 512>}, {pipeline_mode = #tpu.pipeline_mode<synchronous>, transform_indices = @transform_1, window_bounds = array<i64: 128, 512>}, {pipeline_mode = #tpu.pipeline_mode<synchronous>, transform_indices = @transform_2, window_bounds = array<i64: 1, 512>}, {pipeline_mode = #tpu.pipeline_mode<synchronous>, transform_indices = @transform_3, window_bounds = array<i64: 128, 512>}, {pipeline_mode = #tpu.pipeline_mode<synchronous>, transform_indices = @transform_4, window_bounds = array<i64: 128, 512>}, {pipeline_mode = #tpu.pipeline_mode<synchronous>, transform_indices = @transform_5, window_bounds = array<i64: 1, 512>}, {pipeline_mode = #tpu.pipeline_mode<synchronous>, transform_indices = @transform_6, window_bounds = array<i64: 2, 128>}]} {
    %c0 = arith.constant 0 : index
    %c0_0 = arith.constant 0 : index
    %0 = vector.load %arg3[%c0, %c0_0] : memref<1x512xf32, #tpu.memory_space<vmem>>, vector<1x512xf32>
    %1 = vector.shape_cast %0 : vector<1x512xf32> to vector<1x512xf32>
    %2 = vector.broadcast %1 : vector<1x512xf32> to vector<2x512xf32>
    %c0_1 = arith.constant 0 : index
    %c0_2 = arith.constant 0 : index
    %3 = vector.load %arg6[%c0_1, %c0_2] : memref<1x512xf32, #tpu.memory_space<vmem>>, vector<1x512xf32>
    %4 = vector.shape_cast %3 : vector<1x512xf32> to vector<1x512xf32>
    %5 = vector.broadcast %4 : vector<1x512xf32> to vector<2x512xf32>
    %cst = arith.constant 0.000000e+00 : f32
    %6 = vector.broadcast %cst : f32 to vector<2x128xf32>
    %c0_i32 = arith.constant 0 : i32
    %7 = arith.truncf %6 : vector<2x128xf32> to vector<2x128xbf16>
    %c0_3 = arith.constant 0 : index
    %c0_4 = arith.constant 0 : index
    %8 = vector.load %arg4[%c0_3, %c0_4] : memref<128x512xbf16, #tpu.memory_space<vmem>>, vector<128x512xbf16>
    %cst_5 = arith.constant dense<0.000000e+00> : vector<2x512xf32>
    %9 = tpu.matmul %7, %8, %cst_5 {dimension_numbers = #tpu.dot_dimension_numbers<[1], [0], [0], [1], [0, 0, 1, 1], [], []>} : vector<2x128xbf16>, vector<128x512xbf16>, vector<2x512xf32> -> vector<2x512xf32>
    %10 = arith.truncf %6 : vector<2x128xf32> to vector<2x128xbf16>
    %c0_6 = arith.constant 0 : index
    %c0_7 = arith.constant 0 : index
    %11 = vector.load %arg2[%c0_6, %c0_7] : memref<128x512xbf16, #tpu.memory_space<vmem>>, vector<128x512xbf16>
    %cst_8 = arith.constant dense<0.000000e+00> : vector<2x512xf32>
    %12 = tpu.matmul %10, %11, %cst_8 {dimension_numbers = #tpu.dot_dimension_numbers<[1], [0], [0], [1], [0, 0, 1, 1], [], []>} : vector<2x128xbf16>, vector<128x512xbf16>, vector<2x512xf32> -> vector<2x512xf32>
    %13 = arith.index_cast %c0_i32 : i32 to index
    %c0_9 = arith.constant 0 : index
    %c0_10 = arith.constant 0 : index
    %14 = vector.load %arg1[%13, %c0_9, %c0_10] : memref<8x2x512xf32, #tpu.memory_space<vmem>>, vector<1x2x512xf32>
    %15 = vector.shape_cast %14 : vector<1x2x512xf32> to vector<2x512xf32>
    %16 = arith.addf %12, %15 : vector<2x512xf32>
    %17 = arith.addf %16, %2 : vector<2x512xf32>
    %18 = vector.extract_strided_slice %17 {offsets = [0, 0], sizes = [2, 384], strides = [1, 1]} : vector<2x512xf32> to vector<2x384xf32>
    %19 = arith.negf %18 : vector<2x384xf32>
    %20 = math.exp %19 : vector<2x384xf32>
    %cst_11 = arith.constant 1.000000e+00 : f32
    %21 = vector.broadcast %cst_11 : f32 to vector<2x384xf32>
    %22 = arith.addf %21, %20 : vector<2x384xf32>
    %23 = arith.divf %21, %22 : vector<2x384xf32>
    %24 = vector.extract_strided_slice %23 {offsets = [0, 0], sizes = [2, 128], strides = [1, 1]} : vector<2x384xf32> to vector<2x128xf32>
    %25 = vector.extract_strided_slice %23 {offsets = [0, 128], sizes = [2, 128], strides = [1, 1]} : vector<2x384xf32> to vector<2x128xf32>
    %26 = vector.extract_strided_slice %23 {offsets = [0, 256], sizes = [2, 128], strides = [1, 1]} : vector<2x384xf32> to vector<2x128xf32>
    %27 = vector.extract_strided_slice %17 {offsets = [0, 384], sizes = [2, 128], strides = [1, 1]} : vector<2x512xf32> to vector<2x128xf32>
    %28 = math.tanh %27 : vector<2x128xf32>
    %29 = arith.mulf %25, %6 : vector<2x128xf32>
    %30 = arith.mulf %24, %28 : vector<2x128xf32>
    %31 = arith.addf %29, %30 : vector<2x128xf32>
    %32 = math.tanh %31 : vector<2x128xf32>
    %33 = arith.mulf %26, %32 : vector<2x128xf32>
    %34 = arith.truncf %33 : vector<2x128xf32> to vector<2x128xbf16>
    %c0_12 = arith.constant 0 : index
    %c0_13 = arith.constant 0 : index
    %35 = vector.load %arg5[%c0_12, %c0_13] : memref<128x512xbf16, #tpu.memory_space<vmem>>, vector<128x512xbf16>
    %cst_14 = arith.constant dense<0.000000e+00> : vector<2x512xf32>
    %36 = tpu.matmul %34, %35, %cst_14 {dimension_numbers = #tpu.dot_dimension_numbers<[1], [0], [0], [1], [0, 0, 1, 1], [], []>} : vector<2x128xbf16>, vector<128x512xbf16>, vector<2x512xf32> -> vector<2x512xf32>
    %37 = arith.addf %9, %36 : vector<2x512xf32>
    %38 = arith.addf %37, %5 : vector<2x512xf32>
    %39 = vector.extract_strided_slice %38 {offsets = [0, 0], sizes = [2, 384], strides = [1, 1]} : vector<2x512xf32> to vector<2x384xf32>
    %40 = arith.negf %39 : vector<2x384xf32>
    %41 = math.exp %40 : vector<2x384xf32>
    %cst_15 = arith.constant 1.000000e+00 : f32
    %42 = vector.broadcast %cst_15 : f32 to vector<2x384xf32>
    %43 = arith.addf %42, %41 : vector<2x384xf32>
    %44 = arith.divf %42, %43 : vector<2x384xf32>
    %45 = vector.extract_strided_slice %44 {offsets = [0, 0], sizes = [2, 128], strides = [1, 1]} : vector<2x384xf32> to vector<2x128xf32>
    %46 = vector.extract_strided_slice %44 {offsets = [0, 128], sizes = [2, 128], strides = [1, 1]} : vector<2x384xf32> to vector<2x128xf32>
    %47 = vector.extract_strided_slice %44 {offsets = [0, 256], sizes = [2, 128], strides = [1, 1]} : vector<2x384xf32> to vector<2x128xf32>
    %48 = vector.extract_strided_slice %38 {offsets = [0, 384], sizes = [2, 128], strides = [1, 1]} : vector<2x512xf32> to vector<2x128xf32>
    %49 = math.tanh %48 : vector<2x128xf32>
    %50 = arith.mulf %46, %6 : vector<2x128xf32>
    %51 = arith.mulf %45, %49 : vector<2x128xf32>
    %52 = arith.addf %50, %51 : vector<2x128xf32>
    %53 = math.tanh %52 : vector<2x128xf32>
    %54 = arith.mulf %47, %53 : vector<2x128xf32>
    %c1_i32 = arith.constant 1 : i32
    %55 = arith.truncf %54 : vector<2x128xf32> to vector<2x128xbf16>
    %c0_16 = arith.constant 0 : index
    %c0_17 = arith.constant 0 : index
    %56 = vector.load %arg4[%c0_16, %c0_17] : memref<128x512xbf16, #tpu.memory_space<vmem>>, vector<128x512xbf16>
    %cst_18 = arith.constant dense<0.000000e+00> : vector<2x512xf32>
    %57 = tpu.matmul %55, %56, %cst_18 {dimension_numbers = #tpu.dot_dimension_numbers<[1], [0], [0], [1], [0, 0, 1, 1], [], []>} : vector<2x128xbf16>, vector<128x512xbf16>, vector<2x512xf32> -> vector<2x512xf32>
    %58 = arith.truncf %33 : vector<2x128xf32> to vector<2x128xbf16>
    %c0_19 = arith.constant 0 : index
    %c0_20 = arith.constant 0 : index
    %59 = vector.load %arg2[%c0_19, %c0_20] : memref<128x512xbf16, #tpu.memory_space<vmem>>, vector<128x512xbf16>
    %cst_21 = arith.constant dense<0.000000e+00> : vector<2x512xf32>
    %60 = tpu.matmul %58, %59, %cst_21 {dimension_numbers = #tpu.dot_dimension_numbers<[1], [0], [0], [1], [0, 0, 1, 1], [], []>} : vector<2x128xbf16>, vector<128x512xbf16>, vector<2x512xf32> -> vector<2x512xf32>
    %61 = arith.index_cast %c1_i32 : i32 to index
    %c0_22 = arith.constant 0 : index
    %c0_23 = arith.constant 0 : index
    %62 = vector.load %arg1[%61, %c0_22, %c0_23] : memref<8x2x512xf32, #tpu.memory_space<vmem>>, vector<1x2x512xf32>
    %63 = vector.shape_cast %62 : vector<1x2x512xf32> to vector<2x512xf32>
    %64 = arith.addf %60, %63 : vector<2x512xf32>
    %65 = arith.addf %64, %2 : vector<2x512xf32>
    %66 = vector.extract_strided_slice %65 {offsets = [0, 0], sizes = [2, 384], strides = [1, 1]} : vector<2x512xf32> to vector<2x384xf32>
    %67 = arith.negf %66 : vector<2x384xf32>
    %68 = math.exp %67 : vector<2x384xf32>
    %cst_24 = arith.constant 1.000000e+00 : f32
    %69 = vector.broadcast %cst_24 : f32 to vector<2x384xf32>
    %70 = arith.addf %69, %68 : vector<2x384xf32>
    %71 = arith.divf %69, %70 : vector<2x384xf32>
    %72 = vector.extract_strided_slice %71 {offsets = [0, 0], sizes = [2, 128], strides = [1, 1]} : vector<2x384xf32> to vector<2x128xf32>
    %73 = vector.extract_strided_slice %71 {offsets = [0, 128], sizes = [2, 128], strides = [1, 1]} : vector<2x384xf32> to vector<2x128xf32>
    %74 = vector.extract_strided_slice %71 {offsets = [0, 256], sizes = [2, 128], strides = [1, 1]} : vector<2x384xf32> to vector<2x128xf32>
    %75 = vector.extract_strided_slice %65 {offsets = [0, 384], sizes = [2, 128], strides = [1, 1]} : vector<2x512xf32> to vector<2x128xf32>
    %76 = math.tanh %75 : vector<2x128xf32>
    %77 = arith.mulf %73, %31 : vector<2x128xf32>
    %78 = arith.mulf %72, %76 : vector<2x128xf32>
    %79 = arith.addf %77, %78 : vector<2x128xf32>
    %80 = math.tanh %79 : vector<2x128xf32>
    %81 = arith.mulf %74, %80 : vector<2x128xf32>
    %82 = arith.truncf %81 : vector<2x128xf32> to vector<2x128xbf16>
    %c0_25 = arith.constant 0 : index
    %c0_26 = arith.constant 0 : index
    %83 = vector.load %arg5[%c0_25, %c0_26] : memref<128x512xbf16, #tpu.memory_space<vmem>>, vector<128x512xbf16>
    %cst_27 = arith.constant dense<0.000000e+00> : vector<2x512xf32>
    %84 = tpu.matmul %82, %83, %cst_27 {dimension_numbers = #tpu.dot_dimension_numbers<[1], [0], [0], [1], [0, 0, 1, 1], [], []>} : vector<2x128xbf16>, vector<128x512xbf16>, vector<2x512xf32> -> vector<2x512xf32>
    %85 = arith.addf %57, %84 : vector<2x512xf32>
    %86 = arith.addf %85, %5 : vector<2x512xf32>
    %87 = vector.extract_strided_slice %86 {offsets = [0, 0], sizes = [2, 384], strides = [1, 1]} : vector<2x512xf32> to vector<2x384xf32>
    %88 = arith.negf %87 : vector<2x384xf32>
    %89 = math.exp %88 : vector<2x384xf32>
    %cst_28 = arith.constant 1.000000e+00 : f32
    %90 = vector.broadcast %cst_28 : f32 to vector<2x384xf32>
    %91 = arith.addf %90, %89 : vector<2x384xf32>
    %92 = arith.divf %90, %91 : vector<2x384xf32>
    %93 = vector.extract_strided_slice %92 {offsets = [0, 0], sizes = [2, 128], strides = [1, 1]} : vector<2x384xf32> to vector<2x128xf32>
    %94 = vector.extract_strided_slice %92 {offsets = [0, 128], sizes = [2, 128], strides = [1, 1]} : vector<2x384xf32> to vector<2x128xf32>
    %95 = vector.extract_strided_slice %92 {offsets = [0, 256], sizes = [2, 128], strides = [1, 1]} : vector<2x384xf32> to vector<2x128xf32>
    %96 = vector.extract_strided_slice %86 {offsets = [0, 384], sizes = [2, 128], strides = [1, 1]} : vector<2x512xf32> to vector<2x128xf32>
    %97 = math.tanh %96 : vector<2x128xf32>
    %98 = arith.mulf %94, %52 : vector<2x128xf32>
    %99 = arith.mulf %93, %97 : vector<2x128xf32>
    %100 = arith.addf %98, %99 : vector<2x128xf32>
    %101 = math.tanh %100 : vector<2x128xf32>
    %102 = arith.mulf %95, %101 : vector<2x128xf32>
    %c2_i32 = arith.constant 2 : i32
    %103 = arith.truncf %102 : vector<2x128xf32> to vector<2x128xbf16>
    %c0_29 = arith.constant 0 : index
    %c0_30 = arith.constant 0 : index
    %104 = vector.load %arg4[%c0_29, %c0_30] : memref<128x512xbf16, #tpu.memory_space<vmem>>, vector<128x512xbf16>
    %cst_31 = arith.constant dense<0.000000e+00> : vector<2x512xf32>
    %105 = tpu.matmul %103, %104, %cst_31 {dimension_numbers = #tpu.dot_dimension_numbers<[1], [0], [0], [1], [0, 0, 1, 1], [], []>} : vector<2x128xbf16>, vector<128x512xbf16>, vector<2x512xf32> -> vector<2x512xf32>
    %106 = arith.truncf %81 : vector<2x128xf32> to vector<2x128xbf16>
    %c0_32 = arith.constant 0 : index
    %c0_33 = arith.constant 0 : index
    %107 = vector.load %arg2[%c0_32, %c0_33] : memref<128x512xbf16, #tpu.memory_space<vmem>>, vector<128x512xbf16>
    %cst_34 = arith.constant dense<0.000000e+00> : vector<2x512xf32>
    %108 = tpu.matmul %106, %107, %cst_34 {dimension_numbers = #tpu.dot_dimension_numbers<[1], [0], [0], [1], [0, 0, 1, 1], [], []>} : vector<2x128xbf16>, vector<128x512xbf16>, vector<2x512xf32> -> vector<2x512xf32>
    %109 = arith.index_cast %c2_i32 : i32 to index
    %c0_35 = arith.constant 0 : index
    %c0_36 = arith.constant 0 : index
    %110 = vector.load %arg1[%109, %c0_35, %c0_36] : memref<8x2x512xf32, #tpu.memory_space<vmem>>, vector<1x2x512xf32>
    %111 = vector.shape_cast %110 : vector<1x2x512xf32> to vector<2x512xf32>
    %112 = arith.addf %108, %111 : vector<2x512xf32>
    %113 = arith.addf %112, %2 : vector<2x512xf32>
    %114 = vector.extract_strided_slice %113 {offsets = [0, 0], sizes = [2, 384], strides = [1, 1]} : vector<2x512xf32> to vector<2x384xf32>
    %115 = arith.negf %114 : vector<2x384xf32>
    %116 = math.exp %115 : vector<2x384xf32>
    %cst_37 = arith.constant 1.000000e+00 : f32
    %117 = vector.broadcast %cst_37 : f32 to vector<2x384xf32>
    %118 = arith.addf %117, %116 : vector<2x384xf32>
    %119 = arith.divf %117, %118 : vector<2x384xf32>
    %120 = vector.extract_strided_slice %119 {offsets = [0, 0], sizes = [2, 128], strides = [1, 1]} : vector<2x384xf32> to vector<2x128xf32>
    %121 = vector.extract_strided_slice %119 {offsets = [0, 128], sizes = [2, 128], strides = [1, 1]} : vector<2x384xf32> to vector<2x128xf32>
    %122 = vector.extract_strided_slice %119 {offsets = [0, 256], sizes = [2, 128], strides = [1, 1]} : vector<2x384xf32> to vector<2x128xf32>
    %123 = vector.extract_strided_slice %113 {offsets = [0, 384], sizes = [2, 128], strides = [1, 1]} : vector<2x512xf32> to vector<2x128xf32>
    %124 = math.tanh %123 : vector<2x128xf32>
    %125 = arith.mulf %121, %79 : vector<2x128xf32>
    %126 = arith.mulf %120, %124 : vector<2x128xf32>
    %127 = arith.addf %125, %126 : vector<2x128xf32>
    %128 = math.tanh %127 : vector<2x128xf32>
    %129 = arith.mulf %122, %128 : vector<2x128xf32>
    %130 = arith.truncf %129 : vector<2x128xf32> to vector<2x128xbf16>
    %c0_38 = arith.constant 0 : index
    %c0_39 = arith.constant 0 : index
    %131 = vector.load %arg5[%c0_38, %c0_39] : memref<128x512xbf16, #tpu.memory_space<vmem>>, vector<128x512xbf16>
    %cst_40 = arith.constant dense<0.000000e+00> : vector<2x512xf32>
    %132 = tpu.matmul %130, %131, %cst_40 {dimension_numbers = #tpu.dot_dimension_numbers<[1], [0], [0], [1], [0, 0, 1, 1], [], []>} : vector<2x128xbf16>, vector<128x512xbf16>, vector<2x512xf32> -> vector<2x512xf32>
    %133 = arith.addf %105, %132 : vector<2x512xf32>
    %134 = arith.addf %133, %5 : vector<2x512xf32>
    %135 = vector.extract_strided_slice %134 {offsets = [0, 0], sizes = [2, 384], strides = [1, 1]} : vector<2x512xf32> to vector<2x384xf32>
    %136 = arith.negf %135 : vector<2x384xf32>
    %137 = math.exp %136 : vector<2x384xf32>
    %cst_41 = arith.constant 1.000000e+00 : f32
    %138 = vector.broadcast %cst_41 : f32 to vector<2x384xf32>
    %139 = arith.addf %138, %137 : vector<2x384xf32>
    %140 = arith.divf %138, %139 : vector<2x384xf32>
    %141 = vector.extract_strided_slice %140 {offsets = [0, 0], sizes = [2, 128], strides = [1, 1]} : vector<2x384xf32> to vector<2x128xf32>
    %142 = vector.extract_strided_slice %140 {offsets = [0, 128], sizes = [2, 128], strides = [1, 1]} : vector<2x384xf32> to vector<2x128xf32>
    %143 = vector.extract_strided_slice %140 {offsets = [0, 256], sizes = [2, 128], strides = [1, 1]} : vector<2x384xf32> to vector<2x128xf32>
    %144 = vector.extract_strided_slice %134 {offsets = [0, 384], sizes = [2, 128], strides = [1, 1]} : vector<2x512xf32> to vector<2x128xf32>
    %145 = math.tanh %144 : vector<2x128xf32>
    %146 = arith.mulf %142, %100 : vector<2x128xf32>
    %147 = arith.mulf %141, %145 : vector<2x128xf32>
    %148 = arith.addf %146, %147 : vector<2x128xf32>
    %149 = math.tanh %148 : vector<2x128xf32>
    %150 = arith.mulf %143, %149 : vector<2x128xf32>
    %c3_i32 = arith.constant 3 : i32
    %151 = arith.truncf %150 : vector<2x128xf32> to vector<2x128xbf16>
    %c0_42 = arith.constant 0 : index
    %c0_43 = arith.constant 0 : index
    %152 = vector.load %arg4[%c0_42, %c0_43] : memref<128x512xbf16, #tpu.memory_space<vmem>>, vector<128x512xbf16>
    %cst_44 = arith.constant dense<0.000000e+00> : vector<2x512xf32>
    %153 = tpu.matmul %151, %152, %cst_44 {dimension_numbers = #tpu.dot_dimension_numbers<[1], [0], [0], [1], [0, 0, 1, 1], [], []>} : vector<2x128xbf16>, vector<128x512xbf16>, vector<2x512xf32> -> vector<2x512xf32>
    %154 = arith.truncf %129 : vector<2x128xf32> to vector<2x128xbf16>
    %c0_45 = arith.constant 0 : index
    %c0_46 = arith.constant 0 : index
    %155 = vector.load %arg2[%c0_45, %c0_46] : memref<128x512xbf16, #tpu.memory_space<vmem>>, vector<128x512xbf16>
    %cst_47 = arith.constant dense<0.000000e+00> : vector<2x512xf32>
    %156 = tpu.matmul %154, %155, %cst_47 {dimension_numbers = #tpu.dot_dimension_numbers<[1], [0], [0], [1], [0, 0, 1, 1], [], []>} : vector<2x128xbf16>, vector<128x512xbf16>, vector<2x512xf32> -> vector<2x512xf32>
    %157 = arith.index_cast %c3_i32 : i32 to index
    %c0_48 = arith.constant 0 : index
    %c0_49 = arith.constant 0 : index
    %158 = vector.load %arg1[%157, %c0_48, %c0_49] : memref<8x2x512xf32, #tpu.memory_space<vmem>>, vector<1x2x512xf32>
    %159 = vector.shape_cast %158 : vector<1x2x512xf32> to vector<2x512xf32>
    %160 = arith.addf %156, %159 : vector<2x512xf32>
    %161 = arith.addf %160, %2 : vector<2x512xf32>
    %162 = vector.extract_strided_slice %161 {offsets = [0, 0], sizes = [2, 384], strides = [1, 1]} : vector<2x512xf32> to vector<2x384xf32>
    %163 = arith.negf %162 : vector<2x384xf32>
    %164 = math.exp %163 : vector<2x384xf32>
    %cst_50 = arith.constant 1.000000e+00 : f32
    %165 = vector.broadcast %cst_50 : f32 to vector<2x384xf32>
    %166 = arith.addf %165, %164 : vector<2x384xf32>
    %167 = arith.divf %165, %166 : vector<2x384xf32>
    %168 = vector.extract_strided_slice %167 {offsets = [0, 0], sizes = [2, 128], strides = [1, 1]} : vector<2x384xf32> to vector<2x128xf32>
    %169 = vector.extract_strided_slice %167 {offsets = [0, 128], sizes = [2, 128], strides = [1, 1]} : vector<2x384xf32> to vector<2x128xf32>
    %170 = vector.extract_strided_slice %167 {offsets = [0, 256], sizes = [2, 128], strides = [1, 1]} : vector<2x384xf32> to vector<2x128xf32>
    %171 = vector.extract_strided_slice %161 {offsets = [0, 384], sizes = [2, 128], strides = [1, 1]} : vector<2x512xf32> to vector<2x128xf32>
    %172 = math.tanh %171 : vector<2x128xf32>
    %173 = arith.mulf %169, %127 : vector<2x128xf32>
    %174 = arith.mulf %168, %172 : vector<2x128xf32>
    %175 = arith.addf %173, %174 : vector<2x128xf32>
    %176 = math.tanh %175 : vector<2x128xf32>
    %177 = arith.mulf %170, %176 : vector<2x128xf32>
    %178 = arith.truncf %177 : vector<2x128xf32> to vector<2x128xbf16>
    %c0_51 = arith.constant 0 : index
    %c0_52 = arith.constant 0 : index
    %179 = vector.load %arg5[%c0_51, %c0_52] : memref<128x512xbf16, #tpu.memory_space<vmem>>, vector<128x512xbf16>
    %cst_53 = arith.constant dense<0.000000e+00> : vector<2x512xf32>
    %180 = tpu.matmul %178, %179, %cst_53 {dimension_numbers = #tpu.dot_dimension_numbers<[1], [0], [0], [1], [0, 0, 1, 1], [], []>} : vector<2x128xbf16>, vector<128x512xbf16>, vector<2x512xf32> -> vector<2x512xf32>
    %181 = arith.addf %153, %180 : vector<2x512xf32>
    %182 = arith.addf %181, %5 : vector<2x512xf32>
    %183 = vector.extract_strided_slice %182 {offsets = [0, 0], sizes = [2, 384], strides = [1, 1]} : vector<2x512xf32> to vector<2x384xf32>
    %184 = arith.negf %183 : vector<2x384xf32>
    %185 = math.exp %184 : vector<2x384xf32>
    %cst_54 = arith.constant 1.000000e+00 : f32
    %186 = vector.broadcast %cst_54 : f32 to vector<2x384xf32>
    %187 = arith.addf %186, %185 : vector<2x384xf32>
    %188 = arith.divf %186, %187 : vector<2x384xf32>
    %189 = vector.extract_strided_slice %188 {offsets = [0, 0], sizes = [2, 128], strides = [1, 1]} : vector<2x384xf32> to vector<2x128xf32>
    %190 = vector.extract_strided_slice %188 {offsets = [0, 128], sizes = [2, 128], strides = [1, 1]} : vector<2x384xf32> to vector<2x128xf32>
    %191 = vector.extract_strided_slice %188 {offsets = [0, 256], sizes = [2, 128], strides = [1, 1]} : vector<2x384xf32> to vector<2x128xf32>
    %192 = vector.extract_strided_slice %182 {offsets = [0, 384], sizes = [2, 128], strides = [1, 1]} : vector<2x512xf32> to vector<2x128xf32>
    %193 = math.tanh %192 : vector<2x128xf32>
    %194 = arith.mulf %190, %148 : vector<2x128xf32>
    %195 = arith.mulf %189, %193 : vector<2x128xf32>
    %196 = arith.addf %194, %195 : vector<2x128xf32>
    %197 = math.tanh %196 : vector<2x128xf32>
    %198 = arith.mulf %191, %197 : vector<2x128xf32>
    %c4_i32 = arith.constant 4 : i32
    %199 = arith.truncf %198 : vector<2x128xf32> to vector<2x128xbf16>
    %c0_55 = arith.constant 0 : index
    %c0_56 = arith.constant 0 : index
    %200 = vector.load %arg4[%c0_55, %c0_56] : memref<128x512xbf16, #tpu.memory_space<vmem>>, vector<128x512xbf16>
    %cst_57 = arith.constant dense<0.000000e+00> : vector<2x512xf32>
    %201 = tpu.matmul %199, %200, %cst_57 {dimension_numbers = #tpu.dot_dimension_numbers<[1], [0], [0], [1], [0, 0, 1, 1], [], []>} : vector<2x128xbf16>, vector<128x512xbf16>, vector<2x512xf32> -> vector<2x512xf32>
    %202 = arith.truncf %177 : vector<2x128xf32> to vector<2x128xbf16>
    %c0_58 = arith.constant 0 : index
    %c0_59 = arith.constant 0 : index
    %203 = vector.load %arg2[%c0_58, %c0_59] : memref<128x512xbf16, #tpu.memory_space<vmem>>, vector<128x512xbf16>
    %cst_60 = arith.constant dense<0.000000e+00> : vector<2x512xf32>
    %204 = tpu.matmul %202, %203, %cst_60 {dimension_numbers = #tpu.dot_dimension_numbers<[1], [0], [0], [1], [0, 0, 1, 1], [], []>} : vector<2x128xbf16>, vector<128x512xbf16>, vector<2x512xf32> -> vector<2x512xf32>
    %205 = arith.index_cast %c4_i32 : i32 to index
    %c0_61 = arith.constant 0 : index
    %c0_62 = arith.constant 0 : index
    %206 = vector.load %arg1[%205, %c0_61, %c0_62] : memref<8x2x512xf32, #tpu.memory_space<vmem>>, vector<1x2x512xf32>
    %207 = vector.shape_cast %206 : vector<1x2x512xf32> to vector<2x512xf32>
    %208 = arith.addf %204, %207 : vector<2x512xf32>
    %209 = arith.addf %208, %2 : vector<2x512xf32>
    %210 = vector.extract_strided_slice %209 {offsets = [0, 0], sizes = [2, 384], strides = [1, 1]} : vector<2x512xf32> to vector<2x384xf32>
    %211 = arith.negf %210 : vector<2x384xf32>
    %212 = math.exp %211 : vector<2x384xf32>
    %cst_63 = arith.constant 1.000000e+00 : f32
    %213 = vector.broadcast %cst_63 : f32 to vector<2x384xf32>
    %214 = arith.addf %213, %212 : vector<2x384xf32>
    %215 = arith.divf %213, %214 : vector<2x384xf32>
    %216 = vector.extract_strided_slice %215 {offsets = [0, 0], sizes = [2, 128], strides = [1, 1]} : vector<2x384xf32> to vector<2x128xf32>
    %217 = vector.extract_strided_slice %215 {offsets = [0, 128], sizes = [2, 128], strides = [1, 1]} : vector<2x384xf32> to vector<2x128xf32>
    %218 = vector.extract_strided_slice %215 {offsets = [0, 256], sizes = [2, 128], strides = [1, 1]} : vector<2x384xf32> to vector<2x128xf32>
    %219 = vector.extract_strided_slice %209 {offsets = [0, 384], sizes = [2, 128], strides = [1, 1]} : vector<2x512xf32> to vector<2x128xf32>
    %220 = math.tanh %219 : vector<2x128xf32>
    %221 = arith.mulf %217, %175 : vector<2x128xf32>
    %222 = arith.mulf %216, %220 : vector<2x128xf32>
    %223 = arith.addf %221, %222 : vector<2x128xf32>
    %224 = math.tanh %223 : vector<2x128xf32>
    %225 = arith.mulf %218, %224 : vector<2x128xf32>
    %226 = arith.truncf %225 : vector<2x128xf32> to vector<2x128xbf16>
    %c0_64 = arith.constant 0 : index
    %c0_65 = arith.constant 0 : index
    %227 = vector.load %arg5[%c0_64, %c0_65] : memref<128x512xbf16, #tpu.memory_space<vmem>>, vector<128x512xbf16>
    %cst_66 = arith.constant dense<0.000000e+00> : vector<2x512xf32>
    %228 = tpu.matmul %226, %227, %cst_66 {dimension_numbers = #tpu.dot_dimension_numbers<[1], [0], [0], [1], [0, 0, 1, 1], [], []>} : vector<2x128xbf16>, vector<128x512xbf16>, vector<2x512xf32> -> vector<2x512xf32>
    %229 = arith.addf %201, %228 : vector<2x512xf32>
    %230 = arith.addf %229, %5 : vector<2x512xf32>
    %231 = vector.extract_strided_slice %230 {offsets = [0, 0], sizes = [2, 384], strides = [1, 1]} : vector<2x512xf32> to vector<2x384xf32>
    %232 = arith.negf %231 : vector<2x384xf32>
    %233 = math.exp %232 : vector<2x384xf32>
    %cst_67 = arith.constant 1.000000e+00 : f32
    %234 = vector.broadcast %cst_67 : f32 to vector<2x384xf32>
    %235 = arith.addf %234, %233 : vector<2x384xf32>
    %236 = arith.divf %234, %235 : vector<2x384xf32>
    %237 = vector.extract_strided_slice %236 {offsets = [0, 0], sizes = [2, 128], strides = [1, 1]} : vector<2x384xf32> to vector<2x128xf32>
    %238 = vector.extract_strided_slice %236 {offsets = [0, 128], sizes = [2, 128], strides = [1, 1]} : vector<2x384xf32> to vector<2x128xf32>
    %239 = vector.extract_strided_slice %236 {offsets = [0, 256], sizes = [2, 128], strides = [1, 1]} : vector<2x384xf32> to vector<2x128xf32>
    %240 = vector.extract_strided_slice %230 {offsets = [0, 384], sizes = [2, 128], strides = [1, 1]} : vector<2x512xf32> to vector<2x128xf32>
    %241 = math.tanh %240 : vector<2x128xf32>
    %242 = arith.mulf %238, %196 : vector<2x128xf32>
    %243 = arith.mulf %237, %241 : vector<2x128xf32>
    %244 = arith.addf %242, %243 : vector<2x128xf32>
    %245 = math.tanh %244 : vector<2x128xf32>
    %246 = arith.mulf %239, %245 : vector<2x128xf32>
    %c5_i32 = arith.constant 5 : i32
    %247 = arith.truncf %246 : vector<2x128xf32> to vector<2x128xbf16>
    %c0_68 = arith.constant 0 : index
    %c0_69 = arith.constant 0 : index
    %248 = vector.load %arg4[%c0_68, %c0_69] : memref<128x512xbf16, #tpu.memory_space<vmem>>, vector<128x512xbf16>
    %cst_70 = arith.constant dense<0.000000e+00> : vector<2x512xf32>
    %249 = tpu.matmul %247, %248, %cst_70 {dimension_numbers = #tpu.dot_dimension_numbers<[1], [0], [0], [1], [0, 0, 1, 1], [], []>} : vector<2x128xbf16>, vector<128x512xbf16>, vector<2x512xf32> -> vector<2x512xf32>
    %250 = arith.truncf %225 : vector<2x128xf32> to vector<2x128xbf16>
    %c0_71 = arith.constant 0 : index
    %c0_72 = arith.constant 0 : index
    %251 = vector.load %arg2[%c0_71, %c0_72] : memref<128x512xbf16, #tpu.memory_space<vmem>>, vector<128x512xbf16>
    %cst_73 = arith.constant dense<0.000000e+00> : vector<2x512xf32>
    %252 = tpu.matmul %250, %251, %cst_73 {dimension_numbers = #tpu.dot_dimension_numbers<[1], [0], [0], [1], [0, 0, 1, 1], [], []>} : vector<2x128xbf16>, vector<128x512xbf16>, vector<2x512xf32> -> vector<2x512xf32>
    %253 = arith.index_cast %c5_i32 : i32 to index
    %c0_74 = arith.constant 0 : index
    %c0_75 = arith.constant 0 : index
    %254 = vector.load %arg1[%253, %c0_74, %c0_75] : memref<8x2x512xf32, #tpu.memory_space<vmem>>, vector<1x2x512xf32>
    %255 = vector.shape_cast %254 : vector<1x2x512xf32> to vector<2x512xf32>
    %256 = arith.addf %252, %255 : vector<2x512xf32>
    %257 = arith.addf %256, %2 : vector<2x512xf32>
    %258 = vector.extract_strided_slice %257 {offsets = [0, 0], sizes = [2, 384], strides = [1, 1]} : vector<2x512xf32> to vector<2x384xf32>
    %259 = arith.negf %258 : vector<2x384xf32>
    %260 = math.exp %259 : vector<2x384xf32>
    %cst_76 = arith.constant 1.000000e+00 : f32
    %261 = vector.broadcast %cst_76 : f32 to vector<2x384xf32>
    %262 = arith.addf %261, %260 : vector<2x384xf32>
    %263 = arith.divf %261, %262 : vector<2x384xf32>
    %264 = vector.extract_strided_slice %263 {offsets = [0, 0], sizes = [2, 128], strides = [1, 1]} : vector<2x384xf32> to vector<2x128xf32>
    %265 = vector.extract_strided_slice %263 {offsets = [0, 128], sizes = [2, 128], strides = [1, 1]} : vector<2x384xf32> to vector<2x128xf32>
    %266 = vector.extract_strided_slice %263 {offsets = [0, 256], sizes = [2, 128], strides = [1, 1]} : vector<2x384xf32> to vector<2x128xf32>
    %267 = vector.extract_strided_slice %257 {offsets = [0, 384], sizes = [2, 128], strides = [1, 1]} : vector<2x512xf32> to vector<2x128xf32>
    %268 = math.tanh %267 : vector<2x128xf32>
    %269 = arith.mulf %265, %223 : vector<2x128xf32>
    %270 = arith.mulf %264, %268 : vector<2x128xf32>
    %271 = arith.addf %269, %270 : vector<2x128xf32>
    %272 = math.tanh %271 : vector<2x128xf32>
    %273 = arith.mulf %266, %272 : vector<2x128xf32>
    %274 = arith.truncf %273 : vector<2x128xf32> to vector<2x128xbf16>
    %c0_77 = arith.constant 0 : index
    %c0_78 = arith.constant 0 : index
    %275 = vector.load %arg5[%c0_77, %c0_78] : memref<128x512xbf16, #tpu.memory_space<vmem>>, vector<128x512xbf16>
    %cst_79 = arith.constant dense<0.000000e+00> : vector<2x512xf32>
    %276 = tpu.matmul %274, %275, %cst_79 {dimension_numbers = #tpu.dot_dimension_numbers<[1], [0], [0], [1], [0, 0, 1, 1], [], []>} : vector<2x128xbf16>, vector<128x512xbf16>, vector<2x512xf32> -> vector<2x512xf32>
    %277 = arith.addf %249, %276 : vector<2x512xf32>
    %278 = arith.addf %277, %5 : vector<2x512xf32>
    %279 = vector.extract_strided_slice %278 {offsets = [0, 0], sizes = [2, 384], strides = [1, 1]} : vector<2x512xf32> to vector<2x384xf32>
    %280 = arith.negf %279 : vector<2x384xf32>
    %281 = math.exp %280 : vector<2x384xf32>
    %cst_80 = arith.constant 1.000000e+00 : f32
    %282 = vector.broadcast %cst_80 : f32 to vector<2x384xf32>
    %283 = arith.addf %282, %281 : vector<2x384xf32>
    %284 = arith.divf %282, %283 : vector<2x384xf32>
    %285 = vector.extract_strided_slice %284 {offsets = [0, 0], sizes = [2, 128], strides = [1, 1]} : vector<2x384xf32> to vector<2x128xf32>
    %286 = vector.extract_strided_slice %284 {offsets = [0, 128], sizes = [2, 128], strides = [1, 1]} : vector<2x384xf32> to vector<2x128xf32>
    %287 = vector.extract_strided_slice %284 {offsets = [0, 256], sizes = [2, 128], strides = [1, 1]} : vector<2x384xf32> to vector<2x128xf32>
    %288 = vector.extract_strided_slice %278 {offsets = [0, 384], sizes = [2, 128], strides = [1, 1]} : vector<2x512xf32> to vector<2x128xf32>
    %289 = math.tanh %288 : vector<2x128xf32>
    %290 = arith.mulf %286, %244 : vector<2x128xf32>
    %291 = arith.mulf %285, %289 : vector<2x128xf32>
    %292 = arith.addf %290, %291 : vector<2x128xf32>
    %293 = math.tanh %292 : vector<2x128xf32>
    %294 = arith.mulf %287, %293 : vector<2x128xf32>
    %c6_i32 = arith.constant 6 : i32
    %295 = arith.truncf %294 : vector<2x128xf32> to vector<2x128xbf16>
    %c0_81 = arith.constant 0 : index
    %c0_82 = arith.constant 0 : index
    %296 = vector.load %arg4[%c0_81, %c0_82] : memref<128x512xbf16, #tpu.memory_space<vmem>>, vector<128x512xbf16>
    %cst_83 = arith.constant dense<0.000000e+00> : vector<2x512xf32>
    %297 = tpu.matmul %295, %296, %cst_83 {dimension_numbers = #tpu.dot_dimension_numbers<[1], [0], [0], [1], [0, 0, 1, 1], [], []>} : vector<2x128xbf16>, vector<128x512xbf16>, vector<2x512xf32> -> vector<2x512xf32>
    %298 = arith.truncf %273 : vector<2x128xf32> to vector<2x128xbf16>
    %c0_84 = arith.constant 0 : index
    %c0_85 = arith.constant 0 : index
    %299 = vector.load %arg2[%c0_84, %c0_85] : memref<128x512xbf16, #tpu.memory_space<vmem>>, vector<128x512xbf16>
    %cst_86 = arith.constant dense<0.000000e+00> : vector<2x512xf32>
    %300 = tpu.matmul %298, %299, %cst_86 {dimension_numbers = #tpu.dot_dimension_numbers<[1], [0], [0], [1], [0, 0, 1, 1], [], []>} : vector<2x128xbf16>, vector<128x512xbf16>, vector<2x512xf32> -> vector<2x512xf32>
    %301 = arith.index_cast %c6_i32 : i32 to index
    %c0_87 = arith.constant 0 : index
    %c0_88 = arith.constant 0 : index
    %302 = vector.load %arg1[%301, %c0_87, %c0_88] : memref<8x2x512xf32, #tpu.memory_space<vmem>>, vector<1x2x512xf32>
    %303 = vector.shape_cast %302 : vector<1x2x512xf32> to vector<2x512xf32>
    %304 = arith.addf %300, %303 : vector<2x512xf32>
    %305 = arith.addf %304, %2 : vector<2x512xf32>
    %306 = vector.extract_strided_slice %305 {offsets = [0, 0], sizes = [2, 384], strides = [1, 1]} : vector<2x512xf32> to vector<2x384xf32>
    %307 = arith.negf %306 : vector<2x384xf32>
    %308 = math.exp %307 : vector<2x384xf32>
    %cst_89 = arith.constant 1.000000e+00 : f32
    %309 = vector.broadcast %cst_89 : f32 to vector<2x384xf32>
    %310 = arith.addf %309, %308 : vector<2x384xf32>
    %311 = arith.divf %309, %310 : vector<2x384xf32>
    %312 = vector.extract_strided_slice %311 {offsets = [0, 0], sizes = [2, 128], strides = [1, 1]} : vector<2x384xf32> to vector<2x128xf32>
    %313 = vector.extract_strided_slice %311 {offsets = [0, 128], sizes = [2, 128], strides = [1, 1]} : vector<2x384xf32> to vector<2x128xf32>
    %314 = vector.extract_strided_slice %311 {offsets = [0, 256], sizes = [2, 128], strides = [1, 1]} : vector<2x384xf32> to vector<2x128xf32>
    %315 = vector.extract_strided_slice %305 {offsets = [0, 384], sizes = [2, 128], strides = [1, 1]} : vector<2x512xf32> to vector<2x128xf32>
    %316 = math.tanh %315 : vector<2x128xf32>
    %317 = arith.mulf %313, %271 : vector<2x128xf32>
    %318 = arith.mulf %312, %316 : vector<2x128xf32>
    %319 = arith.addf %317, %318 : vector<2x128xf32>
    %320 = math.tanh %319 : vector<2x128xf32>
    %321 = arith.mulf %314, %320 : vector<2x128xf32>
    %322 = arith.truncf %321 : vector<2x128xf32> to vector<2x128xbf16>
    %c0_90 = arith.constant 0 : index
    %c0_91 = arith.constant 0 : index
    %323 = vector.load %arg5[%c0_90, %c0_91] : memref<128x512xbf16, #tpu.memory_space<vmem>>, vector<128x512xbf16>
    %cst_92 = arith.constant dense<0.000000e+00> : vector<2x512xf32>
    %324 = tpu.matmul %322, %323, %cst_92 {dimension_numbers = #tpu.dot_dimension_numbers<[1], [0], [0], [1], [0, 0, 1, 1], [], []>} : vector<2x128xbf16>, vector<128x512xbf16>, vector<2x512xf32> -> vector<2x512xf32>
    %325 = arith.addf %297, %324 : vector<2x512xf32>
    %326 = arith.addf %325, %5 : vector<2x512xf32>
    %327 = vector.extract_strided_slice %326 {offsets = [0, 0], sizes = [2, 384], strides = [1, 1]} : vector<2x512xf32> to vector<2x384xf32>
    %328 = arith.negf %327 : vector<2x384xf32>
    %329 = math.exp %328 : vector<2x384xf32>
    %cst_93 = arith.constant 1.000000e+00 : f32
    %330 = vector.broadcast %cst_93 : f32 to vector<2x384xf32>
    %331 = arith.addf %330, %329 : vector<2x384xf32>
    %332 = arith.divf %330, %331 : vector<2x384xf32>
    %333 = vector.extract_strided_slice %332 {offsets = [0, 0], sizes = [2, 128], strides = [1, 1]} : vector<2x384xf32> to vector<2x128xf32>
    %334 = vector.extract_strided_slice %332 {offsets = [0, 128], sizes = [2, 128], strides = [1, 1]} : vector<2x384xf32> to vector<2x128xf32>
    %335 = vector.extract_strided_slice %332 {offsets = [0, 256], sizes = [2, 128], strides = [1, 1]} : vector<2x384xf32> to vector<2x128xf32>
    %336 = vector.extract_strided_slice %326 {offsets = [0, 384], sizes = [2, 128], strides = [1, 1]} : vector<2x512xf32> to vector<2x128xf32>
    %337 = math.tanh %336 : vector<2x128xf32>
    %338 = arith.mulf %334, %292 : vector<2x128xf32>
    %339 = arith.mulf %333, %337 : vector<2x128xf32>
    %340 = arith.addf %338, %339 : vector<2x128xf32>
    %341 = math.tanh %340 : vector<2x128xf32>
    %342 = arith.mulf %335, %341 : vector<2x128xf32>
    %c7_i32 = arith.constant 7 : i32
    %343 = arith.truncf %342 : vector<2x128xf32> to vector<2x128xbf16>
    %c0_94 = arith.constant 0 : index
    %c0_95 = arith.constant 0 : index
    %344 = vector.load %arg4[%c0_94, %c0_95] : memref<128x512xbf16, #tpu.memory_space<vmem>>, vector<128x512xbf16>
    %cst_96 = arith.constant dense<0.000000e+00> : vector<2x512xf32>
    %345 = tpu.matmul %343, %344, %cst_96 {dimension_numbers = #tpu.dot_dimension_numbers<[1], [0], [0], [1], [0, 0, 1, 1], [], []>} : vector<2x128xbf16>, vector<128x512xbf16>, vector<2x512xf32> -> vector<2x512xf32>
    %346 = arith.truncf %321 : vector<2x128xf32> to vector<2x128xbf16>
    %c0_97 = arith.constant 0 : index
    %c0_98 = arith.constant 0 : index
    %347 = vector.load %arg2[%c0_97, %c0_98] : memref<128x512xbf16, #tpu.memory_space<vmem>>, vector<128x512xbf16>
    %cst_99 = arith.constant dense<0.000000e+00> : vector<2x512xf32>
    %348 = tpu.matmul %346, %347, %cst_99 {dimension_numbers = #tpu.dot_dimension_numbers<[1], [0], [0], [1], [0, 0, 1, 1], [], []>} : vector<2x128xbf16>, vector<128x512xbf16>, vector<2x512xf32> -> vector<2x512xf32>
    %349 = arith.index_cast %c7_i32 : i32 to index
    %c0_100 = arith.constant 0 : index
    %c0_101 = arith.constant 0 : index
    %350 = vector.load %arg1[%349, %c0_100, %c0_101] : memref<8x2x512xf32, #tpu.memory_space<vmem>>, vector<1x2x512xf32>
    %351 = vector.shape_cast %350 : vector<1x2x512xf32> to vector<2x512xf32>
    %352 = arith.addf %348, %351 : vector<2x512xf32>
    %353 = arith.addf %352, %2 : vector<2x512xf32>
    %354 = vector.extract_strided_slice %353 {offsets = [0, 0], sizes = [2, 384], strides = [1, 1]} : vector<2x512xf32> to vector<2x384xf32>
    %355 = arith.negf %354 : vector<2x384xf32>
    %356 = math.exp %355 : vector<2x384xf32>
    %cst_102 = arith.constant 1.000000e+00 : f32
    %357 = vector.broadcast %cst_102 : f32 to vector<2x384xf32>
    %358 = arith.addf %357, %356 : vector<2x384xf32>
    %359 = arith.divf %357, %358 : vector<2x384xf32>
    %360 = vector.extract_strided_slice %359 {offsets = [0, 0], sizes = [2, 128], strides = [1, 1]} : vector<2x384xf32> to vector<2x128xf32>
    %361 = vector.extract_strided_slice %359 {offsets = [0, 128], sizes = [2, 128], strides = [1, 1]} : vector<2x384xf32> to vector<2x128xf32>
    %362 = vector.extract_strided_slice %359 {offsets = [0, 256], sizes = [2, 128], strides = [1, 1]} : vector<2x384xf32> to vector<2x128xf32>
    %363 = vector.extract_strided_slice %353 {offsets = [0, 384], sizes = [2, 128], strides = [1, 1]} : vector<2x512xf32> to vector<2x128xf32>
    %364 = math.tanh %363 : vector<2x128xf32>
    %365 = arith.mulf %361, %319 : vector<2x128xf32>
    %366 = arith.mulf %360, %364 : vector<2x128xf32>
    %367 = arith.addf %365, %366 : vector<2x128xf32>
    %368 = math.tanh %367 : vector<2x128xf32>
    %369 = arith.mulf %362, %368 : vector<2x128xf32>
    %370 = arith.truncf %369 : vector<2x128xf32> to vector<2x128xbf16>
    %c0_103 = arith.constant 0 : index
    %c0_104 = arith.constant 0 : index
    %371 = vector.load %arg5[%c0_103, %c0_104] : memref<128x512xbf16, #tpu.memory_space<vmem>>, vector<128x512xbf16>
    %cst_105 = arith.constant dense<0.000000e+00> : vector<2x512xf32>
    %372 = tpu.matmul %370, %371, %cst_105 {dimension_numbers = #tpu.dot_dimension_numbers<[1], [0], [0], [1], [0, 0, 1, 1], [], []>} : vector<2x128xbf16>, vector<128x512xbf16>, vector<2x512xf32> -> vector<2x512xf32>
    %373 = arith.addf %345, %372 : vector<2x512xf32>
    %374 = arith.addf %373, %5 : vector<2x512xf32>
    %375 = vector.extract_strided_slice %374 {offsets = [0, 0], sizes = [2, 384], strides = [1, 1]} : vector<2x512xf32> to vector<2x384xf32>
    %376 = arith.negf %375 : vector<2x384xf32>
    %377 = math.exp %376 : vector<2x384xf32>
    %cst_106 = arith.constant 1.000000e+00 : f32
    %378 = vector.broadcast %cst_106 : f32 to vector<2x384xf32>
    %379 = arith.addf %378, %377 : vector<2x384xf32>
    %380 = arith.divf %378, %379 : vector<2x384xf32>
    %381 = vector.extract_strided_slice %380 {offsets = [0, 0], sizes = [2, 128], strides = [1, 1]} : vector<2x384xf32> to vector<2x128xf32>
    %382 = vector.extract_strided_slice %380 {offsets = [0, 128], sizes = [2, 128], strides = [1, 1]} : vector<2x384xf32> to vector<2x128xf32>
    %383 = vector.extract_strided_slice %380 {offsets = [0, 256], sizes = [2, 128], strides = [1, 1]} : vector<2x384xf32> to vector<2x128xf32>
    %384 = vector.extract_strided_slice %374 {offsets = [0, 384], sizes = [2, 128], strides = [1, 1]} : vector<2x512xf32> to vector<2x128xf32>
    %385 = math.tanh %384 : vector<2x128xf32>
    %386 = arith.mulf %382, %340 : vector<2x128xf32>
    %387 = arith.mulf %381, %385 : vector<2x128xf32>
    %388 = arith.addf %386, %387 : vector<2x128xf32>
    %389 = math.tanh %388 : vector<2x128xf32>
    %390 = arith.mulf %383, %389 : vector<2x128xf32>
    %c8_i32 = arith.constant 8 : i32
    %c0_107 = arith.constant 0 : index
    %c0_108 = arith.constant 0 : index
    %391 = vector.load %arg7[%c0_107, %c0_108] : memref<2x128xf32, #tpu.memory_space<vmem>>, vector<2x128xf32>
    tpu.vector_store %arg7[%c0_107, %c0_108], %390 {strides = array<i32>} : memref<2x128xf32, #tpu.memory_space<vmem>>, vector<2x128xf32>,
    return
  }
  func.func @transform_0(%arg0: i32) -> (i32, i32, i32) {
    %c0_i32 = arith.constant 0 : i32
    %c0_i32_0 = arith.constant 0 : i32
    %c0_i32_1 = arith.constant 0 : i32
    %c0_i32_2 = arith.constant 0 : i32
    return %c0_i32, %c0_i32_0, %c0_i32_1 : i32, i32, i32
  }
  func.func @transform_1(%arg0: i32) -> (i32, i32) {
    %c0_i32 = arith.constant 0 : i32
    %c0_i32_0 = arith.constant 0 : i32
    %c0_i32_1 = arith.constant 0 : i32
    return %c0_i32, %c0_i32_0 : i32, i32
  }
  func.func @transform_2(%arg0: i32) -> (i32, i32) {
    %c0_i32 = arith.constant 0 : i32
    %c0_i32_0 = arith.constant 0 : i32
    %c0_i32_1 = arith.constant 0 : i32
    return %c0_i32, %c0_i32_0 : i32, i32
  }
  func.func @transform_3(%arg0: i32) -> (i32, i32) {
    %c0_i32 = arith.constant 0 : i32
    %c0_i32_0 = arith.constant 0 : i32
    %c0_i32_1 = arith.constant 0 : i32
    return %c0_i32, %c0_i32_0 : i32, i32
  }
  func.func @transform_4(%arg0: i32) -> (i32, i32) {
    %c0_i32 = arith.constant 0 : i32
    %c0_i32_0 = arith.constant 0 : i32
    %c0_i32_1 = arith.constant 0 : i32
    return %c0_i32, %c0_i32_0 : i32, i32
  }
  func.func @transform_5(%arg0: i32) -> (i32, i32) {
    %c0_i32 = arith.constant 0 : i32
    %c0_i32_0 = arith.constant 0 : i32
    %c0_i32_1 = arith.constant 0 : i32
    return %c0_i32, %c0_i32_0 : i32, i32
  }
  func.func @transform_6(%arg0: i32) -> (i32, i32) {
    %c0_i32 = arith.constant 0 : i32
    %c0_i32_0 = arith.constant 0 : i32
    %c0_i32_1 = arith.constant 0 : i32
    return %c0_i32, %c0_i32_0 : i32, i32
  }
}

</mosaic_0001>

<llo_original>
// kernel: _encoder_padded.1
$region0: #{_encoder_padded.1}
  #allocation0 [shape = 'u32[]', space=smem, size = 0x4, offset = 0x4, fixed_abs, tag = 'smem constant byte address 0x4 - core index']
  #allocation1 [shape = 'u32[72,128]{1,0:T(1,128)}', space=vmem, size = 0x9000, scoped, tag = 'internal scratch']
  %s0 = inlined_call_operand.vmem [shape: f32[8,2,512], index: 0, kind: input, shape index: {}]
  %s1 = inlined_call_operand.hbm [shape: bf16[128,512], index: 1, kind: input, shape index: {}]
  %s2 = inlined_call_operand.vmem [shape: f32[1,512], index: 2, kind: input, shape index: {}]
  %s3 = inlined_call_operand.hbm [shape: bf16[128,512], index: 3, kind: input, shape index: {}]
  %s4 = inlined_call_operand.hbm [shape: bf16[128,512], index: 4, kind: input, shape index: {}]
  %s5 = inlined_call_operand.vmem [shape: f32[1,512], index: 5, kind: input, shape index: {}]
  %s6 = inlined_call_operand.hbm [shape: f32[2,128], index: 6, kind: output, shape index: {}]
  %s7 = sld [smem:[#allocation0]]
  $region46: #{_encoder_padded.1} parent=0
    _
  %s9 = ssub.s32 1, %s7
  %s10 = scalar_select 0, %s9, %s7
  $region1: #{_encoder_padded.1} parent=0
    #allocation2 [shape = 'u8[131072]{0}', space=vmem, size = 0x20000, scoped, tag = 'input window, operand 1, single buffered']
    #allocation3 [shape = 's32[1]{0}', space=sflag, size = 0x4, scoped, tag = 'scoped memory for _encoder_padded.1']
    #allocation4 [shape = 's32[1]{0}', space=sflag, size = 0x4, scoped, tag = 'scoped memory for _encoder_padded.1']
    #allocation5 [shape = 'u8[131072]{0}', space=vmem, size = 0x20000, scoped, tag = 'input window, operand 3, single buffered']
    #allocation6 [shape = 's32[1]{0}', space=sflag, size = 0x4, scoped, tag = 'scoped memory for _encoder_padded.1']
    #allocation7 [shape = 'u8[131072]{0}', space=vmem, size = 0x20000, scoped, tag = 'input window, operand 4, single buffered']
    #allocation8 [shape = 'u8[1024]{0}', space=vmem, size = 0x400, scoped, tag = 'output window, operand 0, single buffered']
    %11 = vsyncpa [#allocation3], 0
    %12 = vsyncpa [#allocation6], 0
    %13 = vsyncpa [#allocation4], 0
    // Predicated region
    $region2: #{_encoder_padded.1} parent=1 // pred_check
      _
    $region3: #{_encoder_padded.1} parent=1 // pred_check_branch
      %15 = sbr.rel (0) target = $region5
    $region4: #{_encoder_padded.1} parent=1 // pred_region
      _
    $region5: #{_encoder_padded.1} parent=1 // pred_fallthru
      _
    // Predicated region
    $region6: #{_encoder_padded.1} parent=1 // pred_check
      _
    $region7: #{_encoder_padded.1} parent=1 // pred_check_branch
      %17 = sbr.rel (0) target = $region9
    $region8: #{_encoder_padded.1} parent=1 // pred_region
      %19 = vsyncadd [#allocation3], 0
      %s20 = sshll.u32 %s1, 4
      %s21 = int_to_ptr.hbm [resolvable:$true] %s20
      %s22 = sshll.u32 [#allocation2], 4
      %s23 = int_to_ptr.vmem [resolvable:$true] %s22
      %28 = dma.hbm_to_vmem [thread:$0]  %s21, 4096, %s23, [#allocation3], 256, 256, 16
    $region9: #{_encoder_padded.1} parent=1 // pred_fallthru
      _
    // Predicated region
    $region10: #{_encoder_padded.1} parent=1 // pred_check
      _
    $region11: #{_encoder_padded.1} parent=1 // pred_check_branch
      %30 = sbr.rel (0) target = $region13
    $region12: #{_encoder_padded.1} parent=1 // pred_region
      _
    $region13: #{_encoder_padded.1} parent=1 // pred_fallthru
      _
    // Predicated region
    $region14: #{_encoder_padded.1} parent=1 // pred_check
      _
    $region15: #{_encoder_padded.1} parent=1 // pred_check_branch
      %32 = sbr.rel (0) target = $region17
    $region16: #{_encoder_padded.1} parent=1 // pred_region
      %34 = vsyncadd [#allocation6], 0
      %s35 = sshll.u32 %s3, 4
      %s36 = int_to_ptr.hbm [resolvable:$true] %s35
      %s37 = sshll.u32 [#allocation5], 4
      %s38 = int_to_ptr.vmem [resolvable:$true] %s37
      %43 = dma.hbm_to_vmem [thread:$0]  %s36, 4096, %s38, [#allocation6], 256, 256, 16
    $region17: #{_encoder_padded.1} parent=1 // pred_fallthru
      _
    // Predicated region
    $region18: #{_encoder_padded.1} parent=1 // pred_check
      _
    $region19: #{_encoder_padded.1} parent=1 // pred_check_branch
      %45 = sbr.rel (0) target = $region21
    $region20: #{_encoder_padded.1} parent=1 // pred_region
      %47 = vsyncadd [#allocation6], 0
      %s48 = sshll.u32 %s4, 4
      %s49 = int_to_ptr.hbm [resolvable:$true] %s48
      %s50 = sshll.u32 [#allocation7], 4
      %s51 = int_to_ptr.vmem [resolvable:$true] %s50
      %56 = dma.hbm_to_vmem [thread:$0]  %s49, 4096, %s51, [#allocation6], 256, 256, 16
    $region21: #{_encoder_padded.1} parent=1 // pred_fallthru
      _
    // Predicated region
    $region22: #{_encoder_padded.1} parent=1 // pred_check
      _
    $region23: #{_encoder_padded.1} parent=1 // pred_check_branch
      %58 = sbr.rel (0) target = $region25
    $region24: #{_encoder_padded.1} parent=1 // pred_region
      _
    $region25: #{_encoder_padded.1} parent=1 // pred_fallthru
      _
    // Predicated region
    $region26: #{_encoder_padded.1} parent=1 // pred_check
      _
    $region27: #{_encoder_padded.1} parent=1 // pred_check_branch
      %60 = sbr.rel (0) target = $region29
    $region28: #{_encoder_padded.1} parent=1 // pred_region
      %62 = dma.done [#allocation3], 4096
    $region29: #{_encoder_padded.1} parent=1 // pred_fallthru
      _
    // Predicated region
    $region30: #{_encoder_padded.1} parent=1 // pred_check
      _
    $region31: #{_encoder_padded.1} parent=1 // pred_check_branch
      %64 = sbr.rel (0) target = $region33
    $region32: #{_encoder_padded.1} parent=1 // pred_region
      %66 = dma.done [#allocation6], 4096
    $region33: #{_encoder_padded.1} parent=1 // pred_fallthru
      _
    // Predicated region
    $region34: #{_encoder_padded.1} parent=1 // pred_check
      _
    $region35: #{_encoder_padded.1} parent=1 // pred_check_branch
      %68 = sbr.rel (0) target = $region37
    $region36: #{_encoder_padded.1} parent=1 // pred_region
      %70 = dma.done [#allocation6], 4096
    $region37: #{_encoder_padded.1} parent=1 // pred_fallthru
      _
    %v72 = vld [vmem:[%s2] sm:$0xf]
    %v74 = vperm.slane %v72, 0
    %v75 = vperm.slane %v72, 1
    %v76 = vperm.slane %v72, 2
    %v77 = vperm.slane %v72, 3
    %v82 = vld [vmem:[%s5] sm:$0xf]
    %v84 = vperm.slane %v82, 0
    %v85 = vperm.slane %v82, 1
    %v86 = vperm.slane %v82, 2
    %v87 = vperm.slane %v82, 3
    %v92 = vld [vmem:[#allocation5] sm:$0xff]
    %v93 = vld [vmem:[#allocation5 + $0x8] sm:$0xff]
    %v94 = vld [vmem:[#allocation5 + $0x10] sm:$0xff]
    %v95 = vld [vmem:[#allocation5 + $0x18] sm:$0xff]
    %v96 = vld [vmem:[#allocation5 + $0x20] sm:$0xff]
    %v97 = vld [vmem:[#allocation5 + $0x28] sm:$0xff]
    %v98 = vld [vmem:[#allocation5 + $0x30] sm:$0xff]
    %v99 = vld [vmem:[#allocation5 + $0x38] sm:$0xff]
    %v100 = vld [vmem:[#allocation5 + $0x40] sm:$0xff]
    %v101 = vld [vmem:[#allocation5 + $0x48] sm:$0xff]
    %v102 = vld [vmem:[#allocation5 + $0x50] sm:$0xff]
    %v103 = vld [vmem:[#allocation5 + $0x58] sm:$0xff]
    %v104 = vld [vmem:[#allocation5 + $0x60] sm:$0xff]
    %v105 = vld [vmem:[#allocation5 + $0x68] sm:$0xff]
    %v106 = vld [vmem:[#allocation5 + $0x70] sm:$0xff]
    %v107 = vld [vmem:[#allocation5 + $0x78] sm:$0xff]
    %v108 = vld [vmem:[#allocation5 + $0x80] sm:$0xff]
    %v109 = vld [vmem:[#allocation5 + $0x88] sm:$0xff]
    %v110 = vld [vmem:[#allocation5 + $0x90] sm:$0xff]
    %v111 = vld [vmem:[#allocation5 + $0x98] sm:$0xff]
    %v112 = vld [vmem:[#allocation5 + $0xa0] sm:$0xff]
    %v113 = vld [vmem:[#allocation5 + $0xa8] sm:$0xff]
    %v114 = vld [vmem:[#allocation5 + $0xb0] sm:$0xff]
    %v115 = vld [vmem:[#allocation5 + $0xb8] sm:$0xff]
    %v116 = vld [vmem:[#allocation5 + $0xc0] sm:$0xff]
    %v117 = vld [vmem:[#allocation5 + $0xc8] sm:$0xff]
    %v118 = vld [vmem:[#allocation5 + $0xd0] sm:$0xff]
    %v119 = vld [vmem:[#allocation5 + $0xd8] sm:$0xff]
    %v120 = vld [vmem:[#allocation5 + $0xe0] sm:$0xff]
    %v121 = vld [vmem:[#allocation5 + $0xe8] sm:$0xff]
    %v122 = vld [vmem:[#allocation5 + $0xf0] sm:$0xff]
    %v123 = vld [vmem:[#allocation5 + $0xf8] sm:$0xff]
    %v124 = vld [vmem:[#allocation2] sm:$0xff]
    %v125 = vld [vmem:[#allocation2 + $0x8] sm:$0xff]
    %v126 = vld [vmem:[#allocation2 + $0x10] sm:$0xff]
    %v127 = vld [vmem:[#allocation2 + $0x18] sm:$0xff]
    %v128 = vld [vmem:[#allocation2 + $0x20] sm:$0xff]
    %v129 = vld [vmem:[#allocation2 + $0x28] sm:$0xff]
    %v130 = vld [vmem:[#allocation2 + $0x30] sm:$0xff]
    %v131 = vld [vmem:[#allocation2 + $0x38] sm:$0xff]
    %v132 = vld [vmem:[#allocation2 + $0x40] sm:$0xff]
    %v133 = vld [vmem:[#allocation2 + $0x48] sm:$0xff]
    %v134 = vld [vmem:[#allocation2 + $0x50] sm:$0xff]
    %v135 = vld [vmem:[#allocation2 + $0x58] sm:$0xff]
    %v136 = vld [vmem:[#allocation2 + $0x60] sm:$0xff]
    %v137 = vld [vmem:[#allocation2 + $0x68] sm:$0xff]
    %v138 = vld [vmem:[#allocation2 + $0x70] sm:$0xff]
    %v139 = vld [vmem:[#allocation2 + $0x78] sm:$0xff]
    %v140 = vld [vmem:[#allocation2 + $0x80] sm:$0xff]
    %v141 = vld [vmem:[#allocation2 + $0x88] sm:$0xff]
    %v142 = vld [vmem:[#allocation2 + $0x90] sm:$0xff]
    %v143 = vld [vmem:[#allocation2 + $0x98] sm:$0xff]
    %v144 = vld [vmem:[#allocation2 + $0xa0] sm:$0xff]
    %v145 = vld [vmem:[#allocation2 + $0xa8] sm:$0xff]
    %v146 = vld [vmem:[#allocation2 + $0xb0] sm:$0xff]
    %v147 = vld [vmem:[#allocation2 + $0xb8] sm:$0xff]
    %v148 = vld [vmem:[#allocation2 + $0xc0] sm:$0xff]
    %v149 = vld [vmem:[#allocation2 + $0xc8] sm:$0xff]
    %v150 = vld [vmem:[#allocation2 + $0xd0] sm:$0xff]
    %v151 = vld [vmem:[#allocation2 + $0xd8] sm:$0xff]
    %v152 = vld [vmem:[#allocation2 + $0xe0] sm:$0xff]
    %v153 = vld [vmem:[#allocation2 + $0xe8] sm:$0xff]
    %v154 = vld [vmem:[#allocation2 + $0xf0] sm:$0xff]
    %v155 = vld [vmem:[#allocation2 + $0xf8] sm:$0xff]
    %v156 = vld [vmem:[%s0] sm:$0xff]
    %v189 = vunpack.c.l.b16 %v124
    %v190 = vunpack.c.h.b16 %v124
    %v191 = vunpack.c.l.b16 %v125
    %v192 = vunpack.c.h.b16 %v125
    %v193 = vunpack.c.l.b16 %v126
    %v194 = vunpack.c.h.b16 %v126
    %v195 = vunpack.c.l.b16 %v127
    %v196 = vunpack.c.h.b16 %v127
    %v197 = vunpack.c.l.b16 %v128
    %v198 = vunpack.c.h.b16 %v128
    %v199 = vunpack.c.l.b16 %v129
    %v200 = vunpack.c.h.b16 %v129
    %v201 = vunpack.c.l.b16 %v130
    %v202 = vunpack.c.h.b16 %v130
    %v203 = vunpack.c.l.b16 %v131
    %v204 = vunpack.c.h.b16 %v131
    %v205 = vunpack.c.l.b16 %v132
    %v206 = vunpack.c.h.b16 %v132
    %v207 = vunpack.c.l.b16 %v133
    %v208 = vunpack.c.h.b16 %v133
    %v209 = vunpack.c.l.b16 %v134
    %v210 = vunpack.c.h.b16 %v134
    %v211 = vunpack.c.l.b16 %v135
    %v212 = vunpack.c.h.b16 %v135
    %v213 = vunpack.c.l.b16 %v136
    %v214 = vunpack.c.h.b16 %v136
    %v215 = vunpack.c.l.b16 %v137
    %v216 = vunpack.c.h.b16 %v137
    %v217 = vunpack.c.l.b16 %v138
    %v218 = vunpack.c.h.b16 %v138
    %v219 = vunpack.c.l.b16 %v139
    %v220 = vunpack.c.h.b16 %v139
    %v221 = vunpack.c.l.b16 %v140
    %v222 = vunpack.c.h.b16 %v140
    %v223 = vunpack.c.l.b16 %v141
    %v224 = vunpack.c.h.b16 %v141
    %v225 = vunpack.c.l.b16 %v142
    %v226 = vunpack.c.h.b16 %v142
    %v227 = vunpack.c.l.b16 %v143
    %v228 = vunpack.c.h.b16 %v143
    %v229 = vunpack.c.l.b16 %v144
    %v230 = vunpack.c.h.b16 %v144
    %v231 = vunpack.c.l.b16 %v145
    %v232 = vunpack.c.h.b16 %v145
    %v233 = vunpack.c.l.b16 %v146
    %v234 = vunpack.c.h.b16 %v146
    %v235 = vunpack.c.l.b16 %v147
    %v236 = vunpack.c.h.b16 %v147
    %v237 = vunpack.c.l.b16 %v148
    %v238 = vunpack.c.h.b16 %v148
    %v239 = vunpack.c.l.b16 %v149
    %v240 = vunpack.c.h.b16 %v149
    %v241 = vunpack.c.l.b16 %v150
    %v242 = vunpack.c.h.b16 %v150
    %v243 = vunpack.c.l.b16 %v151
    %v244 = vunpack.c.h.b16 %v151
    %v245 = vunpack.c.l.b16 %v152
    %v246 = vunpack.c.h.b16 %v152
    %v247 = vunpack.c.l.b16 %v153
    %v248 = vunpack.c.h.b16 %v153
    %v249 = vunpack.c.l.b16 %v154
    %v250 = vunpack.c.h.b16 %v154
    %v251 = vunpack.c.l.b16 %v155
    %v252 = vunpack.c.h.b16 %v155
    %v253 = vpack.c.b16 %v193, %v189
    %v254 = vpack.c.b16 %v194, %v190
    %v255 = vpack.c.b16 %v195, %v191
    %v256 = vpack.c.b16 %v196, %v192
    %v257 = vpack.c.b16 %v201, %v197
    %v258 = vpack.c.b16 %v202, %v198
    %v259 = vpack.c.b16 %v203, %v199
    %v260 = vpack.c.b16 %v204, %v200
    %v261 = vpack.c.b16 %v209, %v205
    %v262 = vpack.c.b16 %v210, %v206
    %v263 = vpack.c.b16 %v211, %v207
    %v264 = vpack.c.b16 %v212, %v208
    %v265 = vpack.c.b16 %v217, %v213
    %v266 = vpack.c.b16 %v218, %v214
    %v267 = vpack.c.b16 %v219, %v215
    %v268 = vpack.c.b16 %v220, %v216
    %v269 = vpack.c.b16 %v225, %v221
    %v270 = vpack.c.b16 %v226, %v222
    %v271 = vpack.c.b16 %v227, %v223
    %v272 = vpack.c.b16 %v228, %v224
    %v273 = vpack.c.b16 %v233, %v229
    %v274 = vpack.c.b16 %v234, %v230
    %v275 = vpack.c.b16 %v235, %v231
    %v276 = vpack.c.b16 %v236, %v232
    %v277 = vpack.c.b16 %v241, %v237
    %v278 = vpack.c.b16 %v242, %v238
    %v279 = vpack.c.b16 %v243, %v239
    %v280 = vpack.c.b16 %v244, %v240
    %v281 = vpack.c.b16 %v249, %v245
    %v282 = vpack.c.b16 %v250, %v246
    %v283 = vpack.c.b16 %v251, %v247
    %v284 = vpack.c.b16 %v252, %v248
    %318 = vst [vmem:[#allocation1] ss:$4 sm:$0xff] %v156
    %v319 = vld.sshfl [vmem:[#allocation1] sm:$0xff pattern:$0x73625140]
    %v320 = vld.sshfl [vmem:[#allocation1 + $0x8] sm:$0xff pattern:$0x73625140]
    %v321 = vld.sshfl [vmem:[#allocation1 + $0x10] sm:$0xff pattern:$0x73625140]
    %v322 = vld.sshfl [vmem:[#allocation1 + $0x18] sm:$0xff pattern:$0x73625140]
    %327 = vmatpush.bf16.msra.mxu0 %v281
    %328 = vmatpush.bf16.msra.mxu0 %v277
    %329 = vmatpush.bf16.msra.mxu0 %v273
    %330 = vmatpush.bf16.msra.mxu0 %v269
    %331 = vmatpush.bf16.msra.mxu0 %v265
    %332 = vmatpush.bf16.msra.mxu0 %v261
    %333 = vmatpush.bf16.msra.mxu0 %v257
    %334 = vmatpush.bf16.msra.mxu0 %v253
    %335 = vmatmul.bf16.gmra.mxu0 0
    %v336 = vpop.f32.mrf.mxu0
    %v337 = vadd.f32 %v319, %v336
    %v338 = vpop.f32.mrf.mxu0
    %339 = vdwg.mxu0
    %340 = vmatpush.bf16.msra.mxu0 %v282
    %341 = vmatpush.bf16.msra.mxu0 %v278
    %342 = vmatpush.bf16.msra.mxu0 %v274
    %343 = vmatpush.bf16.msra.mxu0 %v270
    %344 = vmatpush.bf16.msra.mxu0 %v266
    %345 = vmatpush.bf16.msra.mxu0 %v262
    %346 = vmatpush.bf16.msra.mxu0 %v258
    %347 = vmatpush.bf16.msra.mxu0 %v254
    %348 = vmatmul.bf16.gmra.mxu0 0
    %v349 = vpop.f32.mrf.mxu0
    %v350 = vadd.f32 %v320, %v349
    %v351 = vpop.f32.mrf.mxu0
    %352 = vdwg.mxu0
    %353 = vmatpush.bf16.msra.mxu0 %v283
    %354 = vmatpush.bf16.msra.mxu0 %v279
    %355 = vmatpush.bf16.msra.mxu0 %v275
    %356 = vmatpush.bf16.msra.mxu0 %v271
    %357 = vmatpush.bf16.msra.mxu0 %v267
    %358 = vmatpush.bf16.msra.mxu0 %v263
    %359 = vmatpush.bf16.msra.mxu0 %v259
    %360 = vmatpush.bf16.msra.mxu0 %v255
    %361 = vmatmul.bf16.gmra.mxu0 0
    %v362 = vpop.f32.mrf.mxu0
    %v363 = vadd.f32 %v321, %v362
    %v364 = vpop.f32.mrf.mxu0
    %365 = vdwg.mxu0
    %366 = vmatpush.bf16.msra.mxu0 %v284
    %367 = vmatpush.bf16.msra.mxu0 %v280
    %368 = vmatpush.bf16.msra.mxu0 %v276
    %369 = vmatpush.bf16.msra.mxu0 %v272
    %370 = vmatpush.bf16.msra.mxu0 %v268
    %371 = vmatpush.bf16.msra.mxu0 %v264
    %372 = vmatpush.bf16.msra.mxu0 %v260
    %373 = vmatpush.bf16.msra.mxu0 %v256
    %374 = vmatmul.bf16.gmra.mxu0 0
    %v375 = vpop.f32.mrf.mxu0
    %v376 = vadd.f32 %v322, %v375
    %v377 = vpop.f32.mrf.mxu0
    %378 = vdwg.mxu0
    %v379 = vadd.f32 %v337, %v74
    %v380 = vadd.f32 %v350, %v75
    %v381 = vadd.f32 %v363, %v76
    %v382 = vadd.f32 %v376, %v77
    %v383 = vxor.u32 %v379, 2147483648
    %v384 = vxor.u32 %v380, 2147483648
    %v385 = vxor.u32 %v381, 2147483648
    %v386 = vmul.f32 %v383, 1.442695
    %v387 = vpow.pop %v386
    %v388 = vmul.f32 %v384, 1.442695
    %v389 = vpow.pop %v388
    %v390 = vmul.f32 %v385, 1.442695
    %v391 = vpow.pop %v390
    %v392 = vadd.f32 %v387, 1.0
    %v393 = vadd.f32 %v389, 1.0
    %v394 = vadd.f32 %v391, 1.0
    %v395 = vrcp.pop %v392
    %v396 = vmul.f32 %v392, %v395
    %v397 = vsub.f32 1.0, %v396
    %v398 = vmul.f32 %v395, %v397
    %v399 = vadd.f32 %v395, %v398
    %vm400 = vweird.f32 %v392
    %vm401 = vweird.f32 %v395
    %vm402 = vmor %vm400, %vm401
    %v403 = vsel %vm402, %v395, %v399
    %v404 = vand.u32 2147483647, %v392
    %vm405 = vcmp.eq.f32.partialorder %v404, 8.507059e+37
    %v406 = vand.u32 %v392, 2147483648
    %v407 = vor.u32 1.1754944e-38, %v406
    %v408 = vsel %vm405, %v407, %v403
    %v409 = vmul.f32 1.0, %v408
    %v410 = vrcp.pop %v393
    %v411 = vmul.f32 %v393, %v410
    %v412 = vsub.f32 1.0, %v411
    %v413 = vmul.f32 %v410, %v412
    %v414 = vadd.f32 %v410, %v413
    %vm415 = vweird.f32 %v393
    %vm416 = vweird.f32 %v410
    %vm417 = vmor %vm415, %vm416
    %v418 = vsel %vm417, %v410, %v414
    %v419 = vand.u32 2147483647, %v393
    %vm420 = vcmp.eq.f32.partialorder %v419, 8.507059e+37
    %v421 = vand.u32 %v393, 2147483648
    %v422 = vor.u32 1.1754944e-38, %v421
    %v423 = vsel %vm420, %v422, %v418
    %v424 = vmul.f32 1.0, %v423
    %v425 = vrcp.pop %v394
    %v426 = vmul.f32 %v394, %v425
    %v427 = vsub.f32 1.0, %v426
    %v428 = vmul.f32 %v425, %v427
    %v429 = vadd.f32 %v425, %v428
    %vm430 = vweird.f32 %v394
    %vm431 = vweird.f32 %v425
    %vm432 = vmor %vm430, %vm431
    %v433 = vsel %vm432, %v425, %v429
    %v434 = vand.u32 2147483647, %v394
    %vm435 = vcmp.eq.f32.partialorder %v434, 8.507059e+37
    %v436 = vand.u32 %v394, 2147483648
    %v437 = vor.u32 1.1754944e-38, %v436
    %v438 = vsel %vm435, %v437, %v433
    %v439 = vmul.f32 1.0, %v438
    %v440 = vtanh.pop %v382
    %v441 = vmul.f32 %v424, 0.0
    %v442 = vmul.f32 %v409, %v440
    %v443 = vadd.f32 %v441, %v442
    %v444 = vtanh.pop %v443
    %v445 = vmul.f32 %v439, %v444
    %v446 = vpack.c.bf16 %v445, %v445
    %v447 = vld [vmem:[#allocation7] sm:$0xff]
    %v448 = vld [vmem:[#allocation7 + $0x8] sm:$0xff]
    %v449 = vld [vmem:[#allocation7 + $0x10] sm:$0xff]
    %v450 = vld [vmem:[#allocation7 + $0x18] sm:$0xff]
    %v451 = vld [vmem:[#allocation7 + $0x20] sm:$0xff]
    %v452 = vld [vmem:[#allocation7 + $0x28] sm:$0xff]
    %v453 = vld [vmem:[#allocation7 + $0x30] sm:$0xff]
    %v454 = vld [vmem:[#allocation7 + $0x38] sm:$0xff]
    %v455 = vld [vmem:[#allocation7 + $0x40] sm:$0xff]
    %v456 = vld [vmem:[#allocation7 + $0x48] sm:$0xff]
    %v457 = vld [vmem:[#allocation7 + $0x50] sm:$0xff]
    %v458 = vld [vmem:[#allocation7 + $0x58] sm:$0xff]
    %v459 = vld [vmem:[#allocation7 + $0x60] sm:$0xff]
    %v460 = vld [vmem:[#allocation7 + $0x68] sm:$0xff]
    %v461 = vld [vmem:[#allocation7 + $0x70] sm:$0xff]
    %v462 = vld [vmem:[#allocation7 + $0x78] sm:$0xff]
    %v463 = vld [vmem:[#allocation7 + $0x80] sm:$0xff]
    %v464 = vld [vmem:[#allocation7 + $0x88] sm:$0xff]
    %v465 = vld [vmem:[#allocation7 + $0x90] sm:$0xff]
    %v466 = vld [vmem:[#allocation7 + $0x98] sm:$0xff]
    %v467 = vld [vmem:[#allocation7 + $0xa0] sm:$0xff]
    %v468 = vld [vmem:[#allocation7 + $0xa8] sm:$0xff]
    %v469 = vld [vmem:[#allocation7 + $0xb0] sm:$0xff]
    %v470 = vld [vmem:[#allocation7 + $0xb8] sm:$0xff]
    %v471 = vld [vmem:[#allocation7 + $0xc0] sm:$0xff]
    %v472 = vld [vmem:[#allocation7 + $0xc8] sm:$0xff]
    %v473 = vld [vmem:[#allocation7 + $0xd0] sm:$0xff]
    %v474 = vld [vmem:[#allocation7 + $0xd8] sm:$0xff]
    %v475 = vld [vmem:[#allocation7 + $0xe0] sm:$0xff]
    %v476 = vld [vmem:[#allocation7 + $0xe8] sm:$0xff]
    %v477 = vld [vmem:[#allocation7 + $0xf0] sm:$0xff]
    %v478 = vld [vmem:[#allocation7 + $0xf8] sm:$0xff]
    %v511 = vunpack.c.l.b16 %v447
    %v512 = vunpack.c.h.b16 %v447
    %v513 = vunpack.c.l.b16 %v448
    %v514 = vunpack.c.h.b16 %v448
    %v515 = vunpack.c.l.b16 %v449
    %v516 = vunpack.c.h.b16 %v449
    %v517 = vunpack.c.l.b16 %v450
    %v518 = vunpack.c.h.b16 %v450
    %v519 = vunpack.c.l.b16 %v451
    %v520 = vunpack.c.h.b16 %v451
    %v521 = vunpack.c.l.b16 %v452
    %v522 = vunpack.c.h.b16 %v452
    %v523 = vunpack.c.l.b16 %v453
    %v524 = vunpack.c.h.b16 %v453
    %v525 = vunpack.c.l.b16 %v454
    %v526 = vunpack.c.h.b16 %v454
    %v527 = vunpack.c.l.b16 %v455
    %v528 = vunpack.c.h.b16 %v455
    %v529 = vunpack.c.l.b16 %v456
    %v530 = vunpack.c.h.b16 %v456
    %v531 = vunpack.c.l.b16 %v457
    %v532 = vunpack.c.h.b16 %v457
    %v533 = vunpack.c.l.b16 %v458
    %v534 = vunpack.c.h.b16 %v458
    %v535 = vunpack.c.l.b16 %v459
    %v536 = vunpack.c.h.b16 %v459
    %v537 = vunpack.c.l.b16 %v460
    %v538 = vunpack.c.h.b16 %v460
    %v539 = vunpack.c.l.b16 %v461
    %v540 = vunpack.c.h.b16 %v461
    %v541 = vunpack.c.l.b16 %v462
    %v542 = vunpack.c.h.b16 %v462
    %v543 = vunpack.c.l.b16 %v463
    %v544 = vunpack.c.h.b16 %v463
    %v545 = vunpack.c.l.b16 %v464
    %v546 = vunpack.c.h.b16 %v464
    %v547 = vunpack.c.l.b16 %v465
    %v548 = vunpack.c.h.b16 %v465
    %v549 = vunpack.c.l.b16 %v466
    %v550 = vunpack.c.h.b16 %v466
    %v551 = vunpack.c.l.b16 %v467
    %v552 = vunpack.c.h.b16 %v467
    %v553 = vunpack.c.l.b16 %v468
    %v554 = vunpack.c.h.b16 %v468
    %v555 = vunpack.c.l.b16 %v469
    %v556 = vunpack.c.h.b16 %v469
    %v557 = vunpack.c.l.b16 %v470
    %v558 = vunpack.c.h.b16 %v470
    %v559 = vunpack.c.l.b16 %v471
    %v560 = vunpack.c.h.b16 %v471
    %v561 = vunpack.c.l.b16 %v472
    %v562 = vunpack.c.h.b16 %v472
    %v563 = vunpack.c.l.b16 %v473
    %v564 = vunpack.c.h.b16 %v473
    %v565 = vunpack.c.l.b16 %v474
    %v566 = vunpack.c.h.b16 %v474
    %v567 = vunpack.c.l.b16 %v475
    %v568 = vunpack.c.h.b16 %v475
    %v569 = vunpack.c.l.b16 %v476
    %v570 = vunpack.c.h.b16 %v476
    %v571 = vunpack.c.l.b16 %v477
    %v572 = vunpack.c.h.b16 %v477
    %v573 = vunpack.c.l.b16 %v478
    %v574 = vunpack.c.h.b16 %v478
    %v575 = vpack.c.b16 %v515, %v511
    %v576 = vpack.c.b16 %v516, %v512
    %v577 = vpack.c.b16 %v517, %v513
    %v578 = vpack.c.b16 %v518, %v514
    %v579 = vpack.c.b16 %v523, %v519
    %v580 = vpack.c.b16 %v524, %v520
    %v581 = vpack.c.b16 %v525, %v521
    %v582 = vpack.c.b16 %v526, %v522
    %v583 = vpack.c.b16 %v531, %v527
    %v584 = vpack.c.b16 %v532, %v528
    %v585 = vpack.c.b16 %v533, %v529
    %v586 = vpack.c.b16 %v534, %v530
    %v587 = vpack.c.b16 %v539, %v535
    %v588 = vpack.c.b16 %v540, %v536
    %v589 = vpack.c.b16 %v541, %v537
    %v590 = vpack.c.b16 %v542, %v538
    %v591 = vpack.c.b16 %v547, %v543
    %v592 = vpack.c.b16 %v548, %v544
    %v593 = vpack.c.b16 %v549, %v545
    %v594 = vpack.c.b16 %v550, %v546
    %v595 = vpack.c.b16 %v555, %v551
    %v596 = vpack.c.b16 %v556, %v552
    %v597 = vpack.c.b16 %v557, %v553
    %v598 = vpack.c.b16 %v558, %v554
    %v599 = vpack.c.b16 %v563, %v559
    %v600 = vpack.c.b16 %v564, %v560
    %v601 = vpack.c.b16 %v565, %v561
    %v602 = vpack.c.b16 %v566, %v562
    %v603 = vpack.c.b16 %v571, %v567
    %v604 = vpack.c.b16 %v572, %v568
    %v605 = vpack.c.b16 %v573, %v569
    %v606 = vpack.c.b16 %v574, %v570
    %639 = vmatpush.bf16.msra.mxu0 %v603
    %640 = vmatpush.bf16.msra.mxu0 %v599
    %641 = vmatpush.bf16.msra.mxu0 %v595
    %642 = vmatpush.bf16.msra.mxu0 %v591
    %643 = vmatpush.bf16.msra.mxu0 %v587
    %644 = vmatpush.bf16.msra.mxu0 %v583
    %645 = vmatpush.bf16.msra.mxu0 %v579
    %646 = vmatpush.bf16.msra.mxu0 %v575
    %647 = vmatmul.bf16.gmra.mxu0 %v446
    %v648 = vpop.f32.mrf.mxu0
    %v649 = vadd.f32 0.0, %v648
    %v650 = vpop.f32.mrf.mxu0
    %651 = vdwg.mxu0
    %652 = vmatpush.bf16.msra.mxu0 %v604
    %653 = vmatpush.bf16.msra.mxu0 %v600
    %654 = vmatpush.bf16.msra.mxu0 %v596
    %655 = vmatpush.bf16.msra.mxu0 %v592
    %656 = vmatpush.bf16.msra.mxu0 %v588
    %657 = vmatpush.bf16.msra.mxu0 %v584
    %658 = vmatpush.bf16.msra.mxu0 %v580
    %659 = vmatpush.bf16.msra.mxu0 %v576
    %660 = vmatmul.bf16.gmra.mxu0 %v446
    %v661 = vpop.f32.mrf.mxu0
    %v662 = vadd.f32 0.0, %v661
    %v663 = vpop.f32.mrf.mxu0
    %664 = vdwg.mxu0
    %665 = vmatpush.bf16.msra.mxu0 %v605
    %666 = vmatpush.bf16.msra.mxu0 %v601
    %667 = vmatpush.bf16.msra.mxu0 %v597
    %668 = vmatpush.bf16.msra.mxu0 %v593
    %669 = vmatpush.bf16.msra.mxu0 %v589
    %670 = vmatpush.bf16.msra.mxu0 %v585
    %671 = vmatpush.bf16.msra.mxu0 %v581
    %672 = vmatpush.bf16.msra.mxu0 %v577
    %673 = vmatmul.bf16.gmra.mxu0 %v446
    %v674 = vpop.f32.mrf.mxu0
    %v675 = vadd.f32 0.0, %v674
    %v676 = vpop.f32.mrf.mxu0
    %677 = vdwg.mxu0
    %678 = vmatpush.bf16.msra.mxu0 %v606
    %679 = vmatpush.bf16.msra.mxu0 %v602
    %680 = vmatpush.bf16.msra.mxu0 %v598
    %681 = vmatpush.bf16.msra.mxu0 %v594
    %682 = vmatpush.bf16.msra.mxu0 %v590
    %683 = vmatpush.bf16.msra.mxu0 %v586
    %684 = vmatpush.bf16.msra.mxu0 %v582
    %685 = vmatpush.bf16.msra.mxu0 %v578
    %686 = vmatmul.bf16.gmra.mxu0 %v446
    %v687 = vpop.f32.mrf.mxu0
    %v688 = vadd.f32 0.0, %v687
    %v689 = vpop.f32.mrf.mxu0
    %690 = vdwg.mxu0
    %v723 = vunpack.c.l.b16 %v92
    %v724 = vunpack.c.h.b16 %v92
    %v725 = vunpack.c.l.b16 %v93
    %v726 = vunpack.c.h.b16 %v93
    %v727 = vunpack.c.l.b16 %v94
    %v728 = vunpack.c.h.b16 %v94
    %v729 = vunpack.c.l.b16 %v95
    %v730 = vunpack.c.h.b16 %v95
    %v731 = vunpack.c.l.b16 %v96
    %v732 = vunpack.c.h.b16 %v96
    %v733 = vunpack.c.l.b16 %v97
    %v734 = vunpack.c.h.b16 %v97
    %v735 = vunpack.c.l.b16 %v98
    %v736 = vunpack.c.h.b16 %v98
    %v737 = vunpack.c.l.b16 %v99
    %v738 = vunpack.c.h.b16 %v99
    %v739 = vunpack.c.l.b16 %v100
    %v740 = vunpack.c.h.b16 %v100
    %v741 = vunpack.c.l.b16 %v101
    %v742 = vunpack.c.h.b16 %v101
    %v743 = vunpack.c.l.b16 %v102
    %v744 = vunpack.c.h.b16 %v102
    %v745 = vunpack.c.l.b16 %v103
    %v746 = vunpack.c.h.b16 %v103
    %v747 = vunpack.c.l.b16 %v104
    %v748 = vunpack.c.h.b16 %v104
    %v749 = vunpack.c.l.b16 %v105
    %v750 = vunpack.c.h.b16 %v105
    %v751 = vunpack.c.l.b16 %v106
    %v752 = vunpack.c.h.b16 %v106
    %v753 = vunpack.c.l.b16 %v107
    %v754 = vunpack.c.h.b16 %v107
    %v755 = vunpack.c.l.b16 %v108
    %v756 = vunpack.c.h.b16 %v108
    %v757 = vunpack.c.l.b16 %v109
    %v758 = vunpack.c.h.b16 %v109
    %v759 = vunpack.c.l.b16 %v110
    %v760 = vunpack.c.h.b16 %v110
    %v761 = vunpack.c.l.b16 %v111
    %v762 = vunpack.c.h.b16 %v111
    %v763 = vunpack.c.l.b16 %v112
    %v764 = vunpack.c.h.b16 %v112
    %v765 = vunpack.c.l.b16 %v113
    %v766 = vunpack.c.h.b16 %v113
    %v767 = vunpack.c.l.b16 %v114
    %v768 = vunpack.c.h.b16 %v114
    %v769 = vunpack.c.l.b16 %v115
    %v770 = vunpack.c.h.b16 %v115
    %v771 = vunpack.c.l.b16 %v116
    %v772 = vunpack.c.h.b16 %v116
    %v773 = vunpack.c.l.b16 %v117
    %v774 = vunpack.c.h.b16 %v117
    %v775 = vunpack.c.l.b16 %v118
    %v776 = vunpack.c.h.b16 %v118
    %v777 = vunpack.c.l.b16 %v119
    %v778 = vunpack.c.h.b16 %v119
    %v779 = vunpack.c.l.b16 %v120
    %v780 = vunpack.c.h.b16 %v120
    %v781 = vunpack.c.l.b16 %v121
    %v782 = vunpack.c.h.b16 %v121
    %v783 = vunpack.c.l.b16 %v122
    %v784 = vunpack.c.h.b16 %v122
    %v785 = vunpack.c.l.b16 %v123
    %v786 = vunpack.c.h.b16 %v123
    %v787 = vpack.c.b16 %v727, %v723
    %v788 = vpack.c.b16 %v728, %v724
    %v789 = vpack.c.b16 %v729, %v725
    %v790 = vpack.c.b16 %v730, %v726
    %v791 = vpack.c.b16 %v735, %v731
    %v792 = vpack.c.b16 %v736, %v732
    %v793 = vpack.c.b16 %v737, %v733
    %v794 = vpack.c.b16 %v738, %v734
    %v795 = vpack.c.b16 %v743, %v739
    %v796 = vpack.c.b16 %v744, %v740
    %v797 = vpack.c.b16 %v745, %v741
    %v798 = vpack.c.b16 %v746, %v742
    %v799 = vpack.c.b16 %v751, %v747
    %v800 = vpack.c.b16 %v752, %v748
    %v801 = vpack.c.b16 %v753, %v749
    %v802 = vpack.c.b16 %v754, %v750
    %v803 = vpack.c.b16 %v759, %v755
    %v804 = vpack.c.b16 %v760, %v756
    %v805 = vpack.c.b16 %v761, %v757
    %v806 = vpack.c.b16 %v762, %v758
    %v807 = vpack.c.b16 %v767, %v763
    %v808 = vpack.c.b16 %v768, %v764
    %v809 = vpack.c.b16 %v769, %v765
    %v810 = vpack.c.b16 %v770, %v766
    %v811 = vpack.c.b16 %v775, %v771
    %v812 = vpack.c.b16 %v776, %v772
    %v813 = vpack.c.b16 %v777, %v773
    %v814 = vpack.c.b16 %v778, %v774
    %v815 = vpack.c.b16 %v783, %v779
    %v816 = vpack.c.b16 %v784, %v780
    %v817 = vpack.c.b16 %v785, %v781
    %v818 = vpack.c.b16 %v786, %v782
    %851 = vmatpush.bf16.msra.mxu0 %v815
    %852 = vmatpush.bf16.msra.mxu0 %v811
    %853 = vmatpush.bf16.msra.mxu0 %v807
    %854 = vmatpush.bf16.msra.mxu0 %v803
    %855 = vmatpush.bf16.msra.mxu0 %v799
    %856 = vmatpush.bf16.msra.mxu0 %v795
    %857 = vmatpush.bf16.msra.mxu0 %v791
    %858 = vmatpush.bf16.msra.mxu0 %v787
    %859 = vmatmul.bf16.gmra.mxu0 0
    %v860 = vpop.f32.mrf.mxu0
    %v861 = vadd.f32 %v649, %v860
    %v862 = vpop.f32.mrf.mxu0
    %863 = vdwg.mxu0
    %864 = vmatpush.bf16.msra.mxu0 %v816
    %865 = vmatpush.bf16.msra.mxu0 %v812
    %866 = vmatpush.bf16.msra.mxu0 %v808
    %867 = vmatpush.bf16.msra.mxu0 %v804
    %868 = vmatpush.bf16.msra.mxu0 %v800
    %869 = vmatpush.bf16.msra.mxu0 %v796
    %870 = vmatpush.bf16.msra.mxu0 %v792
    %871 = vmatpush.bf16.msra.mxu0 %v788
    %872 = vmatmul.bf16.gmra.mxu0 0
    %v873 = vpop.f32.mrf.mxu0
    %v874 = vadd.f32 %v662, %v873
    %v875 = vpop.f32.mrf.mxu0
    %876 = vdwg.mxu0
    %877 = vmatpush.bf16.msra.mxu0 %v817
    %878 = vmatpush.bf16.msra.mxu0 %v813
    %879 = vmatpush.bf16.msra.mxu0 %v809
    %880 = vmatpush.bf16.msra.mxu0 %v805
    %881 = vmatpush.bf16.msra.mxu0 %v801
    %882 = vmatpush.bf16.msra.mxu0 %v797
    %883 = vmatpush.bf16.msra.mxu0 %v793
    %884 = vmatpush.bf16.msra.mxu0 %v789
    %885 = vmatmul.bf16.gmra.mxu0 0
    %v886 = vpop.f32.mrf.mxu0
    %v887 = vadd.f32 %v675, %v886
    %v888 = vpop.f32.mrf.mxu0
    %889 = vdwg.mxu0
    %890 = vmatpush.bf16.msra.mxu0 %v818
    %891 = vmatpush.bf16.msra.mxu0 %v814
    %892 = vmatpush.bf16.msra.mxu0 %v810
    %893 = vmatpush.bf16.msra.mxu0 %v806
    %894 = vmatpush.bf16.msra.mxu0 %v802
    %895 = vmatpush.bf16.msra.mxu0 %v798
    %896 = vmatpush.bf16.msra.mxu0 %v794
    %897 = vmatpush.bf16.msra.mxu0 %v790
    %898 = vmatmul.bf16.gmra.mxu0 0
    %v899 = vpop.f32.mrf.mxu0
    %v900 = vadd.f32 %v688, %v899
    %v901 = vpop.f32.mrf.mxu0
    %902 = vdwg.mxu0
    %v903 = vadd.f32 %v861, %v84
    %v904 = vadd.f32 %v874, %v85
    %v905 = vadd.f32 %v887, %v86
    %v906 = vadd.f32 %v900, %v87
    %v907 = vxor.u32 %v903, 2147483648
    %v908 = vxor.u32 %v904, 2147483648
    %v909 = vxor.u32 %v905, 2147483648
    %v910 = vmul.f32 %v907, 1.442695
    %v911 = vpow.pop %v910
    %v912 = vmul.f32 %v908, 1.442695
    %v913 = vpow.pop %v912
    %v914 = vmul.f32 %v909, 1.442695
    %v915 = vpow.pop %v914
    %v916 = vadd.f32 %v911, 1.0
    %v917 = vadd.f32 %v913, 1.0
    %v918 = vadd.f32 %v915, 1.0
    %v919 = vrcp.pop %v916
    %v920 = vmul.f32 %v916, %v919
    %v921 = vsub.f32 1.0, %v920
    %v922 = vmul.f32 %v919, %v921
    %v923 = vadd.f32 %v919, %v922
    %vm924 = vweird.f32 %v916
    %vm925 = vweird.f32 %v919
    %vm926 = vmor %vm924, %vm925
    %v927 = vsel %vm926, %v919, %v923
    %v928 = vand.u32 2147483647, %v916
    %vm929 = vcmp.eq.f32.partialorder %v928, 8.507059e+37
    %v930 = vand.u32 %v916, 2147483648
    %v931 = vor.u32 1.1754944e-38, %v930
    %v932 = vsel %vm929, %v931, %v927
    %v933 = vmul.f32 1.0, %v932
    %v934 = vrcp.pop %v917
    %v935 = vmul.f32 %v917, %v934
    %v936 = vsub.f32 1.0, %v935
    %v937 = vmul.f32 %v934, %v936
    %v938 = vadd.f32 %v934, %v937
    %vm939 = vweird.f32 %v917
    %vm940 = vweird.f32 %v934
    %vm941 = vmor %vm939, %vm940
    %v942 = vsel %vm941, %v934, %v938
    %v943 = vand.u32 2147483647, %v917
    %vm944 = vcmp.eq.f32.partialorder %v943, 8.507059e+37
    %v945 = vand.u32 %v917, 2147483648
    %v946 = vor.u32 1.1754944e-38, %v945
    %v947 = vsel %vm944, %v946, %v942
    %v948 = vmul.f32 1.0, %v947
    %v949 = vrcp.pop %v918
    %v950 = vmul.f32 %v918, %v949
    %v951 = vsub.f32 1.0, %v950
    %v952 = vmul.f32 %v949, %v951
    %v953 = vadd.f32 %v949, %v952
    %vm954 = vweird.f32 %v918
    %vm955 = vweird.f32 %v949
    %vm956 = vmor %vm954, %vm955
    %v957 = vsel %vm956, %v949, %v953
    %v958 = vand.u32 2147483647, %v918
    %vm959 = vcmp.eq.f32.partialorder %v958, 8.507059e+37
    %v960 = vand.u32 %v918, 2147483648
    %v961 = vor.u32 1.1754944e-38, %v960
    %v962 = vsel %vm959, %v961, %v957
    %v963 = vmul.f32 1.0, %v962
    %v964 = vtanh.pop %v906
    %v965 = vmul.f32 %v948, 0.0
    %v966 = vmul.f32 %v933, %v964
    %v967 = vadd.f32 %v965, %v966
    %v968 = vtanh.pop %v967
    %v969 = vmul.f32 %v963, %v968
    %v970 = vpack.c.bf16 %v969, %v969
    %s971 = scalar_lea.vmem %s0, 8
    %v972 = vld [vmem:[%s971] sm:$0xff]
    %974 = vst [vmem:[#allocation1] ss:$4 sm:$0xff] %v972
    %v975 = vld.sshfl [vmem:[#allocation1] sm:$0xff pattern:$0x73625140]
    %v976 = vld.sshfl [vmem:[#allocation1 + $0x8] sm:$0xff pattern:$0x73625140]
    %v977 = vld.sshfl [vmem:[#allocation1 + $0x10] sm:$0xff pattern:$0x73625140]
    %v978 = vld.sshfl [vmem:[#allocation1 + $0x18] sm:$0xff pattern:$0x73625140]
    %983 = vmatpush.bf16.msra.mxu0 %v281
    %984 = vmatpush.bf16.msra.mxu0 %v277
    %985 = vmatpush.bf16.msra.mxu0 %v273
    %986 = vmatpush.bf16.msra.mxu0 %v269
    %987 = vmatpush.bf16.msra.mxu0 %v265
    %988 = vmatpush.bf16.msra.mxu0 %v261
    %989 = vmatpush.bf16.msra.mxu0 %v257
    %990 = vmatpush.bf16.msra.mxu0 %v253
    %991 = vmatmul.bf16.gmra.mxu0 %v446
    %v992 = vpop.f32.mrf.mxu0
    %v993 = vadd.f32 %v975, %v992
    %v994 = vpop.f32.mrf.mxu0
    %995 = vdwg.mxu0
    %996 = vmatpush.bf16.msra.mxu0 %v282
    %997 = vmatpush.bf16.msra.mxu0 %v278
    %998 = vmatpush.bf16.msra.mxu0 %v274
    %999 = vmatpush.bf16.msra.mxu0 %v270
    %1000 = vmatpush.bf16.msra.mxu0 %v266
    %1001 = vmatpush.bf16.msra.mxu0 %v262
    %1002 = vmatpush.bf16.msra.mxu0 %v258
    %1003 = vmatpush.bf16.msra.mxu0 %v254
    %1004 = vmatmul.bf16.gmra.mxu0 %v446
    %v1005 = vpop.f32.mrf.mxu0
    %v1006 = vadd.f32 %v976, %v1005
    %v1007 = vpop.f32.mrf.mxu0
    %1008 = vdwg.mxu0
    %1009 = vmatpush.bf16.msra.mxu0 %v283
    %1010 = vmatpush.bf16.msra.mxu0 %v279
    %1011 = vmatpush.bf16.msra.mxu0 %v275
    %1012 = vmatpush.bf16.msra.mxu0 %v271
    %1013 = vmatpush.bf16.msra.mxu0 %v267
    %1014 = vmatpush.bf16.msra.mxu0 %v263
    %1015 = vmatpush.bf16.msra.mxu0 %v259
    %1016 = vmatpush.bf16.msra.mxu0 %v255
    %1017 = vmatmul.bf16.gmra.mxu0 %v446
    %v1018 = vpop.f32.mrf.mxu0
    %v1019 = vadd.f32 %v977, %v1018
    %v1020 = vpop.f32.mrf.mxu0
    %1021 = vdwg.mxu0
    %1022 = vmatpush.bf16.msra.mxu0 %v284
    %1023 = vmatpush.bf16.msra.mxu0 %v280
    %1024 = vmatpush.bf16.msra.mxu0 %v276
    %1025 = vmatpush.bf16.msra.mxu0 %v272
    %1026 = vmatpush.bf16.msra.mxu0 %v268
    %1027 = vmatpush.bf16.msra.mxu0 %v264
    %1028 = vmatpush.bf16.msra.mxu0 %v260
    %1029 = vmatpush.bf16.msra.mxu0 %v256
    %1030 = vmatmul.bf16.gmra.mxu0 %v446
    %v1031 = vpop.f32.mrf.mxu0
    %v1032 = vadd.f32 %v978, %v1031
    %v1033 = vpop.f32.mrf.mxu0
    %1034 = vdwg.mxu0
    %v1035 = vadd.f32 %v993, %v74
    %v1036 = vadd.f32 %v1006, %v75
    %v1037 = vadd.f32 %v1019, %v76
    %v1038 = vadd.f32 %v1032, %v77
    %v1039 = vxor.u32 %v1035, 2147483648
    %v1040 = vxor.u32 %v1036, 2147483648
    %v1041 = vxor.u32 %v1037, 2147483648
    %v1042 = vmul.f32 %v1039, 1.442695
    %v1043 = vpow.pop %v1042
    %v1044 = vmul.f32 %v1040, 1.442695
    %v1045 = vpow.pop %v1044
    %v1046 = vmul.f32 %v1041, 1.442695
    %v1047 = vpow.pop %v1046
    %v1048 = vadd.f32 %v1043, 1.0
    %v1049 = vadd.f32 %v1045, 1.0
    %v1050 = vadd.f32 %v1047, 1.0
    %v1051 = vrcp.pop %v1048
    %v1052 = vmul.f32 %v1048, %v1051
    %v1053 = vsub.f32 1.0, %v1052
    %v1054 = vmul.f32 %v1051, %v1053
    %v1055 = vadd.f32 %v1051, %v1054
    %vm1056 = vweird.f32 %v1048
    %vm1057 = vweird.f32 %v1051
    %vm1058 = vmor %vm1056, %vm1057
    %v1059 = vsel %vm1058, %v1051, %v1055
    %v1060 = vand.u32 2147483647, %v1048
    %vm1061 = vcmp.eq.f32.partialorder %v1060, 8.507059e+37
    %v1062 = vand.u32 %v1048, 2147483648
    %v1063 = vor.u32 1.1754944e-38, %v1062
    %v1064 = vsel %vm1061, %v1063, %v1059
    %v1065 = vmul.f32 1.0, %v1064
    %v1066 = vrcp.pop %v1049
    %v1067 = vmul.f32 %v1049, %v1066
    %v1068 = vsub.f32 1.0, %v1067
    %v1069 = vmul.f32 %v1066, %v1068
    %v1070 = vadd.f32 %v1066, %v1069
    %vm1071 = vweird.f32 %v1049
    %vm1072 = vweird.f32 %v1066
    %vm1073 = vmor %vm1071, %vm1072
    %v1074 = vsel %vm1073, %v1066, %v1070
    %v1075 = vand.u32 2147483647, %v1049
    %vm1076 = vcmp.eq.f32.partialorder %v1075, 8.507059e+37
    %v1077 = vand.u32 %v1049, 2147483648
    %v1078 = vor.u32 1.1754944e-38, %v1077
    %v1079 = vsel %vm1076, %v1078, %v1074
    %v1080 = vmul.f32 1.0, %v1079
    %v1081 = vrcp.pop %v1050
    %v1082 = vmul.f32 %v1050, %v1081
    %v1083 = vsub.f32 1.0, %v1082
    %v1084 = vmul.f32 %v1081, %v1083
    %v1085 = vadd.f32 %v1081, %v1084
    %vm1086 = vweird.f32 %v1050
    %vm1087 = vweird.f32 %v1081
    %vm1088 = vmor %vm1086, %vm1087
    %v1089 = vsel %vm1088, %v1081, %v1085
    %v1090 = vand.u32 2147483647, %v1050
    %vm1091 = vcmp.eq.f32.partialorder %v1090, 8.507059e+37
    %v1092 = vand.u32 %v1050, 2147483648
    %v1093 = vor.u32 1.1754944e-38, %v1092
    %v1094 = vsel %vm1091, %v1093, %v1089
    %v1095 = vmul.f32 1.0, %v1094
    %v1096 = vtanh.pop %v1038
    %v1097 = vmul.f32 %v1080, %v443
    %v1098 = vmul.f32 %v1065, %v1096
    %v1099 = vadd.f32 %v1097, %v1098
    %v1100 = vtanh.pop %v1099
    %v1101 = vmul.f32 %v1095, %v1100
    %v1102 = vpack.c.bf16 %v1101, %v1101
    %1103 = vmatpush.bf16.msra.mxu0 %v603
    %1104 = vmatpush.bf16.msra.mxu0 %v599
    %1105 = vmatpush.bf16.msra.mxu0 %v595
    %1106 = vmatpush.bf16.msra.mxu0 %v591
    %1107 = vmatpush.bf16.msra.mxu0 %v587
    %1108 = vmatpush.bf16.msra.mxu0 %v583
    %1109 = vmatpush.bf16.msra.mxu0 %v579
    %1110 = vmatpush.bf16.msra.mxu0 %v575
    %1111 = vmatmul.bf16.gmra.mxu0 %v1102
    %v1112 = vpop.f32.mrf.mxu0
    %v1113 = vadd.f32 0.0, %v1112
    %v1114 = vpop.f32.mrf.mxu0
    %1115 = vdwg.mxu0
    %1116 = vmatpush.bf16.msra.mxu0 %v604
    %1117 = vmatpush.bf16.msra.mxu0 %v600
    %1118 = vmatpush.bf16.msra.mxu0 %v596
    %1119 = vmatpush.bf16.msra.mxu0 %v592
    %1120 = vmatpush.bf16.msra.mxu0 %v588
    %1121 = vmatpush.bf16.msra.mxu0 %v584
    %1122 = vmatpush.bf16.msra.mxu0 %v580
    %1123 = vmatpush.bf16.msra.mxu0 %v576
    %1124 = vmatmul.bf16.gmra.mxu0 %v1102
    %v1125 = vpop.f32.mrf.mxu0
    %v1126 = vadd.f32 0.0, %v1125
    %v1127 = vpop.f32.mrf.mxu0
    %1128 = vdwg.mxu0
    %1129 = vmatpush.bf16.msra.mxu0 %v605
    %1130 = vmatpush.bf16.msra.mxu0 %v601
    %1131 = vmatpush.bf16.msra.mxu0 %v597
    %1132 = vmatpush.bf16.msra.mxu0 %v593
    %1133 = vmatpush.bf16.msra.mxu0 %v589
    %1134 = vmatpush.bf16.msra.mxu0 %v585
    %1135 = vmatpush.bf16.msra.mxu0 %v581
    %1136 = vmatpush.bf16.msra.mxu0 %v577
    %1137 = vmatmul.bf16.gmra.mxu0 %v1102
    %v1138 = vpop.f32.mrf.mxu0
    %v1139 = vadd.f32 0.0, %v1138
    %v1140 = vpop.f32.mrf.mxu0
    %1141 = vdwg.mxu0
    %1142 = vmatpush.bf16.msra.mxu0 %v606
    %1143 = vmatpush.bf16.msra.mxu0 %v602
    %1144 = vmatpush.bf16.msra.mxu0 %v598
    %1145 = vmatpush.bf16.msra.mxu0 %v594
    %1146 = vmatpush.bf16.msra.mxu0 %v590
    %1147 = vmatpush.bf16.msra.mxu0 %v586
    %1148 = vmatpush.bf16.msra.mxu0 %v582
    %1149 = vmatpush.bf16.msra.mxu0 %v578
    %1150 = vmatmul.bf16.gmra.mxu0 %v1102
    %v1151 = vpop.f32.mrf.mxu0
    %v1152 = vadd.f32 0.0, %v1151
    %v1153 = vpop.f32.mrf.mxu0
    %1154 = vdwg.mxu0
    %1155 = vmatpush.bf16.msra.mxu0 %v815
    %1156 = vmatpush.bf16.msra.mxu0 %v811
    %1157 = vmatpush.bf16.msra.mxu0 %v807
    %1158 = vmatpush.bf16.msra.mxu0 %v803
    %1159 = vmatpush.bf16.msra.mxu0 %v799
    %1160 = vmatpush.bf16.msra.mxu0 %v795
    %1161 = vmatpush.bf16.msra.mxu0 %v791
    %1162 = vmatpush.bf16.msra.mxu0 %v787
    %1163 = vmatmul.bf16.gmra.mxu0 %v970
    %v1164 = vpop.f32.mrf.mxu0
    %v1165 = vadd.f32 %v1113, %v1164
    %v1166 = vpop.f32.mrf.mxu0
    %1167 = vdwg.mxu0
    %1168 = vmatpush.bf16.msra.mxu0 %v816
    %1169 = vmatpush.bf16.msra.mxu0 %v812
    %1170 = vmatpush.bf16.msra.mxu0 %v808
    %1171 = vmatpush.bf16.msra.mxu0 %v804
    %1172 = vmatpush.bf16.msra.mxu0 %v800
    %1173 = vmatpush.bf16.msra.mxu0 %v796
    %1174 = vmatpush.bf16.msra.mxu0 %v792
    %1175 = vmatpush.bf16.msra.mxu0 %v788
    %1176 = vmatmul.bf16.gmra.mxu0 %v970
    %v1177 = vpop.f32.mrf.mxu0
    %v1178 = vadd.f32 %v1126, %v1177
    %v1179 = vpop.f32.mrf.mxu0
    %1180 = vdwg.mxu0
    %1181 = vmatpush.bf16.msra.mxu0 %v817
    %1182 = vmatpush.bf16.msra.mxu0 %v813
    %1183 = vmatpush.bf16.msra.mxu0 %v809
    %1184 = vmatpush.bf16.msra.mxu0 %v805
    %1185 = vmatpush.bf16.msra.mxu0 %v801
    %1186 = vmatpush.bf16.msra.mxu0 %v797
    %1187 = vmatpush.bf16.msra.mxu0 %v793
    %1188 = vmatpush.bf16.msra.mxu0 %v789
    %1189 = vmatmul.bf16.gmra.mxu0 %v970
    %v1190 = vpop.f32.mrf.mxu0
    %v1191 = vadd.f32 %v1139, %v1190
    %v1192 = vpop.f32.mrf.mxu0
    %1193 = vdwg.mxu0
    %1194 = vmatpush.bf16.msra.mxu0 %v818
    %1195 = vmatpush.bf16.msra.mxu0 %v814
    %1196 = vmatpush.bf16.msra.mxu0 %v810
    %1197 = vmatpush.bf16.msra.mxu0 %v806
    %1198 = vmatpush.bf16.msra.mxu0 %v802
    %1199 = vmatpush.bf16.msra.mxu0 %v798
    %1200 = vmatpush.bf16.msra.mxu0 %v794
    %1201 = vmatpush.bf16.msra.mxu0 %v790
    %1202 = vmatmul.bf16.gmra.mxu0 %v970
    %v1203 = vpop.f32.mrf.mxu0
    %v1204 = vadd.f32 %v1152, %v1203
    %v1205 = vpop.f32.mrf.mxu0
    %1206 = vdwg.mxu0
    %v1207 = vadd.f32 %v1165, %v84
    %v1208 = vadd.f32 %v1178, %v85
    %v1209 = vadd.f32 %v1191, %v86
    %v1210 = vadd.f32 %v1204, %v87
    %v1211 = vxor.u32 %v1207, 2147483648
    %v1212 = vxor.u32 %v1208, 2147483648
    %v1213 = vxor.u32 %v1209, 2147483648
    %v1214 = vmul.f32 %v1211, 1.442695
    %v1215 = vpow.pop %v1214
    %v1216 = vmul.f32 %v1212, 1.442695
    %v1217 = vpow.pop %v1216
    %v1218 = vmul.f32 %v1213, 1.442695
    %v1219 = vpow.pop %v1218
    %v1220 = vadd.f32 %v1215, 1.0
    %v1221 = vadd.f32 %v1217, 1.0
    %v1222 = vadd.f32 %v1219, 1.0
    %v1223 = vrcp.pop %v1220
    %v1224 = vmul.f32 %v1220, %v1223
    %v1225 = vsub.f32 1.0, %v1224
    %v1226 = vmul.f32 %v1223, %v1225
    %v1227 = vadd.f32 %v1223, %v1226
    %vm1228 = vweird.f32 %v1220
    %vm1229 = vweird.f32 %v1223
    %vm1230 = vmor %vm1228, %vm1229
    %v1231 = vsel %vm1230, %v1223, %v1227
    %v1232 = vand.u32 2147483647, %v1220
    %vm1233 = vcmp.eq.f32.partialorder %v1232, 8.507059e+37
    %v1234 = vand.u32 %v1220, 2147483648
    %v1235 = vor.u32 1.1754944e-38, %v1234
    %v1236 = vsel %vm1233, %v1235, %v1231
    %v1237 = vmul.f32 1.0, %v1236
    %v1238 = vrcp.pop %v1221
    %v1239 = vmul.f32 %v1221, %v1238
    %v1240 = vsub.f32 1.0, %v1239
    %v1241 = vmul.f32 %v1238, %v1240
    %v1242 = vadd.f32 %v1238, %v1241
    %vm1243 = vweird.f32 %v1221
    %vm1244 = vweird.f32 %v1238
    %vm1245 = vmor %vm1243, %vm1244
    %v1246 = vsel %vm1245, %v1238, %v1242
    %v1247 = vand.u32 2147483647, %v1221
    %vm1248 = vcmp.eq.f32.partialorder %v1247, 8.507059e+37
    %v1249 = vand.u32 %v1221, 2147483648
    %v1250 = vor.u32 1.1754944e-38, %v1249
    %v1251 = vsel %vm1248, %v1250, %v1246
    %v1252 = vmul.f32 1.0, %v1251
    %v1253 = vrcp.pop %v1222
    %v1254 = vmul.f32 %v1222, %v1253
    %v1255 = vsub.f32 1.0, %v1254
    %v1256 = vmul.f32 %v1253, %v1255
    %v1257 = vadd.f32 %v1253, %v1256
    %vm1258 = vweird.f32 %v1222
    %vm1259 = vweird.f32 %v1253
    %vm1260 = vmor %vm1258, %vm1259
    %v1261 = vsel %vm1260, %v1253, %v1257
    %v1262 = vand.u32 2147483647, %v1222
    %vm1263 = vcmp.eq.f32.partialorder %v1262, 8.507059e+37
    %v1264 = vand.u32 %v1222, 2147483648
    %v1265 = vor.u32 1.1754944e-38, %v1264
    %v1266 = vsel %vm1263, %v1265, %v1261
    %v1267 = vmul.f32 1.0, %v1266
    %v1268 = vtanh.pop %v1210
    %v1269 = vmul.f32 %v1252, %v967
    %v1270 = vmul.f32 %v1237, %v1268
    %v1271 = vadd.f32 %v1269, %v1270
    %v1272 = vtanh.pop %v1271
    %v1273 = vmul.f32 %v1267, %v1272
    %v1274 = vpack.c.bf16 %v1273, %v1273
    %s1275 = scalar_lea.vmem %s0, 16
    %v1276 = vld [vmem:[%s1275] sm:$0xff]
    %1278 = vst [vmem:[#allocation1] ss:$4 sm:$0xff] %v1276
    %v1279 = vld.sshfl [vmem:[#allocation1] sm:$0xff pattern:$0x73625140]
    %v1280 = vld.sshfl [vmem:[#allocation1 + $0x8] sm:$0xff pattern:$0x73625140]
    %v1281 = vld.sshfl [vmem:[#allocation1 + $0x10] sm:$0xff pattern:$0x73625140]
    %v1282 = vld.sshfl [vmem:[#allocation1 + $0x18] sm:$0xff pattern:$0x73625140]
    %1287 = vmatpush.bf16.msra.mxu0 %v281
    %1288 = vmatpush.bf16.msra.mxu0 %v277
    %1289 = vmatpush.bf16.msra.mxu0 %v273
    %1290 = vmatpush.bf16.msra.mxu0 %v269
    %1291 = vmatpush.bf16.msra.mxu0 %v265
    %1292 = vmatpush.bf16.msra.mxu0 %v261
    %1293 = vmatpush.bf16.msra.mxu0 %v257
    %1294 = vmatpush.bf16.msra.mxu0 %v253
    %1295 = vmatmul.bf16.gmra.mxu0 %v1102
    %v1296 = vpop.f32.mrf.mxu0
    %v1297 = vadd.f32 %v1279, %v1296
    %v1298 = vpop.f32.mrf.mxu0
    %1299 = vdwg.mxu0
    %1300 = vmatpush.bf16.msra.mxu0 %v282
    %1301 = vmatpush.bf16.msra.mxu0 %v278
    %1302 = vmatpush.bf16.msra.mxu0 %v274
    %1303 = vmatpush.bf16.msra.mxu0 %v270
    %1304 = vmatpush.bf16.msra.mxu0 %v266
    %1305 = vmatpush.bf16.msra.mxu0 %v262
    %1306 = vmatpush.bf16.msra.mxu0 %v258
    %1307 = vmatpush.bf16.msra.mxu0 %v254
    %1308 = vmatmul.bf16.gmra.mxu0 %v1102
    %v1309 = vpop.f32.mrf.mxu0
    %v1310 = vadd.f32 %v1280, %v1309
    %v1311 = vpop.f32.mrf.mxu0
    %1312 = vdwg.mxu0
    %1313 = vmatpush.bf16.msra.mxu0 %v283
    %1314 = vmatpush.bf16.msra.mxu0 %v279
    %1315 = vmatpush.bf16.msra.mxu0 %v275
    %1316 = vmatpush.bf16.msra.mxu0 %v271
    %1317 = vmatpush.bf16.msra.mxu0 %v267
    %1318 = vmatpush.bf16.msra.mxu0 %v263
    %1319 = vmatpush.bf16.msra.mxu0 %v259
    %1320 = vmatpush.bf16.msra.mxu0 %v255
    %1321 = vmatmul.bf16.gmra.mxu0 %v1102
    %v1322 = vpop.f32.mrf.mxu0
    %v1323 = vadd.f32 %v1281, %v1322
    %v1324 = vpop.f32.mrf.mxu0
    %1325 = vdwg.mxu0
    %1326 = vmatpush.bf16.msra.mxu0 %v284
    %1327 = vmatpush.bf16.msra.mxu0 %v280
    %1328 = vmatpush.bf16.msra.mxu0 %v276
    %1329 = vmatpush.bf16.msra.mxu0 %v272
    %1330 = vmatpush.bf16.msra.mxu0 %v268
    %1331 = vmatpush.bf16.msra.mxu0 %v264
    %1332 = vmatpush.bf16.msra.mxu0 %v260
    %1333 = vmatpush.bf16.msra.mxu0 %v256
    %1334 = vmatmul.bf16.gmra.mxu0 %v1102
    %v1335 = vpop.f32.mrf.mxu0
    %v1336 = vadd.f32 %v1282, %v1335
    %v1337 = vpop.f32.mrf.mxu0
    %1338 = vdwg.mxu0
    %v1339 = vadd.f32 %v1297, %v74
    %v1340 = vadd.f32 %v1310, %v75
    %v1341 = vadd.f32 %v1323, %v76
    %v1342 = vadd.f32 %v1336, %v77
    %v1343 = vxor.u32 %v1339, 2147483648
    %v1344 = vxor.u32 %v1340, 2147483648
    %v1345 = vxor.u32 %v1341, 2147483648
    %v1346 = vmul.f32 %v1343, 1.442695
    %v1347 = vpow.pop %v1346
    %v1348 = vmul.f32 %v1344, 1.442695
    %v1349 = vpow.pop %v1348
    %v1350 = vmul.f32 %v1345, 1.442695
    %v1351 = vpow.pop %v1350
    %v1352 = vadd.f32 %v1347, 1.0
    %v1353 = vadd.f32 %v1349, 1.0
    %v1354 = vadd.f32 %v1351, 1.0
    %v1355 = vrcp.pop %v1352
    %v1356 = vmul.f32 %v1352, %v1355
    %v1357 = vsub.f32 1.0, %v1356
    %v1358 = vmul.f32 %v1355, %v1357
    %v1359 = vadd.f32 %v1355, %v1358
    %vm1360 = vweird.f32 %v1352
    %vm1361 = vweird.f32 %v1355
    %vm1362 = vmor %vm1360, %vm1361
    %v1363 = vsel %vm1362, %v1355, %v1359
    %v1364 = vand.u32 2147483647, %v1352
    %vm1365 = vcmp.eq.f32.partialorder %v1364, 8.507059e+37
    %v1366 = vand.u32 %v1352, 2147483648
    %v1367 = vor.u32 1.1754944e-38, %v1366
    %v1368 = vsel %vm1365, %v1367, %v1363
    %v1369 = vmul.f32 1.0, %v1368
    %v1370 = vrcp.pop %v1353
    %v1371 = vmul.f32 %v1353, %v1370
    %v1372 = vsub.f32 1.0, %v1371
    %v1373 = vmul.f32 %v1370, %v1372
    %v1374 = vadd.f32 %v1370, %v1373
    %vm1375 = vweird.f32 %v1353
    %vm1376 = vweird.f32 %v1370
    %vm1377 = vmor %vm1375, %vm1376
    %v1378 = vsel %vm1377, %v1370, %v1374
    %v1379 = vand.u32 2147483647, %v1353
    %vm1380 = vcmp.eq.f32.partialorder %v1379, 8.507059e+37
    %v1381 = vand.u32 %v1353, 2147483648
    %v1382 = vor.u32 1.1754944e-38, %v1381
    %v1383 = vsel %vm1380, %v1382, %v1378
    %v1384 = vmul.f32 1.0, %v1383
    %v1385 = vrcp.pop %v1354
    %v1386 = vmul.f32 %v1354, %v1385
    %v1387 = vsub.f32 1.0, %v1386
    %v1388 = vmul.f32 %v1385, %v1387
    %v1389 = vadd.f32 %v1385, %v1388
    %vm1390 = vweird.f32 %v1354
    %vm1391 = vweird.f32 %v1385
    %vm1392 = vmor %vm1390, %vm1391
    %v1393 = vsel %vm1392, %v1385, %v1389
    %v1394 = vand.u32 2147483647, %v1354
    %vm1395 = vcmp.eq.f32.partialorder %v1394, 8.507059e+37
    %v1396 = vand.u32 %v1354, 2147483648
    %v1397 = vor.u32 1.1754944e-38, %v1396
    %v1398 = vsel %vm1395, %v1397, %v1393
    %v1399 = vmul.f32 1.0, %v1398
    %v1400 = vtanh.pop %v1342
    %v1401 = vmul.f32 %v1384, %v1099
    %v1402 = vmul.f32 %v1369, %v1400
    %v1403 = vadd.f32 %v1401, %v1402
    %v1404 = vtanh.pop %v1403
    %v1405 = vmul.f32 %v1399, %v1404
    %v1406 = vpack.c.bf16 %v1405, %v1405
    %1407 = vmatpush.bf16.msra.mxu0 %v603
    %1408 = vmatpush.bf16.msra.mxu0 %v599
    %1409 = vmatpush.bf16.msra.mxu0 %v595
    %1410 = vmatpush.bf16.msra.mxu0 %v591
    %1411 = vmatpush.bf16.msra.mxu0 %v587
    %1412 = vmatpush.bf16.msra.mxu0 %v583
    %1413 = vmatpush.bf16.msra.mxu0 %v579
    %1414 = vmatpush.bf16.msra.mxu0 %v575
    %1415 = vmatmul.bf16.gmra.mxu0 %v1406
    %v1416 = vpop.f32.mrf.mxu0
    %v1417 = vadd.f32 0.0, %v1416
    %v1418 = vpop.f32.mrf.mxu0
    %1419 = vdwg.mxu0
    %1420 = vmatpush.bf16.msra.mxu0 %v604
    %1421 = vmatpush.bf16.msra.mxu0 %v600
    %1422 = vmatpush.bf16.msra.mxu0 %v596
    %1423 = vmatpush.bf16.msra.mxu0 %v592
    %1424 = vmatpush.bf16.msra.mxu0 %v588
    %1425 = vmatpush.bf16.msra.mxu0 %v584
    %1426 = vmatpush.bf16.msra.mxu0 %v580
    %1427 = vmatpush.bf16.msra.mxu0 %v576
    %1428 = vmatmul.bf16.gmra.mxu0 %v1406
    %v1429 = vpop.f32.mrf.mxu0
    %v1430 = vadd.f32 0.0, %v1429
    %v1431 = vpop.f32.mrf.mxu0
    %1432 = vdwg.mxu0
    %1433 = vmatpush.bf16.msra.mxu0 %v605
    %1434 = vmatpush.bf16.msra.mxu0 %v601
    %1435 = vmatpush.bf16.msra.mxu0 %v597
    %1436 = vmatpush.bf16.msra.mxu0 %v593
    %1437 = vmatpush.bf16.msra.mxu0 %v589
    %1438 = vmatpush.bf16.msra.mxu0 %v585
    %1439 = vmatpush.bf16.msra.mxu0 %v581
    %1440 = vmatpush.bf16.msra.mxu0 %v577
    %1441 = vmatmul.bf16.gmra.mxu0 %v1406
    %v1442 = vpop.f32.mrf.mxu0
    %v1443 = vadd.f32 0.0, %v1442
    %v1444 = vpop.f32.mrf.mxu0
    %1445 = vdwg.mxu0
    %1446 = vmatpush.bf16.msra.mxu0 %v606
    %1447 = vmatpush.bf16.msra.mxu0 %v602
    %1448 = vmatpush.bf16.msra.mxu0 %v598
    %1449 = vmatpush.bf16.msra.mxu0 %v594
    %1450 = vmatpush.bf16.msra.mxu0 %v590
    %1451 = vmatpush.bf16.msra.mxu0 %v586
    %1452 = vmatpush.bf16.msra.mxu0 %v582
    %1453 = vmatpush.bf16.msra.mxu0 %v578
    %1454 = vmatmul.bf16.gmra.mxu0 %v1406
    %v1455 = vpop.f32.mrf.mxu0
    %v1456 = vadd.f32 0.0, %v1455
    %v1457 = vpop.f32.mrf.mxu0
    %1458 = vdwg.mxu0
    %1459 = vmatpush.bf16.msra.mxu0 %v815
    %1460 = vmatpush.bf16.msra.mxu0 %v811
    %1461 = vmatpush.bf16.msra.mxu0 %v807
    %1462 = vmatpush.bf16.msra.mxu0 %v803
    %1463 = vmatpush.bf16.msra.mxu0 %v799
    %1464 = vmatpush.bf16.msra.mxu0 %v795
    %1465 = vmatpush.bf16.msra.mxu0 %v791
    %1466 = vmatpush.bf16.msra.mxu0 %v787
    %1467 = vmatmul.bf16.gmra.mxu0 %v1274
    %v1468 = vpop.f32.mrf.mxu0
    %v1469 = vadd.f32 %v1417, %v1468
    %v1470 = vpop.f32.mrf.mxu0
    %1471 = vdwg.mxu0
    %1472 = vmatpush.bf16.msra.mxu0 %v816
    %1473 = vmatpush.bf16.msra.mxu0 %v812
    %1474 = vmatpush.bf16.msra.mxu0 %v808
    %1475 = vmatpush.bf16.msra.mxu0 %v804
    %1476 = vmatpush.bf16.msra.mxu0 %v800
    %1477 = vmatpush.bf16.msra.mxu0 %v796
    %1478 = vmatpush.bf16.msra.mxu0 %v792
    %1479 = vmatpush.bf16.msra.mxu0 %v788
    %1480 = vmatmul.bf16.gmra.mxu0 %v1274
    %v1481 = vpop.f32.mrf.mxu0
    %v1482 = vadd.f32 %v1430, %v1481
    %v1483 = vpop.f32.mrf.mxu0
    %1484 = vdwg.mxu0
    %1485 = vmatpush.bf16.msra.mxu0 %v817
    %1486 = vmatpush.bf16.msra.mxu0 %v813
    %1487 = vmatpush.bf16.msra.mxu0 %v809
    %1488 = vmatpush.bf16.msra.mxu0 %v805
    %1489 = vmatpush.bf16.msra.mxu0 %v801
    %1490 = vmatpush.bf16.msra.mxu0 %v797
    %1491 = vmatpush.bf16.msra.mxu0 %v793
    %1492 = vmatpush.bf16.msra.mxu0 %v789
    %1493 = vmatmul.bf16.gmra.mxu0 %v1274
    %v1494 = vpop.f32.mrf.mxu0
    %v1495 = vadd.f32 %v1443, %v1494
    %v1496 = vpop.f32.mrf.mxu0
    %1497 = vdwg.mxu0
    %1498 = vmatpush.bf16.msra.mxu0 %v818
    %1499 = vmatpush.bf16.msra.mxu0 %v814
    %1500 = vmatpush.bf16.msra.mxu0 %v810
    %1501 = vmatpush.bf16.msra.mxu0 %v806
    %1502 = vmatpush.bf16.msra.mxu0 %v802
    %1503 = vmatpush.bf16.msra.mxu0 %v798
    %1504 = vmatpush.bf16.msra.mxu0 %v794
    %1505 = vmatpush.bf16.msra.mxu0 %v790
    %1506 = vmatmul.bf16.gmra.mxu0 %v1274
    %v1507 = vpop.f32.mrf.mxu0
    %v1508 = vadd.f32 %v1456, %v1507
    %v1509 = vpop.f32.mrf.mxu0
    %1510 = vdwg.mxu0
    %v1511 = vadd.f32 %v1469, %v84
    %v1512 = vadd.f32 %v1482, %v85
    %v1513 = vadd.f32 %v1495, %v86
    %v1514 = vadd.f32 %v1508, %v87
    %v1515 = vxor.u32 %v1511, 2147483648
    %v1516 = vxor.u32 %v1512, 2147483648
    %v1517 = vxor.u32 %v1513, 2147483648
    %v1518 = vmul.f32 %v1515, 1.442695
    %v1519 = vpow.pop %v1518
    %v1520 = vmul.f32 %v1516, 1.442695
    %v1521 = vpow.pop %v1520
    %v1522 = vmul.f32 %v1517, 1.442695
    %v1523 = vpow.pop %v1522
    %v1524 = vadd.f32 %v1519, 1.0
    %v1525 = vadd.f32 %v1521, 1.0
    %v1526 = vadd.f32 %v1523, 1.0
    %v1527 = vrcp.pop %v1524
    %v1528 = vmul.f32 %v1524, %v1527
    %v1529 = vsub.f32 1.0, %v1528
    %v1530 = vmul.f32 %v1527, %v1529
    %v1531 = vadd.f32 %v1527, %v1530
    %vm1532 = vweird.f32 %v1524
    %vm1533 = vweird.f32 %v1527
    %vm1534 = vmor %vm1532, %vm1533
    %v1535 = vsel %vm1534, %v1527, %v1531
    %v1536 = vand.u32 2147483647, %v1524
    %vm1537 = vcmp.eq.f32.partialorder %v1536, 8.507059e+37
    %v1538 = vand.u32 %v1524, 2147483648
    %v1539 = vor.u32 1.1754944e-38, %v1538
    %v1540 = vsel %vm1537, %v1539, %v1535
    %v1541 = vmul.f32 1.0, %v1540
    %v1542 = vrcp.pop %v1525
    %v1543 = vmul.f32 %v1525, %v1542
    %v1544 = vsub.f32 1.0, %v1543
    %v1545 = vmul.f32 %v1542, %v1544
    %v1546 = vadd.f32 %v1542, %v1545
    %vm1547 = vweird.f32 %v1525
    %vm1548 = vweird.f32 %v1542
    %vm1549 = vmor %vm1547, %vm1548
    %v1550 = vsel %vm1549, %v1542, %v1546
    %v1551 = vand.u32 2147483647, %v1525
    %vm1552 = vcmp.eq.f32.partialorder %v1551, 8.507059e+37
    %v1553 = vand.u32 %v1525, 2147483648
    %v1554 = vor.u32 1.1754944e-38, %v1553
    %v1555 = vsel %vm1552, %v1554, %v1550
    %v1556 = vmul.f32 1.0, %v1555
    %v1557 = vrcp.pop %v1526
    %v1558 = vmul.f32 %v1526, %v1557
    %v1559 = vsub.f32 1.0, %v1558
    %v1560 = vmul.f32 %v1557, %v1559
    %v1561 = vadd.f32 %v1557, %v1560
    %vm1562 = vweird.f32 %v1526
    %vm1563 = vweird.f32 %v1557
    %vm1564 = vmor %vm1562, %vm1563
    %v1565 = vsel %vm1564, %v1557, %v1561
    %v1566 = vand.u32 2147483647, %v1526
    %vm1567 = vcmp.eq.f32.partialorder %v1566, 8.507059e+37
    %v1568 = vand.u32 %v1526, 2147483648
    %v1569 = vor.u32 1.1754944e-38, %v1568
    %v1570 = vsel %vm1567, %v1569, %v1565
    %v1571 = vmul.f32 1.0, %v1570
    %v1572 = vtanh.pop %v1514
    %v1573 = vmul.f32 %v1556, %v1271
    %v1574 = vmul.f32 %v1541, %v1572
    %v1575 = vadd.f32 %v1573, %v1574
    %v1576 = vtanh.pop %v1575
    %v1577 = vmul.f32 %v1571, %v1576
    %v1578 = vpack.c.bf16 %v1577, %v1577
    %s1579 = scalar_lea.vmem %s0, 24
    %v1580 = vld [vmem:[%s1579] sm:$0xff]
    %1582 = vst [vmem:[#allocation1] ss:$4 sm:$0xff] %v1580
    %v1583 = vld.sshfl [vmem:[#allocation1] sm:$0xff pattern:$0x73625140]
    %v1584 = vld.sshfl [vmem:[#allocation1 + $0x8] sm:$0xff pattern:$0x73625140]
    %v1585 = vld.sshfl [vmem:[#allocation1 + $0x10] sm:$0xff pattern:$0x73625140]
    %v1586 = vld.sshfl [vmem:[#allocation1 + $0x18] sm:$0xff pattern:$0x73625140]
    %1591 = vmatpush.bf16.msra.mxu0 %v281
    %1592 = vmatpush.bf16.msra.mxu0 %v277
    %1593 = vmatpush.bf16.msra.mxu0 %v273
    %1594 = vmatpush.bf16.msra.mxu0 %v269
    %1595 = vmatpush.bf16.msra.mxu0 %v265
    %1596 = vmatpush.bf16.msra.mxu0 %v261
    %1597 = vmatpush.bf16.msra.mxu0 %v257
    %1598 = vmatpush.bf16.msra.mxu0 %v253
    %1599 = vmatmul.bf16.gmra.mxu0 %v1406
    %v1600 = vpop.f32.mrf.mxu0
    %v1601 = vadd.f32 %v1583, %v1600
    %v1602 = vpop.f32.mrf.mxu0
    %1603 = vdwg.mxu0
    %1604 = vmatpush.bf16.msra.mxu0 %v282
    %1605 = vmatpush.bf16.msra.mxu0 %v278
    %1606 = vmatpush.bf16.msra.mxu0 %v274
    %1607 = vmatpush.bf16.msra.mxu0 %v270
    %1608 = vmatpush.bf16.msra.mxu0 %v266
    %1609 = vmatpush.bf16.msra.mxu0 %v262
    %1610 = vmatpush.bf16.msra.mxu0 %v258
    %1611 = vmatpush.bf16.msra.mxu0 %v254
    %1612 = vmatmul.bf16.gmra.mxu0 %v1406
    %v1613 = vpop.f32.mrf.mxu0
    %v1614 = vadd.f32 %v1584, %v1613
    %v1615 = vpop.f32.mrf.mxu0
    %1616 = vdwg.mxu0
    %1617 = vmatpush.bf16.msra.mxu0 %v283
    %1618 = vmatpush.bf16.msra.mxu0 %v279
    %1619 = vmatpush.bf16.msra.mxu0 %v275
    %1620 = vmatpush.bf16.msra.mxu0 %v271
    %1621 = vmatpush.bf16.msra.mxu0 %v267
    %1622 = vmatpush.bf16.msra.mxu0 %v263
    %1623 = vmatpush.bf16.msra.mxu0 %v259
    %1624 = vmatpush.bf16.msra.mxu0 %v255
    %1625 = vmatmul.bf16.gmra.mxu0 %v1406
    %v1626 = vpop.f32.mrf.mxu0
    %v1627 = vadd.f32 %v1585, %v1626
    %v1628 = vpop.f32.mrf.mxu0
    %1629 = vdwg.mxu0
    %1630 = vmatpush.bf16.msra.mxu0 %v284
    %1631 = vmatpush.bf16.msra.mxu0 %v280
    %1632 = vmatpush.bf16.msra.mxu0 %v276
    %1633 = vmatpush.bf16.msra.mxu0 %v272
    %1634 = vmatpush.bf16.msra.mxu0 %v268
    %1635 = vmatpush.bf16.msra.mxu0 %v264
    %1636 = vmatpush.bf16.msra.mxu0 %v260
    %1637 = vmatpush.bf16.msra.mxu0 %v256
    %1638 = vmatmul.bf16.gmra.mxu0 %v1406
    %v1639 = vpop.f32.mrf.mxu0
    %v1640 = vadd.f32 %v1586, %v1639
    %v1641 = vpop.f32.mrf.mxu0
    %1642 = vdwg.mxu0
    %v1643 = vadd.f32 %v1601, %v74
    %v1644 = vadd.f32 %v1614, %v75
    %v1645 = vadd.f32 %v1627, %v76
    %v1646 = vadd.f32 %v1640, %v77
    %v1647 = vxor.u32 %v1643, 2147483648
    %v1648 = vxor.u32 %v1644, 2147483648
    %v1649 = vxor.u32 %v1645, 2147483648
    %v1650 = vmul.f32 %v1647, 1.442695
    %v1651 = vpow.pop %v1650
    %v1652 = vmul.f32 %v1648, 1.442695
    %v1653 = vpow.pop %v1652
    %v1654 = vmul.f32 %v1649, 1.442695
    %v1655 = vpow.pop %v1654
    %v1656 = vadd.f32 %v1651, 1.0
    %v1657 = vadd.f32 %v1653, 1.0
    %v1658 = vadd.f32 %v1655, 1.0
    %v1659 = vrcp.pop %v1656
    %v1660 = vmul.f32 %v1656, %v1659
    %v1661 = vsub.f32 1.0, %v1660
    %v1662 = vmul.f32 %v1659, %v1661
    %v1663 = vadd.f32 %v1659, %v1662
    %vm1664 = vweird.f32 %v1656
    %vm1665 = vweird.f32 %v1659
    %vm1666 = vmor %vm1664, %vm1665
    %v1667 = vsel %vm1666, %v1659, %v1663
    %v1668 = vand.u32 2147483647, %v1656
    %vm1669 = vcmp.eq.f32.partialorder %v1668, 8.507059e+37
    %v1670 = vand.u32 %v1656, 2147483648
    %v1671 = vor.u32 1.1754944e-38, %v1670
    %v1672 = vsel %vm1669, %v1671, %v1667
    %v1673 = vmul.f32 1.0, %v1672
    %v1674 = vrcp.pop %v1657
    %v1675 = vmul.f32 %v1657, %v1674
    %v1676 = vsub.f32 1.0, %v1675
    %v1677 = vmul.f32 %v1674, %v1676
    %v1678 = vadd.f32 %v1674, %v1677
    %vm1679 = vweird.f32 %v1657
    %vm1680 = vweird.f32 %v1674
    %vm1681 = vmor %vm1679, %vm1680
    %v1682 = vsel %vm1681, %v1674, %v1678
    %v1683 = vand.u32 2147483647, %v1657
    %vm1684 = vcmp.eq.f32.partialorder %v1683, 8.507059e+37
    %v1685 = vand.u32 %v1657, 2147483648
    %v1686 = vor.u32 1.1754944e-38, %v1685
    %v1687 = vsel %vm1684, %v1686, %v1682
    %v1688 = vmul.f32 1.0, %v1687
    %v1689 = vrcp.pop %v1658
    %v1690 = vmul.f32 %v1658, %v1689
    %v1691 = vsub.f32 1.0, %v1690
    %v1692 = vmul.f32 %v1689, %v1691
    %v1693 = vadd.f32 %v1689, %v1692
    %vm1694 = vweird.f32 %v1658
    %vm1695 = vweird.f32 %v1689
    %vm1696 = vmor %vm1694, %vm1695
    %v1697 = vsel %vm1696, %v1689, %v1693
    %v1698 = vand.u32 2147483647, %v1658
    %vm1699 = vcmp.eq.f32.partialorder %v1698, 8.507059e+37
    %v1700 = vand.u32 %v1658, 2147483648
    %v1701 = vor.u32 1.1754944e-38, %v1700
    %v1702 = vsel %vm1699, %v1701, %v1697
    %v1703 = vmul.f32 1.0, %v1702
    %v1704 = vtanh.pop %v1646
    %v1705 = vmul.f32 %v1688, %v1403
    %v1706 = vmul.f32 %v1673, %v1704
    %v1707 = vadd.f32 %v1705, %v1706
    %v1708 = vtanh.pop %v1707
    %v1709 = vmul.f32 %v1703, %v1708
    %v1710 = vpack.c.bf16 %v1709, %v1709
    %1711 = vmatpush.bf16.msra.mxu0 %v603
    %1712 = vmatpush.bf16.msra.mxu0 %v599
    %1713 = vmatpush.bf16.msra.mxu0 %v595
    %1714 = vmatpush.bf16.msra.mxu0 %v591
    %1715 = vmatpush.bf16.msra.mxu0 %v587
    %1716 = vmatpush.bf16.msra.mxu0 %v583
    %1717 = vmatpush.bf16.msra.mxu0 %v579
    %1718 = vmatpush.bf16.msra.mxu0 %v575
    %1719 = vmatmul.bf16.gmra.mxu0 %v1710
    %v1720 = vpop.f32.mrf.mxu0
    %v1721 = vadd.f32 0.0, %v1720
    %v1722 = vpop.f32.mrf.mxu0
    %1723 = vdwg.mxu0
    %1724 = vmatpush.bf16.msra.mxu0 %v604
    %1725 = vmatpush.bf16.msra.mxu0 %v600
    %1726 = vmatpush.bf16.msra.mxu0 %v596
    %1727 = vmatpush.bf16.msra.mxu0 %v592
    %1728 = vmatpush.bf16.msra.mxu0 %v588
    %1729 = vmatpush.bf16.msra.mxu0 %v584
    %1730 = vmatpush.bf16.msra.mxu0 %v580
    %1731 = vmatpush.bf16.msra.mxu0 %v576
    %1732 = vmatmul.bf16.gmra.mxu0 %v1710
    %v1733 = vpop.f32.mrf.mxu0
    %v1734 = vadd.f32 0.0, %v1733
    %v1735 = vpop.f32.mrf.mxu0
    %1736 = vdwg.mxu0
    %1737 = vmatpush.bf16.msra.mxu0 %v605
    %1738 = vmatpush.bf16.msra.mxu0 %v601
    %1739 = vmatpush.bf16.msra.mxu0 %v597
    %1740 = vmatpush.bf16.msra.mxu0 %v593
    %1741 = vmatpush.bf16.msra.mxu0 %v589
    %1742 = vmatpush.bf16.msra.mxu0 %v585
    %1743 = vmatpush.bf16.msra.mxu0 %v581
    %1744 = vmatpush.bf16.msra.mxu0 %v577
    %1745 = vmatmul.bf16.gmra.mxu0 %v1710
    %v1746 = vpop.f32.mrf.mxu0
    %v1747 = vadd.f32 0.0, %v1746
    %v1748 = vpop.f32.mrf.mxu0
    %1749 = vdwg.mxu0
    %1750 = vmatpush.bf16.msra.mxu0 %v606
    %1751 = vmatpush.bf16.msra.mxu0 %v602
    %1752 = vmatpush.bf16.msra.mxu0 %v598
    %1753 = vmatpush.bf16.msra.mxu0 %v594
    %1754 = vmatpush.bf16.msra.mxu0 %v590
    %1755 = vmatpush.bf16.msra.mxu0 %v586
    %1756 = vmatpush.bf16.msra.mxu0 %v582
    %1757 = vmatpush.bf16.msra.mxu0 %v578
    %1758 = vmatmul.bf16.gmra.mxu0 %v1710
    %v1759 = vpop.f32.mrf.mxu0
    %v1760 = vadd.f32 0.0, %v1759
    %v1761 = vpop.f32.mrf.mxu0
    %1762 = vdwg.mxu0
    %1763 = vmatpush.bf16.msra.mxu0 %v815
    %1764 = vmatpush.bf16.msra.mxu0 %v811
    %1765 = vmatpush.bf16.msra.mxu0 %v807
    %1766 = vmatpush.bf16.msra.mxu0 %v803
    %1767 = vmatpush.bf16.msra.mxu0 %v799
    %1768 = vmatpush.bf16.msra.mxu0 %v795
    %1769 = vmatpush.bf16.msra.mxu0 %v791
    %1770 = vmatpush.bf16.msra.mxu0 %v787
    %1771 = vmatmul.bf16.gmra.mxu0 %v1578
    %v1772 = vpop.f32.mrf.mxu0
    %v1773 = vadd.f32 %v1721, %v1772
    %v1774 = vpop.f32.mrf.mxu0
    %1775 = vdwg.mxu0
    %1776 = vmatpush.bf16.msra.mxu0 %v816
    %1777 = vmatpush.bf16.msra.mxu0 %v812
    %1778 = vmatpush.bf16.msra.mxu0 %v808
    %1779 = vmatpush.bf16.msra.mxu0 %v804
    %1780 = vmatpush.bf16.msra.mxu0 %v800
    %1781 = vmatpush.bf16.msra.mxu0 %v796
    %1782 = vmatpush.bf16.msra.mxu0 %v792
    %1783 = vmatpush.bf16.msra.mxu0 %v788
    %1784 = vmatmul.bf16.gmra.mxu0 %v1578
    %v1785 = vpop.f32.mrf.mxu0
    %v1786 = vadd.f32 %v1734, %v1785
    %v1787 = vpop.f32.mrf.mxu0
    %1788 = vdwg.mxu0
    %1789 = vmatpush.bf16.msra.mxu0 %v817
    %1790 = vmatpush.bf16.msra.mxu0 %v813
    %1791 = vmatpush.bf16.msra.mxu0 %v809
    %1792 = vmatpush.bf16.msra.mxu0 %v805
    %1793 = vmatpush.bf16.msra.mxu0 %v801
    %1794 = vmatpush.bf16.msra.mxu0 %v797
    %1795 = vmatpush.bf16.msra.mxu0 %v793
    %1796 = vmatpush.bf16.msra.mxu0 %v789
    %1797 = vmatmul.bf16.gmra.mxu0 %v1578
    %v1798 = vpop.f32.mrf.mxu0
    %v1799 = vadd.f32 %v1747, %v1798
    %v1800 = vpop.f32.mrf.mxu0
    %1801 = vdwg.mxu0
    %1802 = vmatpush.bf16.msra.mxu0 %v818
    %1803 = vmatpush.bf16.msra.mxu0 %v814
    %1804 = vmatpush.bf16.msra.mxu0 %v810
    %1805 = vmatpush.bf16.msra.mxu0 %v806
    %1806 = vmatpush.bf16.msra.mxu0 %v802
    %1807 = vmatpush.bf16.msra.mxu0 %v798
    %1808 = vmatpush.bf16.msra.mxu0 %v794
    %1809 = vmatpush.bf16.msra.mxu0 %v790
    %1810 = vmatmul.bf16.gmra.mxu0 %v1578
    %v1811 = vpop.f32.mrf.mxu0
    %v1812 = vadd.f32 %v1760, %v1811
    %v1813 = vpop.f32.mrf.mxu0
    %1814 = vdwg.mxu0
    %v1815 = vadd.f32 %v1773, %v84
    %v1816 = vadd.f32 %v1786, %v85
    %v1817 = vadd.f32 %v1799, %v86
    %v1818 = vadd.f32 %v1812, %v87
    %v1819 = vxor.u32 %v1815, 2147483648
    %v1820 = vxor.u32 %v1816, 2147483648
    %v1821 = vxor.u32 %v1817, 2147483648
    %v1822 = vmul.f32 %v1819, 1.442695
    %v1823 = vpow.pop %v1822
    %v1824 = vmul.f32 %v1820, 1.442695
    %v1825 = vpow.pop %v1824
    %v1826 = vmul.f32 %v1821, 1.442695
    %v1827 = vpow.pop %v1826
    %v1828 = vadd.f32 %v1823, 1.0
    %v1829 = vadd.f32 %v1825, 1.0
    %v1830 = vadd.f32 %v1827, 1.0
    %v1831 = vrcp.pop %v1828
    %v1832 = vmul.f32 %v1828, %v1831
    %v1833 = vsub.f32 1.0, %v1832
    %v1834 = vmul.f32 %v1831, %v1833
    %v1835 = vadd.f32 %v1831, %v1834
    %vm1836 = vweird.f32 %v1828
    %vm1837 = vweird.f32 %v1831
    %vm1838 = vmor %vm1836, %vm1837
    %v1839 = vsel %vm1838, %v1831, %v1835
    %v1840 = vand.u32 2147483647, %v1828
    %vm1841 = vcmp.eq.f32.partialorder %v1840, 8.507059e+37
    %v1842 = vand.u32 %v1828, 2147483648
    %v1843 = vor.u32 1.1754944e-38, %v1842
    %v1844 = vsel %vm1841, %v1843, %v1839
    %v1845 = vmul.f32 1.0, %v1844
    %v1846 = vrcp.pop %v1829
    %v1847 = vmul.f32 %v1829, %v1846
    %v1848 = vsub.f32 1.0, %v1847
    %v1849 = vmul.f32 %v1846, %v1848
    %v1850 = vadd.f32 %v1846, %v1849
    %vm1851 = vweird.f32 %v1829
    %vm1852 = vweird.f32 %v1846
    %vm1853 = vmor %vm1851, %vm1852
    %v1854 = vsel %vm1853, %v1846, %v1850
    %v1855 = vand.u32 2147483647, %v1829
    %vm1856 = vcmp.eq.f32.partialorder %v1855, 8.507059e+37
    %v1857 = vand.u32 %v1829, 2147483648
    %v1858 = vor.u32 1.1754944e-38, %v1857
    %v1859 = vsel %vm1856, %v1858, %v1854
    %v1860 = vmul.f32 1.0, %v1859
    %v1861 = vrcp.pop %v1830
    %v1862 = vmul.f32 %v1830, %v1861
    %v1863 = vsub.f32 1.0, %v1862
    %v1864 = vmul.f32 %v1861, %v1863
    %v1865 = vadd.f32 %v1861, %v1864
    %vm1866 = vweird.f32 %v1830
    %vm1867 = vweird.f32 %v1861
    %vm1868 = vmor %vm1866, %vm1867
    %v1869 = vsel %vm1868, %v1861, %v1865
    %v1870 = vand.u32 2147483647, %v1830
    %vm1871 = vcmp.eq.f32.partialorder %v1870, 8.507059e+37
    %v1872 = vand.u32 %v1830, 2147483648
    %v1873 = vor.u32 1.1754944e-38, %v1872
    %v1874 = vsel %vm1871, %v1873, %v1869
    %v1875 = vmul.f32 1.0, %v1874
    %v1876 = vtanh.pop %v1818
    %v1877 = vmul.f32 %v1860, %v1575
    %v1878 = vmul.f32 %v1845, %v1876
    %v1879 = vadd.f32 %v1877, %v1878
    %v1880 = vtanh.pop %v1879
    %v1881 = vmul.f32 %v1875, %v1880
    %v1882 = vpack.c.bf16 %v1881, %v1881
    %s1883 = scalar_lea.vmem %s0, 32
    %v1884 = vld [vmem:[%s1883] sm:$0xff]
    %1886 = vst [vmem:[#allocation1] ss:$4 sm:$0xff] %v1884
    %v1887 = vld.sshfl [vmem:[#allocation1] sm:$0xff pattern:$0x73625140]
    %v1888 = vld.sshfl [vmem:[#allocation1 + $0x8] sm:$0xff pattern:$0x73625140]
    %v1889 = vld.sshfl [vmem:[#allocation1 + $0x10] sm:$0xff pattern:$0x73625140]
    %v1890 = vld.sshfl [vmem:[#allocation1 + $0x18] sm:$0xff pattern:$0x73625140]
    %1895 = vmatpush.bf16.msra.mxu0 %v281
    %1896 = vmatpush.bf16.msra.mxu0 %v277
    %1897 = vmatpush.bf16.msra.mxu0 %v273
    %1898 = vmatpush.bf16.msra.mxu0 %v269
    %1899 = vmatpush.bf16.msra.mxu0 %v265
    %1900 = vmatpush.bf16.msra.mxu0 %v261
    %1901 = vmatpush.bf16.msra.mxu0 %v257
    %1902 = vmatpush.bf16.msra.mxu0 %v253
    %1903 = vmatmul.bf16.gmra.mxu0 %v1710
    %v1904 = vpop.f32.mrf.mxu0
    %v1905 = vadd.f32 %v1887, %v1904
    %v1906 = vpop.f32.mrf.mxu0
    %1907 = vdwg.mxu0
    %1908 = vmatpush.bf16.msra.mxu0 %v282
    %1909 = vmatpush.bf16.msra.mxu0 %v278
    %1910 = vmatpush.bf16.msra.mxu0 %v274
    %1911 = vmatpush.bf16.msra.mxu0 %v270
    %1912 = vmatpush.bf16.msra.mxu0 %v266
    %1913 = vmatpush.bf16.msra.mxu0 %v262
    %1914 = vmatpush.bf16.msra.mxu0 %v258
    %1915 = vmatpush.bf16.msra.mxu0 %v254
    %1916 = vmatmul.bf16.gmra.mxu0 %v1710
    %v1917 = vpop.f32.mrf.mxu0
    %v1918 = vadd.f32 %v1888, %v1917
    %v1919 = vpop.f32.mrf.mxu0
    %1920 = vdwg.mxu0
    %1921 = vmatpush.bf16.msra.mxu0 %v283
    %1922 = vmatpush.bf16.msra.mxu0 %v279
    %1923 = vmatpush.bf16.msra.mxu0 %v275
    %1924 = vmatpush.bf16.msra.mxu0 %v271
    %1925 = vmatpush.bf16.msra.mxu0 %v267
    %1926 = vmatpush.bf16.msra.mxu0 %v263
    %1927 = vmatpush.bf16.msra.mxu0 %v259
    %1928 = vmatpush.bf16.msra.mxu0 %v255
    %1929 = vmatmul.bf16.gmra.mxu0 %v1710
    %v1930 = vpop.f32.mrf.mxu0
    %v1931 = vadd.f32 %v1889, %v1930
    %v1932 = vpop.f32.mrf.mxu0
    %1933 = vdwg.mxu0
    %1934 = vmatpush.bf16.msra.mxu0 %v284
    %1935 = vmatpush.bf16.msra.mxu0 %v280
    %1936 = vmatpush.bf16.msra.mxu0 %v276
    %1937 = vmatpush.bf16.msra.mxu0 %v272
    %1938 = vmatpush.bf16.msra.mxu0 %v268
    %1939 = vmatpush.bf16.msra.mxu0 %v264
    %1940 = vmatpush.bf16.msra.mxu0 %v260
    %1941 = vmatpush.bf16.msra.mxu0 %v256
    %1942 = vmatmul.bf16.gmra.mxu0 %v1710
    %v1943 = vpop.f32.mrf.mxu0
    %v1944 = vadd.f32 %v1890, %v1943
    %v1945 = vpop.f32.mrf.mxu0
    %1946 = vdwg.mxu0
    %v1947 = vadd.f32 %v1905, %v74
    %v1948 = vadd.f32 %v1918, %v75
    %v1949 = vadd.f32 %v1931, %v76
    %v1950 = vadd.f32 %v1944, %v77
    %v1951 = vxor.u32 %v1947, 2147483648
    %v1952 = vxor.u32 %v1948, 2147483648
    %v1953 = vxor.u32 %v1949, 2147483648
    %v1954 = vmul.f32 %v1951, 1.442695
    %v1955 = vpow.pop %v1954
    %v1956 = vmul.f32 %v1952, 1.442695
    %v1957 = vpow.pop %v1956
    %v1958 = vmul.f32 %v1953, 1.442695
    %v1959 = vpow.pop %v1958
    %v1960 = vadd.f32 %v1955, 1.0
    %v1961 = vadd.f32 %v1957, 1.0
    %v1962 = vadd.f32 %v1959, 1.0
    %v1963 = vrcp.pop %v1960
    %v1964 = vmul.f32 %v1960, %v1963
    %v1965 = vsub.f32 1.0, %v1964
    %v1966 = vmul.f32 %v1963, %v1965
    %v1967 = vadd.f32 %v1963, %v1966
    %vm1968 = vweird.f32 %v1960
    %vm1969 = vweird.f32 %v1963
    %vm1970 = vmor %vm1968, %vm1969
    %v1971 = vsel %vm1970, %v1963, %v1967
    %v1972 = vand.u32 2147483647, %v1960
    %vm1973 = vcmp.eq.f32.partialorder %v1972, 8.507059e+37
    %v1974 = vand.u32 %v1960, 2147483648
    %v1975 = vor.u32 1.1754944e-38, %v1974
    %v1976 = vsel %vm1973, %v1975, %v1971
    %v1977 = vmul.f32 1.0, %v1976
    %v1978 = vrcp.pop %v1961
    %v1979 = vmul.f32 %v1961, %v1978
    %v1980 = vsub.f32 1.0, %v1979
    %v1981 = vmul.f32 %v1978, %v1980
    %v1982 = vadd.f32 %v1978, %v1981
    %vm1983 = vweird.f32 %v1961
    %vm1984 = vweird.f32 %v1978
    %vm1985 = vmor %vm1983, %vm1984
    %v1986 = vsel %vm1985, %v1978, %v1982
    %v1987 = vand.u32 2147483647, %v1961
    %vm1988 = vcmp.eq.f32.partialorder %v1987, 8.507059e+37
    %v1989 = vand.u32 %v1961, 2147483648
    %v1990 = vor.u32 1.1754944e-38, %v1989
    %v1991 = vsel %vm1988, %v1990, %v1986
    %v1992 = vmul.f32 1.0, %v1991
    %v1993 = vrcp.pop %v1962
    %v1994 = vmul.f32 %v1962, %v1993
    %v1995 = vsub.f32 1.0, %v1994
    %v1996 = vmul.f32 %v1993, %v1995
    %v1997 = vadd.f32 %v1993, %v1996
    %vm1998 = vweird.f32 %v1962
    %vm1999 = vweird.f32 %v1993
    %vm2000 = vmor %vm1998, %vm1999
    %v2001 = vsel %vm2000, %v1993, %v1997
    %v2002 = vand.u32 2147483647, %v1962
    %vm2003 = vcmp.eq.f32.partialorder %v2002, 8.507059e+37
    %v2004 = vand.u32 %v1962, 2147483648
    %v2005 = vor.u32 1.1754944e-38, %v2004
    %v2006 = vsel %vm2003, %v2005, %v2001
    %v2007 = vmul.f32 1.0, %v2006
    %v2008 = vtanh.pop %v1950
    %v2009 = vmul.f32 %v1992, %v1707
    %v2010 = vmul.f32 %v1977, %v2008
    %v2011 = vadd.f32 %v2009, %v2010
    %v2012 = vtanh.pop %v2011
    %v2013 = vmul.f32 %v2007, %v2012
    %v2014 = vpack.c.bf16 %v2013, %v2013
    %2015 = vmatpush.bf16.msra.mxu0 %v603
    %2016 = vmatpush.bf16.msra.mxu0 %v599
    %2017 = vmatpush.bf16.msra.mxu0 %v595
    %2018 = vmatpush.bf16.msra.mxu0 %v591
    %2019 = vmatpush.bf16.msra.mxu0 %v587
    %2020 = vmatpush.bf16.msra.mxu0 %v583
    %2021 = vmatpush.bf16.msra.mxu0 %v579
    %2022 = vmatpush.bf16.msra.mxu0 %v575
    %2023 = vmatmul.bf16.gmra.mxu0 %v2014
    %v2024 = vpop.f32.mrf.mxu0
    %v2025 = vadd.f32 0.0, %v2024
    %v2026 = vpop.f32.mrf.mxu0
    %2027 = vdwg.mxu0
    %2028 = vmatpush.bf16.msra.mxu0 %v604
    %2029 = vmatpush.bf16.msra.mxu0 %v600
    %2030 = vmatpush.bf16.msra.mxu0 %v596
    %2031 = vmatpush.bf16.msra.mxu0 %v592
    %2032 = vmatpush.bf16.msra.mxu0 %v588
    %2033 = vmatpush.bf16.msra.mxu0 %v584
    %2034 = vmatpush.bf16.msra.mxu0 %v580
    %2035 = vmatpush.bf16.msra.mxu0 %v576
    %2036 = vmatmul.bf16.gmra.mxu0 %v2014
    %v2037 = vpop.f32.mrf.mxu0
    %v2038 = vadd.f32 0.0, %v2037
    %v2039 = vpop.f32.mrf.mxu0
    %2040 = vdwg.mxu0
    %2041 = vmatpush.bf16.msra.mxu0 %v605
    %2042 = vmatpush.bf16.msra.mxu0 %v601
    %2043 = vmatpush.bf16.msra.mxu0 %v597
    %2044 = vmatpush.bf16.msra.mxu0 %v593
    %2045 = vmatpush.bf16.msra.mxu0 %v589
    %2046 = vmatpush.bf16.msra.mxu0 %v585
    %2047 = vmatpush.bf16.msra.mxu0 %v581
    %2048 = vmatpush.bf16.msra.mxu0 %v577
    %2049 = vmatmul.bf16.gmra.mxu0 %v2014
    %v2050 = vpop.f32.mrf.mxu0
    %v2051 = vadd.f32 0.0, %v2050
    %v2052 = vpop.f32.mrf.mxu0
    %2053 = vdwg.mxu0
    %2054 = vmatpush.bf16.msra.mxu0 %v606
    %2055 = vmatpush.bf16.msra.mxu0 %v602
    %2056 = vmatpush.bf16.msra.mxu0 %v598
    %2057 = vmatpush.bf16.msra.mxu0 %v594
    %2058 = vmatpush.bf16.msra.mxu0 %v590
    %2059 = vmatpush.bf16.msra.mxu0 %v586
    %2060 = vmatpush.bf16.msra.mxu0 %v582
    %2061 = vmatpush.bf16.msra.mxu0 %v578
    %2062 = vmatmul.bf16.gmra.mxu0 %v2014
    %v2063 = vpop.f32.mrf.mxu0
    %v2064 = vadd.f32 0.0, %v2063
    %v2065 = vpop.f32.mrf.mxu0
    %2066 = vdwg.mxu0
    %2067 = vmatpush.bf16.msra.mxu0 %v815
    %2068 = vmatpush.bf16.msra.mxu0 %v811
    %2069 = vmatpush.bf16.msra.mxu0 %v807
    %2070 = vmatpush.bf16.msra.mxu0 %v803
    %2071 = vmatpush.bf16.msra.mxu0 %v799
    %2072 = vmatpush.bf16.msra.mxu0 %v795
    %2073 = vmatpush.bf16.msra.mxu0 %v791
    %2074 = vmatpush.bf16.msra.mxu0 %v787
    %2075 = vmatmul.bf16.gmra.mxu0 %v1882
    %v2076 = vpop.f32.mrf.mxu0
    %v2077 = vadd.f32 %v2025, %v2076
    %v2078 = vpop.f32.mrf.mxu0
    %2079 = vdwg.mxu0
    %2080 = vmatpush.bf16.msra.mxu0 %v816
    %2081 = vmatpush.bf16.msra.mxu0 %v812
    %2082 = vmatpush.bf16.msra.mxu0 %v808
    %2083 = vmatpush.bf16.msra.mxu0 %v804
    %2084 = vmatpush.bf16.msra.mxu0 %v800
    %2085 = vmatpush.bf16.msra.mxu0 %v796
    %2086 = vmatpush.bf16.msra.mxu0 %v792
    %2087 = vmatpush.bf16.msra.mxu0 %v788
    %2088 = vmatmul.bf16.gmra.mxu0 %v1882
    %v2089 = vpop.f32.mrf.mxu0
    %v2090 = vadd.f32 %v2038, %v2089
    %v2091 = vpop.f32.mrf.mxu0
    %2092 = vdwg.mxu0
    %2093 = vmatpush.bf16.msra.mxu0 %v817
    %2094 = vmatpush.bf16.msra.mxu0 %v813
    %2095 = vmatpush.bf16.msra.mxu0 %v809
    %2096 = vmatpush.bf16.msra.mxu0 %v805
    %2097 = vmatpush.bf16.msra.mxu0 %v801
    %2098 = vmatpush.bf16.msra.mxu0 %v797
    %2099 = vmatpush.bf16.msra.mxu0 %v793
    %2100 = vmatpush.bf16.msra.mxu0 %v789
    %2101 = vmatmul.bf16.gmra.mxu0 %v1882
    %v2102 = vpop.f32.mrf.mxu0
    %v2103 = vadd.f32 %v2051, %v2102
    %v2104 = vpop.f32.mrf.mxu0
    %2105 = vdwg.mxu0
    %2106 = vmatpush.bf16.msra.mxu0 %v818
    %2107 = vmatpush.bf16.msra.mxu0 %v814
    %2108 = vmatpush.bf16.msra.mxu0 %v810
    %2109 = vmatpush.bf16.msra.mxu0 %v806
    %2110 = vmatpush.bf16.msra.mxu0 %v802
    %2111 = vmatpush.bf16.msra.mxu0 %v798
    %2112 = vmatpush.bf16.msra.mxu0 %v794
    %2113 = vmatpush.bf16.msra.mxu0 %v790
    %2114 = vmatmul.bf16.gmra.mxu0 %v1882
    %v2115 = vpop.f32.mrf.mxu0
    %v2116 = vadd.f32 %v2064, %v2115
    %v2117 = vpop.f32.mrf.mxu0
    %2118 = vdwg.mxu0
    %v2119 = vadd.f32 %v2077, %v84
    %v2120 = vadd.f32 %v2090, %v85
    %v2121 = vadd.f32 %v2103, %v86
    %v2122 = vadd.f32 %v2116, %v87
    %v2123 = vxor.u32 %v2119, 2147483648
    %v2124 = vxor.u32 %v2120, 2147483648
    %v2125 = vxor.u32 %v2121, 2147483648
    %v2126 = vmul.f32 %v2123, 1.442695
    %v2127 = vpow.pop %v2126
    %v2128 = vmul.f32 %v2124, 1.442695
    %v2129 = vpow.pop %v2128
    %v2130 = vmul.f32 %v2125, 1.442695
    %v2131 = vpow.pop %v2130
    %v2132 = vadd.f32 %v2127, 1.0
    %v2133 = vadd.f32 %v2129, 1.0
    %v2134 = vadd.f32 %v2131, 1.0
    %v2135 = vrcp.pop %v2132
    %v2136 = vmul.f32 %v2132, %v2135
    %v2137 = vsub.f32 1.0, %v2136
    %v2138 = vmul.f32 %v2135, %v2137
    %v2139 = vadd.f32 %v2135, %v2138
    %vm2140 = vweird.f32 %v2132
    %vm2141 = vweird.f32 %v2135
    %vm2142 = vmor %vm2140, %vm2141
    %v2143 = vsel %vm2142, %v2135, %v2139
    %v2144 = vand.u32 2147483647, %v2132
    %vm2145 = vcmp.eq.f32.partialorder %v2144, 8.507059e+37
    %v2146 = vand.u32 %v2132, 2147483648
    %v2147 = vor.u32 1.1754944e-38, %v2146
    %v2148 = vsel %vm2145, %v2147, %v2143
    %v2149 = vmul.f32 1.0, %v2148
    %v2150 = vrcp.pop %v2133
    %v2151 = vmul.f32 %v2133, %v2150
    %v2152 = vsub.f32 1.0, %v2151
    %v2153 = vmul.f32 %v2150, %v2152
    %v2154 = vadd.f32 %v2150, %v2153
    %vm2155 = vweird.f32 %v2133
    %vm2156 = vweird.f32 %v2150
    %vm2157 = vmor %vm2155, %vm2156
    %v2158 = vsel %vm2157, %v2150, %v2154
    %v2159 = vand.u32 2147483647, %v2133
    %vm2160 = vcmp.eq.f32.partialorder %v2159, 8.507059e+37
    %v2161 = vand.u32 %v2133, 2147483648
    %v2162 = vor.u32 1.1754944e-38, %v2161
    %v2163 = vsel %vm2160, %v2162, %v2158
    %v2164 = vmul.f32 1.0, %v2163
    %v2165 = vrcp.pop %v2134
    %v2166 = vmul.f32 %v2134, %v2165
    %v2167 = vsub.f32 1.0, %v2166
    %v2168 = vmul.f32 %v2165, %v2167
    %v2169 = vadd.f32 %v2165, %v2168
    %vm2170 = vweird.f32 %v2134
    %vm2171 = vweird.f32 %v2165
    %vm2172 = vmor %vm2170, %vm2171
    %v2173 = vsel %vm2172, %v2165, %v2169
    %v2174 = vand.u32 2147483647, %v2134
    %vm2175 = vcmp.eq.f32.partialorder %v2174, 8.507059e+37
    %v2176 = vand.u32 %v2134, 2147483648
    %v2177 = vor.u32 1.1754944e-38, %v2176
    %v2178 = vsel %vm2175, %v2177, %v2173
    %v2179 = vmul.f32 1.0, %v2178
    %v2180 = vtanh.pop %v2122
    %v2181 = vmul.f32 %v2164, %v1879
    %v2182 = vmul.f32 %v2149, %v2180
    %v2183 = vadd.f32 %v2181, %v2182
    %v2184 = vtanh.pop %v2183
    %v2185 = vmul.f32 %v2179, %v2184
    %v2186 = vpack.c.bf16 %v2185, %v2185
    %s2187 = scalar_lea.vmem %s0, 40
    %v2188 = vld [vmem:[%s2187] sm:$0xff]
    %2190 = vst [vmem:[#allocation1] ss:$4 sm:$0xff] %v2188
    %v2191 = vld.sshfl [vmem:[#allocation1] sm:$0xff pattern:$0x73625140]
    %v2192 = vld.sshfl [vmem:[#allocation1 + $0x8] sm:$0xff pattern:$0x73625140]
    %v2193 = vld.sshfl [vmem:[#allocation1 + $0x10] sm:$0xff pattern:$0x73625140]
    %v2194 = vld.sshfl [vmem:[#allocation1 + $0x18] sm:$0xff pattern:$0x73625140]
    %2199 = vmatpush.bf16.msra.mxu0 %v281
    %2200 = vmatpush.bf16.msra.mxu0 %v277
    %2201 = vmatpush.bf16.msra.mxu0 %v273
    %2202 = vmatpush.bf16.msra.mxu0 %v269
    %2203 = vmatpush.bf16.msra.mxu0 %v265
    %2204 = vmatpush.bf16.msra.mxu0 %v261
    %2205 = vmatpush.bf16.msra.mxu0 %v257
    %2206 = vmatpush.bf16.msra.mxu0 %v253
    %2207 = vmatmul.bf16.gmra.mxu0 %v2014
    %v2208 = vpop.f32.mrf.mxu0
    %v2209 = vadd.f32 %v2191, %v2208
    %v2210 = vpop.f32.mrf.mxu0
    %2211 = vdwg.mxu0
    %2212 = vmatpush.bf16.msra.mxu0 %v282
    %2213 = vmatpush.bf16.msra.mxu0 %v278
    %2214 = vmatpush.bf16.msra.mxu0 %v274
    %2215 = vmatpush.bf16.msra.mxu0 %v270
    %2216 = vmatpush.bf16.msra.mxu0 %v266
    %2217 = vmatpush.bf16.msra.mxu0 %v262
    %2218 = vmatpush.bf16.msra.mxu0 %v258
    %2219 = vmatpush.bf16.msra.mxu0 %v254
    %2220 = vmatmul.bf16.gmra.mxu0 %v2014
    %v2221 = vpop.f32.mrf.mxu0
    %v2222 = vadd.f32 %v2192, %v2221
    %v2223 = vpop.f32.mrf.mxu0
    %2224 = vdwg.mxu0
    %2225 = vmatpush.bf16.msra.mxu0 %v283
    %2226 = vmatpush.bf16.msra.mxu0 %v279
    %2227 = vmatpush.bf16.msra.mxu0 %v275
    %2228 = vmatpush.bf16.msra.mxu0 %v271
    %2229 = vmatpush.bf16.msra.mxu0 %v267
    %2230 = vmatpush.bf16.msra.mxu0 %v263
    %2231 = vmatpush.bf16.msra.mxu0 %v259
    %2232 = vmatpush.bf16.msra.mxu0 %v255
    %2233 = vmatmul.bf16.gmra.mxu0 %v2014
    %v2234 = vpop.f32.mrf.mxu0
    %v2235 = vadd.f32 %v2193, %v2234
    %v2236 = vpop.f32.mrf.mxu0
    %2237 = vdwg.mxu0
    %2238 = vmatpush.bf16.msra.mxu0 %v284
    %2239 = vmatpush.bf16.msra.mxu0 %v280
    %2240 = vmatpush.bf16.msra.mxu0 %v276
    %2241 = vmatpush.bf16.msra.mxu0 %v272
    %2242 = vmatpush.bf16.msra.mxu0 %v268
    %2243 = vmatpush.bf16.msra.mxu0 %v264
    %2244 = vmatpush.bf16.msra.mxu0 %v260
    %2245 = vmatpush.bf16.msra.mxu0 %v256
    %2246 = vmatmul.bf16.gmra.mxu0 %v2014
    %v2247 = vpop.f32.mrf.mxu0
    %v2248 = vadd.f32 %v2194, %v2247
    %v2249 = vpop.f32.mrf.mxu0
    %2250 = vdwg.mxu0
    %v2251 = vadd.f32 %v2209, %v74
    %v2252 = vadd.f32 %v2222, %v75
    %v2253 = vadd.f32 %v2235, %v76
    %v2254 = vadd.f32 %v2248, %v77
    %v2255 = vxor.u32 %v2251, 2147483648
    %v2256 = vxor.u32 %v2252, 2147483648
    %v2257 = vxor.u32 %v2253, 2147483648
    %v2258 = vmul.f32 %v2255, 1.442695
    %v2259 = vpow.pop %v2258
    %v2260 = vmul.f32 %v2256, 1.442695
    %v2261 = vpow.pop %v2260
    %v2262 = vmul.f32 %v2257, 1.442695
    %v2263 = vpow.pop %v2262
    %v2264 = vadd.f32 %v2259, 1.0
    %v2265 = vadd.f32 %v2261, 1.0
    %v2266 = vadd.f32 %v2263, 1.0
    %v2267 = vrcp.pop %v2264
    %v2268 = vmul.f32 %v2264, %v2267
    %v2269 = vsub.f32 1.0, %v2268
    %v2270 = vmul.f32 %v2267, %v2269
    %v2271 = vadd.f32 %v2267, %v2270
    %vm2272 = vweird.f32 %v2264
    %vm2273 = vweird.f32 %v2267
    %vm2274 = vmor %vm2272, %vm2273
    %v2275 = vsel %vm2274, %v2267, %v2271
    %v2276 = vand.u32 2147483647, %v2264
    %vm2277 = vcmp.eq.f32.partialorder %v2276, 8.507059e+37
    %v2278 = vand.u32 %v2264, 2147483648
    %v2279 = vor.u32 1.1754944e-38, %v2278
    %v2280 = vsel %vm2277, %v2279, %v2275
    %v2281 = vmul.f32 1.0, %v2280
    %v2282 = vrcp.pop %v2265
    %v2283 = vmul.f32 %v2265, %v2282
    %v2284 = vsub.f32 1.0, %v2283
    %v2285 = vmul.f32 %v2282, %v2284
    %v2286 = vadd.f32 %v2282, %v2285
    %vm2287 = vweird.f32 %v2265
    %vm2288 = vweird.f32 %v2282
    %vm2289 = vmor %vm2287, %vm2288
    %v2290 = vsel %vm2289, %v2282, %v2286
    %v2291 = vand.u32 2147483647, %v2265
    %vm2292 = vcmp.eq.f32.partialorder %v2291, 8.507059e+37
    %v2293 = vand.u32 %v2265, 2147483648
    %v2294 = vor.u32 1.1754944e-38, %v2293
    %v2295 = vsel %vm2292, %v2294, %v2290
    %v2296 = vmul.f32 1.0, %v2295
    %v2297 = vrcp.pop %v2266
    %v2298 = vmul.f32 %v2266, %v2297
    %v2299 = vsub.f32 1.0, %v2298
    %v2300 = vmul.f32 %v2297, %v2299
    %v2301 = vadd.f32 %v2297, %v2300
    %vm2302 = vweird.f32 %v2266
    %vm2303 = vweird.f32 %v2297
    %vm2304 = vmor %vm2302, %vm2303
    %v2305 = vsel %vm2304, %v2297, %v2301
    %v2306 = vand.u32 2147483647, %v2266
    %vm2307 = vcmp.eq.f32.partialorder %v2306, 8.507059e+37
    %v2308 = vand.u32 %v2266, 2147483648
    %v2309 = vor.u32 1.1754944e-38, %v2308
    %v2310 = vsel %vm2307, %v2309, %v2305
    %v2311 = vmul.f32 1.0, %v2310
    %v2312 = vtanh.pop %v2254
    %v2313 = vmul.f32 %v2296, %v2011
    %v2314 = vmul.f32 %v2281, %v2312
    %v2315 = vadd.f32 %v2313, %v2314
    %v2316 = vtanh.pop %v2315
    %v2317 = vmul.f32 %v2311, %v2316
    %v2318 = vpack.c.bf16 %v2317, %v2317
    %2319 = vmatpush.bf16.msra.mxu0 %v603
    %2320 = vmatpush.bf16.msra.mxu0 %v599
    %2321 = vmatpush.bf16.msra.mxu0 %v595
    %2322 = vmatpush.bf16.msra.mxu0 %v591
    %2323 = vmatpush.bf16.msra.mxu0 %v587
    %2324 = vmatpush.bf16.msra.mxu0 %v583
    %2325 = vmatpush.bf16.msra.mxu0 %v579
    %2326 = vmatpush.bf16.msra.mxu0 %v575
    %2327 = vmatmul.bf16.gmra.mxu0 %v2318
    %v2328 = vpop.f32.mrf.mxu0
    %v2329 = vadd.f32 0.0, %v2328
    %v2330 = vpop.f32.mrf.mxu0
    %2331 = vdwg.mxu0
    %2332 = vmatpush.bf16.msra.mxu0 %v604
    %2333 = vmatpush.bf16.msra.mxu0 %v600
    %2334 = vmatpush.bf16.msra.mxu0 %v596
    %2335 = vmatpush.bf16.msra.mxu0 %v592
    %2336 = vmatpush.bf16.msra.mxu0 %v588
    %2337 = vmatpush.bf16.msra.mxu0 %v584
    %2338 = vmatpush.bf16.msra.mxu0 %v580
    %2339 = vmatpush.bf16.msra.mxu0 %v576
    %2340 = vmatmul.bf16.gmra.mxu0 %v2318
    %v2341 = vpop.f32.mrf.mxu0
    %v2342 = vadd.f32 0.0, %v2341
    %v2343 = vpop.f32.mrf.mxu0
    %2344 = vdwg.mxu0
    %2345 = vmatpush.bf16.msra.mxu0 %v605
    %2346 = vmatpush.bf16.msra.mxu0 %v601
    %2347 = vmatpush.bf16.msra.mxu0 %v597
    %2348 = vmatpush.bf16.msra.mxu0 %v593
    %2349 = vmatpush.bf16.msra.mxu0 %v589
    %2350 = vmatpush.bf16.msra.mxu0 %v585
    %2351 = vmatpush.bf16.msra.mxu0 %v581
    %2352 = vmatpush.bf16.msra.mxu0 %v577
    %2353 = vmatmul.bf16.gmra.mxu0 %v2318
    %v2354 = vpop.f32.mrf.mxu0
    %v2355 = vadd.f32 0.0, %v2354
    %v2356 = vpop.f32.mrf.mxu0
    %2357 = vdwg.mxu0
    %2358 = vmatpush.bf16.msra.mxu0 %v606
    %2359 = vmatpush.bf16.msra.mxu0 %v602
    %2360 = vmatpush.bf16.msra.mxu0 %v598
    %2361 = vmatpush.bf16.msra.mxu0 %v594
    %2362 = vmatpush.bf16.msra.mxu0 %v590
    %2363 = vmatpush.bf16.msra.mxu0 %v586
    %2364 = vmatpush.bf16.msra.mxu0 %v582
    %2365 = vmatpush.bf16.msra.mxu0 %v578
    %2366 = vmatmul.bf16.gmra.mxu0 %v2318
    %v2367 = vpop.f32.mrf.mxu0
    %v2368 = vadd.f32 0.0, %v2367
    %v2369 = vpop.f32.mrf.mxu0
    %2370 = vdwg.mxu0
    %2371 = vmatpush.bf16.msra.mxu0 %v815
    %2372 = vmatpush.bf16.msra.mxu0 %v811
    %2373 = vmatpush.bf16.msra.mxu0 %v807
    %2374 = vmatpush.bf16.msra.mxu0 %v803
    %2375 = vmatpush.bf16.msra.mxu0 %v799
    %2376 = vmatpush.bf16.msra.mxu0 %v795
    %2377 = vmatpush.bf16.msra.mxu0 %v791
    %2378 = vmatpush.bf16.msra.mxu0 %v787
    %2379 = vmatmul.bf16.gmra.mxu0 %v2186
    %v2380 = vpop.f32.mrf.mxu0
    %v2381 = vadd.f32 %v2329, %v2380
    %v2382 = vpop.f32.mrf.mxu0
    %2383 = vdwg.mxu0
    %2384 = vmatpush.bf16.msra.mxu0 %v816
    %2385 = vmatpush.bf16.msra.mxu0 %v812
    %2386 = vmatpush.bf16.msra.mxu0 %v808
    %2387 = vmatpush.bf16.msra.mxu0 %v804
    %2388 = vmatpush.bf16.msra.mxu0 %v800
    %2389 = vmatpush.bf16.msra.mxu0 %v796
    %2390 = vmatpush.bf16.msra.mxu0 %v792
    %2391 = vmatpush.bf16.msra.mxu0 %v788
    %2392 = vmatmul.bf16.gmra.mxu0 %v2186
    %v2393 = vpop.f32.mrf.mxu0
    %v2394 = vadd.f32 %v2342, %v2393
    %v2395 = vpop.f32.mrf.mxu0
    %2396 = vdwg.mxu0
    %2397 = vmatpush.bf16.msra.mxu0 %v817
    %2398 = vmatpush.bf16.msra.mxu0 %v813
    %2399 = vmatpush.bf16.msra.mxu0 %v809
    %2400 = vmatpush.bf16.msra.mxu0 %v805
    %2401 = vmatpush.bf16.msra.mxu0 %v801
    %2402 = vmatpush.bf16.msra.mxu0 %v797
    %2403 = vmatpush.bf16.msra.mxu0 %v793
    %2404 = vmatpush.bf16.msra.mxu0 %v789
    %2405 = vmatmul.bf16.gmra.mxu0 %v2186
    %v2406 = vpop.f32.mrf.mxu0
    %v2407 = vadd.f32 %v2355, %v2406
    %v2408 = vpop.f32.mrf.mxu0
    %2409 = vdwg.mxu0
    %2410 = vmatpush.bf16.msra.mxu0 %v818
    %2411 = vmatpush.bf16.msra.mxu0 %v814
    %2412 = vmatpush.bf16.msra.mxu0 %v810
    %2413 = vmatpush.bf16.msra.mxu0 %v806
    %2414 = vmatpush.bf16.msra.mxu0 %v802
    %2415 = vmatpush.bf16.msra.mxu0 %v798
    %2416 = vmatpush.bf16.msra.mxu0 %v794
    %2417 = vmatpush.bf16.msra.mxu0 %v790
    %2418 = vmatmul.bf16.gmra.mxu0 %v2186
    %v2419 = vpop.f32.mrf.mxu0
    %v2420 = vadd.f32 %v2368, %v2419
    %v2421 = vpop.f32.mrf.mxu0
    %2422 = vdwg.mxu0
    %v2423 = vadd.f32 %v2381, %v84
    %v2424 = vadd.f32 %v2394, %v85
    %v2425 = vadd.f32 %v2407, %v86
    %v2426 = vadd.f32 %v2420, %v87
    %v2427 = vxor.u32 %v2423, 2147483648
    %v2428 = vxor.u32 %v2424, 2147483648
    %v2429 = vxor.u32 %v2425, 2147483648
    %v2430 = vmul.f32 %v2427, 1.442695
    %v2431 = vpow.pop %v2430
    %v2432 = vmul.f32 %v2428, 1.442695
    %v2433 = vpow.pop %v2432
    %v2434 = vmul.f32 %v2429, 1.442695
    %v2435 = vpow.pop %v2434
    %v2436 = vadd.f32 %v2431, 1.0
    %v2437 = vadd.f32 %v2433, 1.0
    %v2438 = vadd.f32 %v2435, 1.0
    %v2439 = vrcp.pop %v2436
    %v2440 = vmul.f32 %v2436, %v2439
    %v2441 = vsub.f32 1.0, %v2440
    %v2442 = vmul.f32 %v2439, %v2441
    %v2443 = vadd.f32 %v2439, %v2442
    %vm2444 = vweird.f32 %v2436
    %vm2445 = vweird.f32 %v2439
    %vm2446 = vmor %vm2444, %vm2445
    %v2447 = vsel %vm2446, %v2439, %v2443
    %v2448 = vand.u32 2147483647, %v2436
    %vm2449 = vcmp.eq.f32.partialorder %v2448, 8.507059e+37
    %v2450 = vand.u32 %v2436, 2147483648
    %v2451 = vor.u32 1.1754944e-38, %v2450
    %v2452 = vsel %vm2449, %v2451, %v2447
    %v2453 = vmul.f32 1.0, %v2452
    %v2454 = vrcp.pop %v2437
    %v2455 = vmul.f32 %v2437, %v2454
    %v2456 = vsub.f32 1.0, %v2455
    %v2457 = vmul.f32 %v2454, %v2456
    %v2458 = vadd.f32 %v2454, %v2457
    %vm2459 = vweird.f32 %v2437
    %vm2460 = vweird.f32 %v2454
    %vm2461 = vmor %vm2459, %vm2460
    %v2462 = vsel %vm2461, %v2454, %v2458
    %v2463 = vand.u32 2147483647, %v2437
    %vm2464 = vcmp.eq.f32.partialorder %v2463, 8.507059e+37
    %v2465 = vand.u32 %v2437, 2147483648
    %v2466 = vor.u32 1.1754944e-38, %v2465
    %v2467 = vsel %vm2464, %v2466, %v2462
    %v2468 = vmul.f32 1.0, %v2467
    %v2469 = vrcp.pop %v2438
    %v2470 = vmul.f32 %v2438, %v2469
    %v2471 = vsub.f32 1.0, %v2470
    %v2472 = vmul.f32 %v2469, %v2471
    %v2473 = vadd.f32 %v2469, %v2472
    %vm2474 = vweird.f32 %v2438
    %vm2475 = vweird.f32 %v2469
    %vm2476 = vmor %vm2474, %vm2475
    %v2477 = vsel %vm2476, %v2469, %v2473
    %v2478 = vand.u32 2147483647, %v2438
    %vm2479 = vcmp.eq.f32.partialorder %v2478, 8.507059e+37
    %v2480 = vand.u32 %v2438, 2147483648
    %v2481 = vor.u32 1.1754944e-38, %v2480
    %v2482 = vsel %vm2479, %v2481, %v2477
    %v2483 = vmul.f32 1.0, %v2482
    %v2484 = vtanh.pop %v2426
    %v2485 = vmul.f32 %v2468, %v2183
    %v2486 = vmul.f32 %v2453, %v2484
    %v2487 = vadd.f32 %v2485, %v2486
    %v2488 = vtanh.pop %v2487
    %v2489 = vmul.f32 %v2483, %v2488
    %v2490 = vpack.c.bf16 %v2489, %v2489
    %s2491 = scalar_lea.vmem %s0, 48
    %v2492 = vld [vmem:[%s2491] sm:$0xff]
    %2494 = vst [vmem:[#allocation1] ss:$4 sm:$0xff] %v2492
    %v2495 = vld.sshfl [vmem:[#allocation1] sm:$0xff pattern:$0x73625140]
    %v2496 = vld.sshfl [vmem:[#allocation1 + $0x8] sm:$0xff pattern:$0x73625140]
    %v2497 = vld.sshfl [vmem:[#allocation1 + $0x10] sm:$0xff pattern:$0x73625140]
    %v2498 = vld.sshfl [vmem:[#allocation1 + $0x18] sm:$0xff pattern:$0x73625140]
    %2503 = vmatpush.bf16.msra.mxu0 %v281
    %2504 = vmatpush.bf16.msra.mxu0 %v277
    %2505 = vmatpush.bf16.msra.mxu0 %v273
    %2506 = vmatpush.bf16.msra.mxu0 %v269
    %2507 = vmatpush.bf16.msra.mxu0 %v265
    %2508 = vmatpush.bf16.msra.mxu0 %v261
    %2509 = vmatpush.bf16.msra.mxu0 %v257
    %2510 = vmatpush.bf16.msra.mxu0 %v253
    %2511 = vmatmul.bf16.gmra.mxu0 %v2318
    %v2512 = vpop.f32.mrf.mxu0
    %v2513 = vadd.f32 %v2495, %v2512
    %v2514 = vpop.f32.mrf.mxu0
    %2515 = vdwg.mxu0
    %2516 = vmatpush.bf16.msra.mxu0 %v282
    %2517 = vmatpush.bf16.msra.mxu0 %v278
    %2518 = vmatpush.bf16.msra.mxu0 %v274
    %2519 = vmatpush.bf16.msra.mxu0 %v270
    %2520 = vmatpush.bf16.msra.mxu0 %v266
    %2521 = vmatpush.bf16.msra.mxu0 %v262
    %2522 = vmatpush.bf16.msra.mxu0 %v258
    %2523 = vmatpush.bf16.msra.mxu0 %v254
    %2524 = vmatmul.bf16.gmra.mxu0 %v2318
    %v2525 = vpop.f32.mrf.mxu0
    %v2526 = vadd.f32 %v2496, %v2525
    %v2527 = vpop.f32.mrf.mxu0
    %2528 = vdwg.mxu0
    %2529 = vmatpush.bf16.msra.mxu0 %v283
    %2530 = vmatpush.bf16.msra.mxu0 %v279
    %2531 = vmatpush.bf16.msra.mxu0 %v275
    %2532 = vmatpush.bf16.msra.mxu0 %v271
    %2533 = vmatpush.bf16.msra.mxu0 %v267
    %2534 = vmatpush.bf16.msra.mxu0 %v263
    %2535 = vmatpush.bf16.msra.mxu0 %v259
    %2536 = vmatpush.bf16.msra.mxu0 %v255
    %2537 = vmatmul.bf16.gmra.mxu0 %v2318
    %v2538 = vpop.f32.mrf.mxu0
    %v2539 = vadd.f32 %v2497, %v2538
    %v2540 = vpop.f32.mrf.mxu0
    %2541 = vdwg.mxu0
    %2542 = vmatpush.bf16.msra.mxu0 %v284
    %2543 = vmatpush.bf16.msra.mxu0 %v280
    %2544 = vmatpush.bf16.msra.mxu0 %v276
    %2545 = vmatpush.bf16.msra.mxu0 %v272
    %2546 = vmatpush.bf16.msra.mxu0 %v268
    %2547 = vmatpush.bf16.msra.mxu0 %v264
    %2548 = vmatpush.bf16.msra.mxu0 %v260
    %2549 = vmatpush.bf16.msra.mxu0 %v256
    %2550 = vmatmul.bf16.gmra.mxu0 %v2318
    %v2551 = vpop.f32.mrf.mxu0
    %v2552 = vadd.f32 %v2498, %v2551
    %v2553 = vpop.f32.mrf.mxu0
    %2554 = vdwg.mxu0
    %v2555 = vadd.f32 %v2513, %v74
    %v2556 = vadd.f32 %v2526, %v75
    %v2557 = vadd.f32 %v2539, %v76
    %v2558 = vadd.f32 %v2552, %v77
    %v2559 = vxor.u32 %v2555, 2147483648
    %v2560 = vxor.u32 %v2556, 2147483648
    %v2561 = vxor.u32 %v2557, 2147483648
    %v2562 = vmul.f32 %v2559, 1.442695
    %v2563 = vpow.pop %v2562
    %v2564 = vmul.f32 %v2560, 1.442695
    %v2565 = vpow.pop %v2564
    %v2566 = vmul.f32 %v2561, 1.442695
    %v2567 = vpow.pop %v2566
    %v2568 = vadd.f32 %v2563, 1.0
    %v2569 = vadd.f32 %v2565, 1.0
    %v2570 = vadd.f32 %v2567, 1.0
    %v2571 = vrcp.pop %v2568
    %v2572 = vmul.f32 %v2568, %v2571
    %v2573 = vsub.f32 1.0, %v2572
    %v2574 = vmul.f32 %v2571, %v2573
    %v2575 = vadd.f32 %v2571, %v2574
    %vm2576 = vweird.f32 %v2568
    %vm2577 = vweird.f32 %v2571
    %vm2578 = vmor %vm2576, %vm2577
    %v2579 = vsel %vm2578, %v2571, %v2575
    %v2580 = vand.u32 2147483647, %v2568
    %vm2581 = vcmp.eq.f32.partialorder %v2580, 8.507059e+37
    %v2582 = vand.u32 %v2568, 2147483648
    %v2583 = vor.u32 1.1754944e-38, %v2582
    %v2584 = vsel %vm2581, %v2583, %v2579
    %v2585 = vmul.f32 1.0, %v2584
    %v2586 = vrcp.pop %v2569
    %v2587 = vmul.f32 %v2569, %v2586
    %v2588 = vsub.f32 1.0, %v2587
    %v2589 = vmul.f32 %v2586, %v2588
    %v2590 = vadd.f32 %v2586, %v2589
    %vm2591 = vweird.f32 %v2569
    %vm2592 = vweird.f32 %v2586
    %vm2593 = vmor %vm2591, %vm2592
    %v2594 = vsel %vm2593, %v2586, %v2590
    %v2595 = vand.u32 2147483647, %v2569
    %vm2596 = vcmp.eq.f32.partialorder %v2595, 8.507059e+37
    %v2597 = vand.u32 %v2569, 2147483648
    %v2598 = vor.u32 1.1754944e-38, %v2597
    %v2599 = vsel %vm2596, %v2598, %v2594
    %v2600 = vmul.f32 1.0, %v2599
    %v2601 = vrcp.pop %v2570
    %v2602 = vmul.f32 %v2570, %v2601
    %v2603 = vsub.f32 1.0, %v2602
    %v2604 = vmul.f32 %v2601, %v2603
    %v2605 = vadd.f32 %v2601, %v2604
    %vm2606 = vweird.f32 %v2570
    %vm2607 = vweird.f32 %v2601
    %vm2608 = vmor %vm2606, %vm2607
    %v2609 = vsel %vm2608, %v2601, %v2605
    %v2610 = vand.u32 2147483647, %v2570
    %vm2611 = vcmp.eq.f32.partialorder %v2610, 8.507059e+37
    %v2612 = vand.u32 %v2570, 2147483648
    %v2613 = vor.u32 1.1754944e-38, %v2612
    %v2614 = vsel %vm2611, %v2613, %v2609
    %v2615 = vmul.f32 1.0, %v2614
    %v2616 = vtanh.pop %v2558
    %v2617 = vmul.f32 %v2600, %v2315
    %v2618 = vmul.f32 %v2585, %v2616
    %v2619 = vadd.f32 %v2617, %v2618
    %v2620 = vtanh.pop %v2619
    %v2621 = vmul.f32 %v2615, %v2620
    %v2622 = vpack.c.bf16 %v2621, %v2621
    %2623 = vmatpush.bf16.msra.mxu0 %v603
    %2624 = vmatpush.bf16.msra.mxu0 %v599
    %2625 = vmatpush.bf16.msra.mxu0 %v595
    %2626 = vmatpush.bf16.msra.mxu0 %v591
    %2627 = vmatpush.bf16.msra.mxu0 %v587
    %2628 = vmatpush.bf16.msra.mxu0 %v583
    %2629 = vmatpush.bf16.msra.mxu0 %v579
    %2630 = vmatpush.bf16.msra.mxu0 %v575
    %2631 = vmatmul.bf16.gmra.mxu0 %v2622
    %v2632 = vpop.f32.mrf.mxu0
    %v2633 = vadd.f32 0.0, %v2632
    %v2634 = vpop.f32.mrf.mxu0
    %2635 = vdwg.mxu0
    %2636 = vmatpush.bf16.msra.mxu0 %v604
    %2637 = vmatpush.bf16.msra.mxu0 %v600
    %2638 = vmatpush.bf16.msra.mxu0 %v596
    %2639 = vmatpush.bf16.msra.mxu0 %v592
    %2640 = vmatpush.bf16.msra.mxu0 %v588
    %2641 = vmatpush.bf16.msra.mxu0 %v584
    %2642 = vmatpush.bf16.msra.mxu0 %v580
    %2643 = vmatpush.bf16.msra.mxu0 %v576
    %2644 = vmatmul.bf16.gmra.mxu0 %v2622
    %v2645 = vpop.f32.mrf.mxu0
    %v2646 = vadd.f32 0.0, %v2645
    %v2647 = vpop.f32.mrf.mxu0
    %2648 = vdwg.mxu0
    %2649 = vmatpush.bf16.msra.mxu0 %v605
    %2650 = vmatpush.bf16.msra.mxu0 %v601
    %2651 = vmatpush.bf16.msra.mxu0 %v597
    %2652 = vmatpush.bf16.msra.mxu0 %v593
    %2653 = vmatpush.bf16.msra.mxu0 %v589
    %2654 = vmatpush.bf16.msra.mxu0 %v585
    %2655 = vmatpush.bf16.msra.mxu0 %v581
    %2656 = vmatpush.bf16.msra.mxu0 %v577
    %2657 = vmatmul.bf16.gmra.mxu0 %v2622
    %v2658 = vpop.f32.mrf.mxu0
    %v2659 = vadd.f32 0.0, %v2658
    %v2660 = vpop.f32.mrf.mxu0
    %2661 = vdwg.mxu0
    %2662 = vmatpush.bf16.msra.mxu0 %v606
    %2663 = vmatpush.bf16.msra.mxu0 %v602
    %2664 = vmatpush.bf16.msra.mxu0 %v598
    %2665 = vmatpush.bf16.msra.mxu0 %v594
    %2666 = vmatpush.bf16.msra.mxu0 %v590
    %2667 = vmatpush.bf16.msra.mxu0 %v586
    %2668 = vmatpush.bf16.msra.mxu0 %v582
    %2669 = vmatpush.bf16.msra.mxu0 %v578
    %2670 = vmatmul.bf16.gmra.mxu0 %v2622
    %v2671 = vpop.f32.mrf.mxu0
    %v2672 = vadd.f32 0.0, %v2671
    %v2673 = vpop.f32.mrf.mxu0
    %2674 = vdwg.mxu0
    %2675 = vmatpush.bf16.msra.mxu0 %v815
    %2676 = vmatpush.bf16.msra.mxu0 %v811
    %2677 = vmatpush.bf16.msra.mxu0 %v807
    %2678 = vmatpush.bf16.msra.mxu0 %v803
    %2679 = vmatpush.bf16.msra.mxu0 %v799
    %2680 = vmatpush.bf16.msra.mxu0 %v795
    %2681 = vmatpush.bf16.msra.mxu0 %v791
    %2682 = vmatpush.bf16.msra.mxu0 %v787
    %2683 = vmatmul.bf16.gmra.mxu0 %v2490
    %v2684 = vpop.f32.mrf.mxu0
    %v2685 = vadd.f32 %v2633, %v2684
    %v2686 = vpop.f32.mrf.mxu0
    %2687 = vdwg.mxu0
    %2688 = vmatpush.bf16.msra.mxu0 %v816
    %2689 = vmatpush.bf16.msra.mxu0 %v812
    %2690 = vmatpush.bf16.msra.mxu0 %v808
    %2691 = vmatpush.bf16.msra.mxu0 %v804
    %2692 = vmatpush.bf16.msra.mxu0 %v800
    %2693 = vmatpush.bf16.msra.mxu0 %v796
    %2694 = vmatpush.bf16.msra.mxu0 %v792
    %2695 = vmatpush.bf16.msra.mxu0 %v788
    %2696 = vmatmul.bf16.gmra.mxu0 %v2490
    %v2697 = vpop.f32.mrf.mxu0
    %v2698 = vadd.f32 %v2646, %v2697
    %v2699 = vpop.f32.mrf.mxu0
    %2700 = vdwg.mxu0
    %2701 = vmatpush.bf16.msra.mxu0 %v817
    %2702 = vmatpush.bf16.msra.mxu0 %v813
    %2703 = vmatpush.bf16.msra.mxu0 %v809
    %2704 = vmatpush.bf16.msra.mxu0 %v805
    %2705 = vmatpush.bf16.msra.mxu0 %v801
    %2706 = vmatpush.bf16.msra.mxu0 %v797
    %2707 = vmatpush.bf16.msra.mxu0 %v793
    %2708 = vmatpush.bf16.msra.mxu0 %v789
    %2709 = vmatmul.bf16.gmra.mxu0 %v2490
    %v2710 = vpop.f32.mrf.mxu0
    %v2711 = vadd.f32 %v2659, %v2710
    %v2712 = vpop.f32.mrf.mxu0
    %2713 = vdwg.mxu0
    %2714 = vmatpush.bf16.msra.mxu0 %v818
    %2715 = vmatpush.bf16.msra.mxu0 %v814
    %2716 = vmatpush.bf16.msra.mxu0 %v810
    %2717 = vmatpush.bf16.msra.mxu0 %v806
    %2718 = vmatpush.bf16.msra.mxu0 %v802
    %2719 = vmatpush.bf16.msra.mxu0 %v798
    %2720 = vmatpush.bf16.msra.mxu0 %v794
    %2721 = vmatpush.bf16.msra.mxu0 %v790
    %2722 = vmatmul.bf16.gmra.mxu0 %v2490
    %v2723 = vpop.f32.mrf.mxu0
    %v2724 = vadd.f32 %v2672, %v2723
    %v2725 = vpop.f32.mrf.mxu0
    %2726 = vdwg.mxu0
    %v2727 = vadd.f32 %v2685, %v84
    %v2728 = vadd.f32 %v2698, %v85
    %v2729 = vadd.f32 %v2711, %v86
    %v2730 = vadd.f32 %v2724, %v87
    %v2731 = vxor.u32 %v2727, 2147483648
    %v2732 = vxor.u32 %v2728, 2147483648
    %v2733 = vxor.u32 %v2729, 2147483648
    %v2734 = vmul.f32 %v2731, 1.442695
    %v2735 = vpow.pop %v2734
    %v2736 = vmul.f32 %v2732, 1.442695
    %v2737 = vpow.pop %v2736
    %v2738 = vmul.f32 %v2733, 1.442695
    %v2739 = vpow.pop %v2738
    %v2740 = vadd.f32 %v2735, 1.0
    %v2741 = vadd.f32 %v2737, 1.0
    %v2742 = vadd.f32 %v2739, 1.0
    %v2743 = vrcp.pop %v2740
    %v2744 = vmul.f32 %v2740, %v2743
    %v2745 = vsub.f32 1.0, %v2744
    %v2746 = vmul.f32 %v2743, %v2745
    %v2747 = vadd.f32 %v2743, %v2746
    %vm2748 = vweird.f32 %v2740
    %vm2749 = vweird.f32 %v2743
    %vm2750 = vmor %vm2748, %vm2749
    %v2751 = vsel %vm2750, %v2743, %v2747
    %v2752 = vand.u32 2147483647, %v2740
    %vm2753 = vcmp.eq.f32.partialorder %v2752, 8.507059e+37
    %v2754 = vand.u32 %v2740, 2147483648
    %v2755 = vor.u32 1.1754944e-38, %v2754
    %v2756 = vsel %vm2753, %v2755, %v2751
    %v2757 = vmul.f32 1.0, %v2756
    %v2758 = vrcp.pop %v2741
    %v2759 = vmul.f32 %v2741, %v2758
    %v2760 = vsub.f32 1.0, %v2759
    %v2761 = vmul.f32 %v2758, %v2760
    %v2762 = vadd.f32 %v2758, %v2761
    %vm2763 = vweird.f32 %v2741
    %vm2764 = vweird.f32 %v2758
    %vm2765 = vmor %vm2763, %vm2764
    %v2766 = vsel %vm2765, %v2758, %v2762
    %v2767 = vand.u32 2147483647, %v2741
    %vm2768 = vcmp.eq.f32.partialorder %v2767, 8.507059e+37
    %v2769 = vand.u32 %v2741, 2147483648
    %v2770 = vor.u32 1.1754944e-38, %v2769
    %v2771 = vsel %vm2768, %v2770, %v2766
    %v2772 = vmul.f32 1.0, %v2771
    %v2773 = vrcp.pop %v2742
    %v2774 = vmul.f32 %v2742, %v2773
    %v2775 = vsub.f32 1.0, %v2774
    %v2776 = vmul.f32 %v2773, %v2775
    %v2777 = vadd.f32 %v2773, %v2776
    %vm2778 = vweird.f32 %v2742
    %vm2779 = vweird.f32 %v2773
    %vm2780 = vmor %vm2778, %vm2779
    %v2781 = vsel %vm2780, %v2773, %v2777
    %v2782 = vand.u32 2147483647, %v2742
    %vm2783 = vcmp.eq.f32.partialorder %v2782, 8.507059e+37
    %v2784 = vand.u32 %v2742, 2147483648
    %v2785 = vor.u32 1.1754944e-38, %v2784
    %v2786 = vsel %vm2783, %v2785, %v2781
    %v2787 = vmul.f32 1.0, %v2786
    %v2788 = vtanh.pop %v2730
    %v2789 = vmul.f32 %v2772, %v2487
    %v2790 = vmul.f32 %v2757, %v2788
    %v2791 = vadd.f32 %v2789, %v2790
    %v2792 = vtanh.pop %v2791
    %v2793 = vmul.f32 %v2787, %v2792
    %v2794 = vpack.c.bf16 %v2793, %v2793
    %s2795 = scalar_lea.vmem %s0, 56
    %v2796 = vld [vmem:[%s2795] sm:$0xff]
    %2798 = vst [vmem:[#allocation1] ss:$4 sm:$0xff] %v2796
    %v2799 = vld.sshfl [vmem:[#allocation1] sm:$0xff pattern:$0x73625140]
    %v2800 = vld.sshfl [vmem:[#allocation1 + $0x8] sm:$0xff pattern:$0x73625140]
    %v2801 = vld.sshfl [vmem:[#allocation1 + $0x10] sm:$0xff pattern:$0x73625140]
    %v2802 = vld.sshfl [vmem:[#allocation1 + $0x18] sm:$0xff pattern:$0x73625140]
    %2807 = vmatpush.bf16.msra.mxu0 %v281
    %2808 = vmatpush.bf16.msra.mxu0 %v277
    %2809 = vmatpush.bf16.msra.mxu0 %v273
    %2810 = vmatpush.bf16.msra.mxu0 %v269
    %2811 = vmatpush.bf16.msra.mxu0 %v265
    %2812 = vmatpush.bf16.msra.mxu0 %v261
    %2813 = vmatpush.bf16.msra.mxu0 %v257
    %2814 = vmatpush.bf16.msra.mxu0 %v253
    %2815 = vmatmul.bf16.gmra.mxu0 %v2622
    %v2816 = vpop.f32.mrf.mxu0
    %v2817 = vadd.f32 %v2799, %v2816
    %v2818 = vpop.f32.mrf.mxu0
    %2819 = vdwg.mxu0
    %2820 = vmatpush.bf16.msra.mxu0 %v282
    %2821 = vmatpush.bf16.msra.mxu0 %v278
    %2822 = vmatpush.bf16.msra.mxu0 %v274
    %2823 = vmatpush.bf16.msra.mxu0 %v270
    %2824 = vmatpush.bf16.msra.mxu0 %v266
    %2825 = vmatpush.bf16.msra.mxu0 %v262
    %2826 = vmatpush.bf16.msra.mxu0 %v258
    %2827 = vmatpush.bf16.msra.mxu0 %v254
    %2828 = vmatmul.bf16.gmra.mxu0 %v2622
    %v2829 = vpop.f32.mrf.mxu0
    %v2830 = vadd.f32 %v2800, %v2829
    %v2831 = vpop.f32.mrf.mxu0
    %2832 = vdwg.mxu0
    %2833 = vmatpush.bf16.msra.mxu0 %v283
    %2834 = vmatpush.bf16.msra.mxu0 %v279
    %2835 = vmatpush.bf16.msra.mxu0 %v275
    %2836 = vmatpush.bf16.msra.mxu0 %v271
    %2837 = vmatpush.bf16.msra.mxu0 %v267
    %2838 = vmatpush.bf16.msra.mxu0 %v263
    %2839 = vmatpush.bf16.msra.mxu0 %v259
    %2840 = vmatpush.bf16.msra.mxu0 %v255
    %2841 = vmatmul.bf16.gmra.mxu0 %v2622
    %v2842 = vpop.f32.mrf.mxu0
    %v2843 = vadd.f32 %v2801, %v2842
    %v2844 = vpop.f32.mrf.mxu0
    %2845 = vdwg.mxu0
    %2846 = vmatpush.bf16.msra.mxu0 %v284
    %2847 = vmatpush.bf16.msra.mxu0 %v280
    %2848 = vmatpush.bf16.msra.mxu0 %v276
    %2849 = vmatpush.bf16.msra.mxu0 %v272
    %2850 = vmatpush.bf16.msra.mxu0 %v268
    %2851 = vmatpush.bf16.msra.mxu0 %v264
    %2852 = vmatpush.bf16.msra.mxu0 %v260
    %2853 = vmatpush.bf16.msra.mxu0 %v256
    %2854 = vmatmul.bf16.gmra.mxu0 %v2622
    %v2855 = vpop.f32.mrf.mxu0
    %v2856 = vadd.f32 %v2802, %v2855
    %v2857 = vpop.f32.mrf.mxu0
    %2858 = vdwg.mxu0
    %v2859 = vadd.f32 %v2817, %v74
    %v2860 = vadd.f32 %v2830, %v75
    %v2861 = vadd.f32 %v2843, %v76
    %v2862 = vadd.f32 %v2856, %v77
    %v2863 = vxor.u32 %v2859, 2147483648
    %v2864 = vxor.u32 %v2860, 2147483648
    %v2865 = vxor.u32 %v2861, 2147483648
    %v2866 = vmul.f32 %v2863, 1.442695
    %v2867 = vpow.pop %v2866
    %v2868 = vmul.f32 %v2864, 1.442695
    %v2869 = vpow.pop %v2868
    %v2870 = vmul.f32 %v2865, 1.442695
    %v2871 = vpow.pop %v2870
    %v2872 = vadd.f32 %v2867, 1.0
    %v2873 = vadd.f32 %v2869, 1.0
    %v2874 = vadd.f32 %v2871, 1.0
    %v2875 = vrcp.pop %v2872
    %v2876 = vmul.f32 %v2872, %v2875
    %v2877 = vsub.f32 1.0, %v2876
    %v2878 = vmul.f32 %v2875, %v2877
    %v2879 = vadd.f32 %v2875, %v2878
    %vm2880 = vweird.f32 %v2872
    %vm2881 = vweird.f32 %v2875
    %vm2882 = vmor %vm2880, %vm2881
    %v2883 = vsel %vm2882, %v2875, %v2879
    %v2884 = vand.u32 2147483647, %v2872
    %vm2885 = vcmp.eq.f32.partialorder %v2884, 8.507059e+37
    %v2886 = vand.u32 %v2872, 2147483648
    %v2887 = vor.u32 1.1754944e-38, %v2886
    %v2888 = vsel %vm2885, %v2887, %v2883
    %v2889 = vmul.f32 1.0, %v2888
    %v2890 = vrcp.pop %v2873
    %v2891 = vmul.f32 %v2873, %v2890
    %v2892 = vsub.f32 1.0, %v2891
    %v2893 = vmul.f32 %v2890, %v2892
    %v2894 = vadd.f32 %v2890, %v2893
    %vm2895 = vweird.f32 %v2873
    %vm2896 = vweird.f32 %v2890
    %vm2897 = vmor %vm2895, %vm2896
    %v2898 = vsel %vm2897, %v2890, %v2894
    %v2899 = vand.u32 2147483647, %v2873
    %vm2900 = vcmp.eq.f32.partialorder %v2899, 8.507059e+37
    %v2901 = vand.u32 %v2873, 2147483648
    %v2902 = vor.u32 1.1754944e-38, %v2901
    %v2903 = vsel %vm2900, %v2902, %v2898
    %v2904 = vmul.f32 1.0, %v2903
    %v2905 = vrcp.pop %v2874
    %v2906 = vmul.f32 %v2874, %v2905
    %v2907 = vsub.f32 1.0, %v2906
    %v2908 = vmul.f32 %v2905, %v2907
    %v2909 = vadd.f32 %v2905, %v2908
    %vm2910 = vweird.f32 %v2874
    %vm2911 = vweird.f32 %v2905
    %vm2912 = vmor %vm2910, %vm2911
    %v2913 = vsel %vm2912, %v2905, %v2909
    %v2914 = vand.u32 2147483647, %v2874
    %vm2915 = vcmp.eq.f32.partialorder %v2914, 8.507059e+37
    %v2916 = vand.u32 %v2874, 2147483648
    %v2917 = vor.u32 1.1754944e-38, %v2916
    %v2918 = vsel %vm2915, %v2917, %v2913
    %v2919 = vmul.f32 1.0, %v2918
    %v2920 = vtanh.pop %v2862
    %v2921 = vmul.f32 %v2904, %v2619
    %v2922 = vmul.f32 %v2889, %v2920
    %v2923 = vadd.f32 %v2921, %v2922
    %v2924 = vtanh.pop %v2923
    %v2925 = vmul.f32 %v2919, %v2924
    %v2926 = vpack.c.bf16 %v2925, %v2925
    %2927 = vmatpush.bf16.msra.mxu0 %v603
    %2928 = vmatpush.bf16.msra.mxu0 %v599
    %2929 = vmatpush.bf16.msra.mxu0 %v595
    %2930 = vmatpush.bf16.msra.mxu0 %v591
    %2931 = vmatpush.bf16.msra.mxu0 %v587
    %2932 = vmatpush.bf16.msra.mxu0 %v583
    %2933 = vmatpush.bf16.msra.mxu0 %v579
    %2934 = vmatpush.bf16.msra.mxu0 %v575
    %2935 = vmatmul.bf16.gmra.mxu0 %v2926
    %v2936 = vpop.f32.mrf.mxu0
    %v2937 = vadd.f32 0.0, %v2936
    %v2938 = vpop.f32.mrf.mxu0
    %2939 = vdwg.mxu0
    %2940 = vmatpush.bf16.msra.mxu0 %v604
    %2941 = vmatpush.bf16.msra.mxu0 %v600
    %2942 = vmatpush.bf16.msra.mxu0 %v596
    %2943 = vmatpush.bf16.msra.mxu0 %v592
    %2944 = vmatpush.bf16.msra.mxu0 %v588
    %2945 = vmatpush.bf16.msra.mxu0 %v584
    %2946 = vmatpush.bf16.msra.mxu0 %v580
    %2947 = vmatpush.bf16.msra.mxu0 %v576
    %2948 = vmatmul.bf16.gmra.mxu0 %v2926
    %v2949 = vpop.f32.mrf.mxu0
    %v2950 = vadd.f32 0.0, %v2949
    %v2951 = vpop.f32.mrf.mxu0
    %2952 = vdwg.mxu0
    %2953 = vmatpush.bf16.msra.mxu0 %v605
    %2954 = vmatpush.bf16.msra.mxu0 %v601
    %2955 = vmatpush.bf16.msra.mxu0 %v597
    %2956 = vmatpush.bf16.msra.mxu0 %v593
    %2957 = vmatpush.bf16.msra.mxu0 %v589
    %2958 = vmatpush.bf16.msra.mxu0 %v585
    %2959 = vmatpush.bf16.msra.mxu0 %v581
    %2960 = vmatpush.bf16.msra.mxu0 %v577
    %2961 = vmatmul.bf16.gmra.mxu0 %v2926
    %v2962 = vpop.f32.mrf.mxu0
    %v2963 = vadd.f32 0.0, %v2962
    %v2964 = vpop.f32.mrf.mxu0
    %2965 = vdwg.mxu0
    %2966 = vmatpush.bf16.msra.mxu0 %v606
    %2967 = vmatpush.bf16.msra.mxu0 %v602
    %2968 = vmatpush.bf16.msra.mxu0 %v598
    %2969 = vmatpush.bf16.msra.mxu0 %v594
    %2970 = vmatpush.bf16.msra.mxu0 %v590
    %2971 = vmatpush.bf16.msra.mxu0 %v586
    %2972 = vmatpush.bf16.msra.mxu0 %v582
    %2973 = vmatpush.bf16.msra.mxu0 %v578
    %2974 = vmatmul.bf16.gmra.mxu0 %v2926
    %v2975 = vpop.f32.mrf.mxu0
    %v2976 = vadd.f32 0.0, %v2975
    %v2977 = vpop.f32.mrf.mxu0
    %2978 = vdwg.mxu0
    %2979 = vmatpush.bf16.msra.mxu0 %v815
    %2980 = vmatpush.bf16.msra.mxu0 %v811
    %2981 = vmatpush.bf16.msra.mxu0 %v807
    %2982 = vmatpush.bf16.msra.mxu0 %v803
    %2983 = vmatpush.bf16.msra.mxu0 %v799
    %2984 = vmatpush.bf16.msra.mxu0 %v795
    %2985 = vmatpush.bf16.msra.mxu0 %v791
    %2986 = vmatpush.bf16.msra.mxu0 %v787
    %2987 = vmatmul.bf16.gmra.mxu0 %v2794
    %v2988 = vpop.f32.mrf.mxu0
    %v2989 = vadd.f32 %v2937, %v2988
    %v2990 = vpop.f32.mrf.mxu0
    %2991 = vdwg.mxu0
    %2992 = vmatpush.bf16.msra.mxu0 %v816
    %2993 = vmatpush.bf16.msra.mxu0 %v812
    %2994 = vmatpush.bf16.msra.mxu0 %v808
    %2995 = vmatpush.bf16.msra.mxu0 %v804
    %2996 = vmatpush.bf16.msra.mxu0 %v800
    %2997 = vmatpush.bf16.msra.mxu0 %v796
    %2998 = vmatpush.bf16.msra.mxu0 %v792
    %2999 = vmatpush.bf16.msra.mxu0 %v788
    %3000 = vmatmul.bf16.gmra.mxu0 %v2794
    %v3001 = vpop.f32.mrf.mxu0
    %v3002 = vadd.f32 %v2950, %v3001
    %v3003 = vpop.f32.mrf.mxu0
    %3004 = vdwg.mxu0
    %3005 = vmatpush.bf16.msra.mxu0 %v817
    %3006 = vmatpush.bf16.msra.mxu0 %v813
    %3007 = vmatpush.bf16.msra.mxu0 %v809
    %3008 = vmatpush.bf16.msra.mxu0 %v805
    %3009 = vmatpush.bf16.msra.mxu0 %v801
    %3010 = vmatpush.bf16.msra.mxu0 %v797
    %3011 = vmatpush.bf16.msra.mxu0 %v793
    %3012 = vmatpush.bf16.msra.mxu0 %v789
    %3013 = vmatmul.bf16.gmra.mxu0 %v2794
    %v3014 = vpop.f32.mrf.mxu0
    %v3015 = vadd.f32 %v2963, %v3014
    %v3016 = vpop.f32.mrf.mxu0
    %3017 = vdwg.mxu0
    %3018 = vmatpush.bf16.msra.mxu0 %v818
    %3019 = vmatpush.bf16.msra.mxu0 %v814
    %3020 = vmatpush.bf16.msra.mxu0 %v810
    %3021 = vmatpush.bf16.msra.mxu0 %v806
    %3022 = vmatpush.bf16.msra.mxu0 %v802
    %3023 = vmatpush.bf16.msra.mxu0 %v798
    %3024 = vmatpush.bf16.msra.mxu0 %v794
    %3025 = vmatpush.bf16.msra.mxu0 %v790
    %3026 = vmatmul.bf16.gmra.mxu0 %v2794
    %v3027 = vpop.f32.mrf.mxu0
    %v3028 = vadd.f32 %v2976, %v3027
    %v3029 = vpop.f32.mrf.mxu0
    %3030 = vdwg.mxu0
    %v3031 = vadd.f32 %v2989, %v84
    %v3032 = vadd.f32 %v3002, %v85
    %v3033 = vadd.f32 %v3015, %v86
    %v3034 = vadd.f32 %v3028, %v87
    %v3035 = vxor.u32 %v3031, 2147483648
    %v3036 = vxor.u32 %v3032, 2147483648
    %v3037 = vxor.u32 %v3033, 2147483648
    %v3038 = vmul.f32 %v3035, 1.442695
    %v3039 = vpow.pop %v3038
    %v3040 = vmul.f32 %v3036, 1.442695
    %v3041 = vpow.pop %v3040
    %v3042 = vmul.f32 %v3037, 1.442695
    %v3043 = vpow.pop %v3042
    %v3044 = vadd.f32 %v3039, 1.0
    %v3045 = vadd.f32 %v3041, 1.0
    %v3046 = vadd.f32 %v3043, 1.0
    %v3047 = vrcp.pop %v3044
    %v3048 = vmul.f32 %v3044, %v3047
    %v3049 = vsub.f32 1.0, %v3048
    %v3050 = vmul.f32 %v3047, %v3049
    %v3051 = vadd.f32 %v3047, %v3050
    %vm3052 = vweird.f32 %v3044
    %vm3053 = vweird.f32 %v3047
    %vm3054 = vmor %vm3052, %vm3053
    %v3055 = vsel %vm3054, %v3047, %v3051
    %v3056 = vand.u32 2147483647, %v3044
    %vm3057 = vcmp.eq.f32.partialorder %v3056, 8.507059e+37
    %v3058 = vand.u32 %v3044, 2147483648
    %v3059 = vor.u32 1.1754944e-38, %v3058
    %v3060 = vsel %vm3057, %v3059, %v3055
    %v3061 = vmul.f32 1.0, %v3060
    %v3062 = vrcp.pop %v3045
    %v3063 = vmul.f32 %v3045, %v3062
    %v3064 = vsub.f32 1.0, %v3063
    %v3065 = vmul.f32 %v3062, %v3064
    %v3066 = vadd.f32 %v3062, %v3065
    %vm3067 = vweird.f32 %v3045
    %vm3068 = vweird.f32 %v3062
    %vm3069 = vmor %vm3067, %vm3068
    %v3070 = vsel %vm3069, %v3062, %v3066
    %v3071 = vand.u32 2147483647, %v3045
    %vm3072 = vcmp.eq.f32.partialorder %v3071, 8.507059e+37
    %v3073 = vand.u32 %v3045, 2147483648
    %v3074 = vor.u32 1.1754944e-38, %v3073
    %v3075 = vsel %vm3072, %v3074, %v3070
    %v3076 = vmul.f32 1.0, %v3075
    %v3077 = vrcp.pop %v3046
    %v3078 = vmul.f32 %v3046, %v3077
    %v3079 = vsub.f32 1.0, %v3078
    %v3080 = vmul.f32 %v3077, %v3079
    %v3081 = vadd.f32 %v3077, %v3080
    %vm3082 = vweird.f32 %v3046
    %vm3083 = vweird.f32 %v3077
    %vm3084 = vmor %vm3082, %vm3083
    %v3085 = vsel %vm3084, %v3077, %v3081
    %v3086 = vand.u32 2147483647, %v3046
    %vm3087 = vcmp.eq.f32.partialorder %v3086, 8.507059e+37
    %v3088 = vand.u32 %v3046, 2147483648
    %v3089 = vor.u32 1.1754944e-38, %v3088
    %v3090 = vsel %vm3087, %v3089, %v3085
    %v3091 = vmul.f32 1.0, %v3090
    %v3092 = vtanh.pop %v3034
    %v3093 = vmul.f32 %v3076, %v2791
    %v3094 = vmul.f32 %v3061, %v3092
    %v3095 = vadd.f32 %v3093, %v3094
    %v3096 = vtanh.pop %v3095
    %v3097 = vmul.f32 %v3091, %v3096
    %3098 = vst [vmem:[#allocation8] sm:$0x3] %v3097
    // Predicated region
    $region38: #{_encoder_padded.1} parent=1 // pred_check
      _
    $region39: #{_encoder_padded.1} parent=1 // pred_check_branch
      %3100 = sbr.rel (0) target = $region41
    $region40: #{_encoder_padded.1} parent=1 // pred_region
      %3102 = vsyncadd [#allocation4], 0
      %s3104 = sshll.u32 [#allocation8], 4
      %s3105 = int_to_ptr.vmem [resolvable:$true] %s3104
      %s3106 = sshll.u32 %s6, 4
      %s3107 = int_to_ptr.hbm [resolvable:$true] %s3106
      %3109 = dma.vmem_to_hbm [thread:$0]  %s3105, 32, %s3107, [#allocation4]
    $region41: #{_encoder_padded.1} parent=1 // pred_fallthru
      _
    // Predicated region
    $region42: #{_encoder_padded.1} parent=1 // pred_check
      _
    $region43: #{_encoder_padded.1} parent=1 // pred_check_branch
      %3111 = sbr.rel (0) target = $region45
    $region44: #{_encoder_padded.1} parent=1 // pred_region
      %3113 = dma.done [#allocation4], 32
    $region45: #{_encoder_padded.1} parent=1 // pred_fallthru
      _
    %3114 = vsyncpa [#allocation3], 1
    %3115 = vsyncpa [#allocation6], 1
    %3116 = vsyncpa [#allocation4], 1

</llo_original>
